<compile_context>
chip_gen: v7x
topology: tpu7x:2x2x1
jax: 0.10.0
libtpu: 0.0.40
codegen_flags: <defaults>
</compile_context>

<pallas_src>
import functools

import jax
import jax.numpy as jnp
from jax.experimental import pallas as pl
from jax.experimental.pallas import tpu as pltpu


# ----------------------------------------------------------------------------
# Shared fused attention math (runs on (nb, S, C) blocks already in VMEM)
# ----------------------------------------------------------------------------
def _attn_core(x, lnw, lnb, wqkv, bqkv, wo, bo, gamma, *, num_heads, head_dim, eps):
    nb, s, c = x.shape
    cdt = wqkv.dtype                                   # bf16 MXU operand dtype

    # LayerNorm over C; var = E[x^2] - mu^2 (two reductions issued together).
    mu = jnp.mean(x, axis=-1, keepdims=True)
    var = jnp.mean(x * x, axis=-1, keepdims=True) - mu * mu
    y = (x - mu) * jax.lax.rsqrt(var + eps)
    y = y * lnw + lnb

    # Fused q/k/v projection: one (M, C) @ (C, 3C) MXU push, f32 accumulation.
    # q-scale is pre-folded into wqkv[:, :C] / bqkv[:, :C] by the wrapper.
    y2 = y.reshape(nb * s, c).astype(cdt)
    qkv = jnp.dot(y2, wqkv, preferred_element_type=jnp.float32) + bqkv  # (M, 3C)

    # Per-head softmax attention (static unrolled loop over lane slices).
    head_outs = []
    for h in range(num_heads):
        lo = h * head_dim
        qh = qkv[:, lo:lo + head_dim].reshape(nb, s, head_dim).astype(cdt)
        kh = qkv[:, c + lo:c + lo + head_dim].reshape(nb, s, head_dim).astype(cdt)
        vh = qkv[:, 2 * c + lo:2 * c + lo + head_dim].reshape(nb, s, head_dim).astype(cdt)
        logits = jnp.einsum('bqd,bkd->bqk', qh, kh,
                            preferred_element_type=jnp.float32)
        logits = logits - jnp.max(logits, axis=-1, keepdims=True)
        p = jnp.exp(logits)
        p = p * pl.reciprocal(jnp.sum(p, axis=-1, keepdims=True), approx=True)
        head_outs.append(jnp.einsum('bqk,bkd->bqd', p.astype(cdt), vh,
                                    preferred_element_type=jnp.float32))
    att = jnp.concatenate(head_outs, axis=-1).reshape(nb * s, c).astype(cdt)

    # Output projection + LayerScale.
    out = jnp.dot(att, wo, preferred_element_type=jnp.float32) + bo
    out = out * gamma
    return out.reshape(nb, s, c)


# ----------------------------------------------------------------------------
# Kernels
# ----------------------------------------------------------------------------
def window_branch_kernel(x_ref, lnw_ref, lnb_ref, wqkv_ref, bqkv_ref, wo_ref,
                         bo_ref, gamma_ref, o_ref,
                         *, bands, wh, ww, num_heads, head_dim, eps):
    """Image-layout row band -> in-VMEM window partition -> fused attention ->
    in-VMEM window reverse -> residual add -> image-layout output."""
    _, band_h, w_img, c = x_ref.shape
    nww = w_img // ww
    nb = bands * nww
    s = wh * ww

    x = x_ref[0].astype(jnp.float32)                      # (band_h, W, C)
    # window partition: minor (ww, C) dims untouched -> cheap re-indexing.
    xw = x.reshape(bands, wh, nww, ww, c)
    xw = jnp.transpose(xw, (0, 2, 1, 3, 4)).reshape(nb, s, c)

    yw = _attn_core(xw, lnw_ref[...], lnb_ref[...], wqkv_ref[...], bqkv_ref[...],
                    wo_ref[...], bo_ref[...], gamma_ref[...],
                    num_heads=num_heads, head_dim=head_dim, eps=eps)

    # window reverse + fused residual add, written back in image layout.
    yw = yw.reshape(bands, nww, wh, ww, c)
    yw = jnp.transpose(yw, (0, 2, 1, 3, 4)).reshape(band_h, w_img, c)
    o_ref[0] = (x + yw).astype(o_ref.dtype)


def windows_attn_kernel(x_ref, lnw_ref, lnb_ref, wqkv_ref, bqkv_ref, wo_ref,
                        bo_ref, gamma_ref, o_ref, *, num_heads, head_dim, eps):
    """Generic (nb, S, C) windows -> fused attention (used by the grid branch)."""
    out = _attn_core(x_ref[...].astype(jnp.float32), lnw_ref[...], lnb_ref[...],
                     wqkv_ref[...], bqkv_ref[...], wo_ref[...], bo_ref[...],
                     gamma_ref[...], num_heads=num_heads, head_dim=head_dim,
                     eps=eps)
    o_ref[...] = out.astype(o_ref.dtype)


# ----------------------------------------------------------------------------
# Tiling / VMEM heuristics (generation-aware)
# ----------------------------------------------------------------------------
def _vmem_limit_bytes():
    cap = 64 * 1024 * 1024                       # conservative fallback (v7x)
    try:
        info = pltpu.get_tpu_info()
        cap = int(getattr(info, "vmem_capacity_bytes", cap))
    except Exception:
        pass
    return (cap * 3) // 4


def _workset_bytes(nb, s, c, num_heads, itemsize):
    f32_tok = 4 * nb * s * c
    act = 10 * f32_tok                           # x, y, qkv, att, out (+ slack)
    logits = 2 * 4 * nb * num_heads * s * s      # logits + probabilities
    io = 2 * 2 * nb * s * c * itemsize           # double-buffered in/out blocks
    wts = 2 * 2 * 4 * c * c                      # bf16 (C,3C)+(C,C), x2 buffers
    return act + logits + io + wts


def _choose(units, unit_windows, extra_steps, s, c, num_heads, itemsize, budget,
            min_m=256, min_steps=8):
    """How many 'units' (bands or windows) per grid step."""
    divisors = [d for d in range(1, units + 1) if units % d == 0]
    fit = [d for d in divisors
           if _workset_bytes(d * unit_windows, s, c, num_heads, itemsize) <= budget]
    if not fit:
        fit = [1]
    steps = lambda d: extra_steps * (units // d)
    m = lambda d: d * unit_windows * s
    cand = [d for d in fit if steps(d) >= min_steps and m(d) >= min_m]
    if cand:
        return min(cand)
    cand = [d for d in fit if m(d) >= min_m]
    if cand:
        return min(cand)
    cand = [d for d in fit if steps(d) >= 2]
    if cand:
        return max(cand)
    return max(fit)


# ----------------------------------------------------------------------------
# Branch wrappers
# ----------------------------------------------------------------------------
def _prepare_branch_params(p, head_dim, compute_dtype=jnp.bfloat16):
    """Fuse q/k/v weights, fold the q-scale, cast MXU operands to bf16."""
    scale = head_dim ** -0.5
    wqkv = jnp.concatenate([p['wq_t'] * scale, p['wk_t'], p['wv_t']], axis=1)
    bqkv = jnp.concatenate([p['bq'] * scale, p['bk'], p['bv']], axis=1)
    return {
        'ln_w': p['ln_w'].astype(jnp.float32),
        'ln_b': p['ln_b'].astype(jnp.float32),
        'wqkv': wqkv.astype(compute_dtype),
        'bqkv': bqkv.astype(jnp.float32),
        'wo': p['wo_t'].astype(compute_dtype),
        'bo': p['bo'].astype(jnp.float32),
        'gamma': p['gamma'].astype(jnp.float32),
    }


def _window_branch_fused(x, p, head_dim, window_size):
    """Returns x + LayerScale(window-attention branch) in image layout."""
    b, h_img, w_img, c = x.shape
    wh, ww = window_size
    num_heads = c // head_dim
    num_bands = h_img // wh
    win_per_band = w_img // ww
    s = wh * ww
    limit = _vmem_limit_bytes()
    bands = _choose(num_bands, win_per_band, b, s, c, num_heads,
                    x.dtype.itemsize, limit)
    band_h = bands * wh

    kernel = functools.partial(window_branch_kernel, bands=bands, wh=wh, ww=ww,
                               num_heads=num_heads, head_dim=head_dim, eps=1e-5)
    const = lambda i, j: (0, 0)
    # NOTE: the weight/bias/gamma specs are grid-invariant; on v7x (64 MiB VMEM)
    # pipeline_mode=pl.Buffered(1) on them would reclaim the second buffer.
    return pl.pallas_call(
        kernel,
        out_shape=jax.ShapeDtypeStruct(x.shape, x.dtype),
        grid=(b, num_bands // bands),
        in_specs=[
            pl.BlockSpec((1, band_h, w_img, c), lambda i, j: (i, j, 0, 0)),
            pl.BlockSpec((1, c), const),          # LayerNorm weight
            pl.BlockSpec((1, c), const),          # LayerNorm bias
            pl.BlockSpec((c, 3 * c), const),      # fused Wqkv^T (bf16, scale folded)
            pl.BlockSpec((1, 3 * c), const),      # fused bqkv (f32, scale folded)
            pl.BlockSpec((c, c), const),          # Wproj^T (bf16)
            pl.BlockSpec((1, c), const),          # bproj
            pl.BlockSpec((1, c), const),          # LayerScale gamma
        ],
        out_specs=pl.BlockSpec((1, band_h, w_img, c), lambda i, j: (i, j, 0, 0)),
        compiler_params=pltpu.CompilerParams(
            dimension_semantics=("parallel", "parallel"),
            vmem_limit_bytes=limit),
    )(x, p['ln_w'], p['ln_b'], p['wqkv'], p['bqkv'], p['wo'], p['bo'], p['gamma'])


def _grid_branch(x, p, head_dim, grid_size):
    """Returns LayerScale(grid-attention branch) in image layout."""
    b, h_img, w_img, c = x.shape
    gh, gw = grid_size
    num_heads = c // head_dim
    s = gh * gw
    wnd = grid_partition(x, grid_size).reshape(-1, s, c)   # (NW, S, C)
    nw_total = wnd.shape[0]
    limit = _vmem_limit_bytes()
    nb = _choose(nw_total, 1, 1, s, c, num_heads, x.dtype.itemsize, limit)

    kernel = functools.partial(windows_attn_kernel, num_heads=num_heads,
                               head_dim=head_dim, eps=1e-5)
    const = lambda i: (0, 0)
    out = pl.pallas_call(
        kernel,
        out_shape=jax.ShapeDtypeStruct(wnd.shape, x.dtype),
        grid=(nw_total // nb,),
        in_specs=[
            pl.BlockSpec((nb, s, c), lambda i: (i, 0, 0)),
            pl.BlockSpec((1, c), const),
            pl.BlockSpec((1, c), const),
            pl.BlockSpec((c, 3 * c), const),
            pl.BlockSpec((1, 3 * c), const),
            pl.BlockSpec((c, c), const),
            pl.BlockSpec((1, c), const),
            pl.BlockSpec((1, c), const),
        ],
        out_specs=pl.BlockSpec((nb, s, c), lambda i: (i, 0, 0)),
        compiler_params=pltpu.CompilerParams(
            dimension_semantics=("parallel",),
            vmem_limit_bytes=limit),
    )(wnd, p['ln_w'], p['ln_b'], p['wqkv'], p['bqkv'], p['wo'], p['bo'], p['gamma'])
    return grid_reverse(out.reshape(nw_total, gh, gw, c), grid_size,
                        (h_img, w_img))


# ----------------------------------------------------------------------------
# window / grid partitioning (grid branch + reference; pure reshape/transpose)
# ----------------------------------------------------------------------------
def window_partition(x, ws):
    b, h, w, c = x.shape
    x = x.reshape(b, h // ws[0], ws[0], w // ws[1], ws[1], c)
    x = jnp.transpose(x, (0, 1, 3, 2, 4, 5))
    return x.reshape(-1, ws[0], ws[1], c)


def window_reverse(windows, ws, img_size):
    h, w = img_size
    c = windows.shape[-1]
    x = windows.reshape(-1, h // ws[0], w // ws[1], ws[0], ws[1], c)
    x = jnp.transpose(x, (0, 1, 3, 2, 4, 5))
    return x.reshape(-1, h, w, c)


def grid_partition(x, gs):
    b, h, w, c = x.shape
    x = x.reshape(b, gs[0], h // gs[0], gs[1], w // gs[1], c)
    x = jnp.transpose(x, (0, 2, 4, 1, 3, 5))
    return x.reshape(-1, gs[0], gs[1], c)


def grid_reverse(windows, gs, img_size):
    h, w = img_size
    c = windows.shape[-1]
    x = windows.reshape(-1, h // gs[0], w // gs[1], gs[0], gs[1], c)
    x = jnp.transpose(x, (0, 3, 1, 4, 2, 5))
    return x.reshape(-1, h, w, c)


def parallel_attention_cl(x, params, head_dim, window_size, grid_size):
    """ParallelAttentionCl forward, default config attns=[True, True, False, False]."""
    p_win = _prepare_branch_params(params['window'], head_dim)
    p_grd = _prepare_branch_params(params['grid'], head_dim)
    # window branch: fully fused in image layout (residual add included)
    out = _window_branch_fused(x, p_win, head_dim, window_size)
    # grid branch: strided partition in the wrapper, fused attention kernel
    out = out + _grid_branch(x, p_grd, head_dim, grid_size)
    return out
    # TODO(synk): ChannelAttention / GlobalSubSampleAttn branches (attns[2/3]) are
    # disabled in the module's default config and are not implemented here.


# ----------------------------------------------------------------------------
# Pure-JAX reference (mirrors the PyTorch module exactly, f32 throughout)
# ----------------------------------------------------------------------------
def _layernorm_ref(x, w, b, eps=1e-5):
    mu = jnp.mean(x, axis=-1, keepdims=True)
    var = jnp.mean(jnp.square(x - mu), axis=-1, keepdims=True)
    return (x - mu) / jnp.sqrt(var + eps) * w + b


def _attention_cl_ref(x, p, head_dim):
    b, hh, ww, c = x.shape
    nh = c // head_dim
    scale = head_dim ** -0.5
    n = hh * ww
    wqkv = jnp.concatenate([p['wq_t'], p['wk_t'], p['wv_t']], axis=1)  # (C, 3C)
    bqkv = jnp.concatenate([p['bq'], p['bk'], p['bv']], axis=1)        # (1, 3C)
    qkv = x.reshape(b, n, c) @ wqkv + bqkv
    qkv = qkv.reshape(b, n, 3, nh, head_dim).transpose(2, 0, 3, 1, 4)
    q, k, v = qkv[0], qkv[1], qkv[2]
    q = q * scale
    attn = jax.nn.softmax(q @ jnp.swapaxes(k, -2, -1), axis=-1)
    o = attn @ v
    o = jnp.swapaxes(o, 1, 2).reshape(b, hh, ww, c)
    return o @ p['wo_t'] + p['bo']


def _branch_ref(x, p, head_dim, partition, reverse, size, img):
    y = _layernorm_ref(x, p['ln_w'], p['ln_b'])
    y = partition(y, size)
    y = _attention_cl_ref(y, p, head_dim)
    y = reverse(y, size, img)
    return y * p['gamma']


def reference(x, params, head_dim, window_size, grid_size):
    b, h, w, c = x.shape
    img = (h, w)
    out = x
    out = out + _branch_ref(x, params['window'], head_dim,
                            window_partition, window_reverse, window_size, img)
    out = out + _branch_ref(x, params['grid'], head_dim,
                            grid_partition, grid_reverse, grid_size, img)
    return out


# ----------------------------------------------------------------------------
# Test harness
# ----------------------------------------------------------------------------
def _init_branch_params(key, c, dtype=jnp.float32):
    ks = jax.random.split(key, 7)
    # PyTorch Linear weights are (out_features, in_features); stored transposed.
    wqkv = jax.random.normal(ks[0], (3 * c, c), dtype) * 0.05
    bqkv = jax.random.normal(ks[1], (3 * c,), dtype) * 0.05
    wproj = jax.random.normal(ks[2], (c, c), dtype) * 0.05
    bproj = jax.random.normal(ks[3], (c,), dtype) * 0.05
    ln_w = 1.0 + 0.1 * jax.random.normal(ks[4], (c,), dtype)
    ln_b = 0.1 * jax.random.normal(ks[5], (c,), dtype)
    # LayerScale gamma: module initializes to 1e-5; use O(1) random values here
    # so the correctness check is sensitive to the attention result.
    gamma = 1.0 + 0.1 * jax.random.normal(ks[6], (c,), dtype)
    return {
        'ln_w': ln_w.reshape(1, c), 'ln_b': ln_b.reshape(1, c),
        'wq_t': wqkv[:c].T, 'wk_t': wqkv[c:2 * c].T, 'wv_t': wqkv[2 * c:].T,
        'bq': bqkv[:c].reshape(1, c), 'bk': bqkv[c:2 * c].reshape(1, c),
        'bv': bqkv[2 * c:].reshape(1, c),
        'wo_t': wproj.T, 'bo': bproj.reshape(1, c),
        'gamma': gamma.reshape(1, c),
    }


if __name__ == "__main__":
    # Small config consistent with the module: dim=64, head_dim=32 (2 heads),
    # window_size=grid_size=8 on a 16x16 feature map, batch=2.
    dim, head_dim = 64, 32
    B, H, W = 2, 16, 16
    window_size = (8, 8)
    grid_size = (8, 8)

    key = jax.random.PRNGKey(0)
    kx, kw, kg = jax.random.split(key, 3)
    x = jax.random.normal(kx, (B, H, W, dim), dtype=jnp.float32)
    params = {
        'window': _init_branch_params(kw, dim),
        'grid': _init_branch_params(kg, dim),
    }

    out = parallel_attention_cl(x, params, head_dim, window_size, grid_size)
    out = jax.block_until_ready(out)

    ref = reference(x, params, head_dim, window_size, grid_size)
    assert out.shape == x.shape
    # bf16 MXU operands + approx reciprocal -> slightly looser tolerance vs f32 ref.
    assert jnp.allclose(out, ref, atol=5e-2, rtol=5e-2), "mismatch vs reference"

    print("KERNEL_OK")
</pallas_src>

<mosaic_0001>
module attributes {stable_mosaic.version = 11 : i64} {
  func.func @window_branch_kernel(%arg0: i32, %arg1: i32, %arg2: memref<1x16x16x64xf32, #tpu.memory_space<vmem>>, %arg3: memref<1x64xf32, #tpu.memory_space<vmem>>, %arg4: memref<1x64xf32, #tpu.memory_space<vmem>>, %arg5: memref<64x192xbf16, #tpu.memory_space<vmem>>, %arg6: memref<1x192xf32, #tpu.memory_space<vmem>>, %arg7: memref<64x64xbf16, #tpu.memory_space<vmem>>, %arg8: memref<1x64xf32, #tpu.memory_space<vmem>>, %arg9: memref<1x64xf32, #tpu.memory_space<vmem>>, %arg10: memref<1x16x16x64xf32, #tpu.memory_space<vmem>>) attributes {dimension_semantics = [#tpu.dimension_semantics<parallel>, #tpu.dimension_semantics<parallel>], iteration_bounds = array<i64: 2, 1>, scalar_prefetch = 0 : i64, scratch_operands = 0 : i64, tpu.core_type = #tpu.core_type<tc>, window_params = [{transform_indices = @transform_0, window_bounds = array<i64: 1, 16, 16, 64>}, {pipeline_mode = #tpu.pipeline_mode<synchronous>, transform_indices = @transform_1, window_bounds = array<i64: 1, 64>}, {pipeline_mode = #tpu.pipeline_mode<synchronous>, transform_indices = @transform_2, window_bounds = array<i64: 1, 64>}, {pipeline_mode = #tpu.pipeline_mode<synchronous>, transform_indices = @transform_3, window_bounds = array<i64: 64, 192>}, {pipeline_mode = #tpu.pipeline_mode<synchronous>, transform_indices = @transform_4, window_bounds = array<i64: 1, 192>}, {pipeline_mode = #tpu.pipeline_mode<synchronous>, transform_indices = @transform_5, window_bounds = array<i64: 64, 64>}, {pipeline_mode = #tpu.pipeline_mode<synchronous>, transform_indices = @transform_6, window_bounds = array<i64: 1, 64>}, {pipeline_mode = #tpu.pipeline_mode<synchronous>, transform_indices = @transform_7, window_bounds = array<i64: 1, 64>}, {transform_indices = @transform_8, window_bounds = array<i64: 1, 16, 16, 64>}]} {
    %c0 = arith.constant 0 : index
    %c0_0 = arith.constant 0 : index
    %c0_1 = arith.constant 0 : index
    %c0_2 = arith.constant 0 : index
    %0 = vector.load %arg2[%c0, %c0_0, %c0_1, %c0_2] : memref<1x16x16x64xf32, #tpu.memory_space<vmem>>, vector<1x16x16x64xf32>
    %1 = vector.shape_cast %0 : vector<1x16x16x64xf32> to vector<16x16x64xf32>
    %2 = vector.shape_cast %1 : vector<16x16x64xf32> to vector<2x8x2x8x64xf32>
    %3 = tpu.transpose %2, [0, 2, 1, 3, 4] : vector<2x8x2x8x64xf32> -> vector<2x2x8x8x64xf32>
    %4 = vector.shape_cast %3 : vector<2x2x8x8x64xf32> to vector<4x64x64xf32>
    %c0_3 = arith.constant 0 : index
    %c0_4 = arith.constant 0 : index
    %5 = vector.load %arg3[%c0_3, %c0_4] : memref<1x64xf32, #tpu.memory_space<vmem>>, vector<1x64xf32>
    %c0_5 = arith.constant 0 : index
    %c0_6 = arith.constant 0 : index
    %6 = vector.load %arg4[%c0_5, %c0_6] : memref<1x64xf32, #tpu.memory_space<vmem>>, vector<1x64xf32>
    %c0_7 = arith.constant 0 : index
    %c0_8 = arith.constant 0 : index
    %7 = vector.load %arg5[%c0_7, %c0_8] : memref<64x192xbf16, #tpu.memory_space<vmem>>, vector<64x192xbf16>
    %c0_9 = arith.constant 0 : index
    %c0_10 = arith.constant 0 : index
    %8 = vector.load %arg6[%c0_9, %c0_10] : memref<1x192xf32, #tpu.memory_space<vmem>>, vector<1x192xf32>
    %c0_11 = arith.constant 0 : index
    %c0_12 = arith.constant 0 : index
    %9 = vector.load %arg7[%c0_11, %c0_12] : memref<64x64xbf16, #tpu.memory_space<vmem>>, vector<64x64xbf16>
    %c0_13 = arith.constant 0 : index
    %c0_14 = arith.constant 0 : index
    %10 = vector.load %arg8[%c0_13, %c0_14] : memref<1x64xf32, #tpu.memory_space<vmem>>, vector<1x64xf32>
    %c0_15 = arith.constant 0 : index
    %c0_16 = arith.constant 0 : index
    %11 = vector.load %arg9[%c0_15, %c0_16] : memref<1x64xf32, #tpu.memory_space<vmem>>, vector<1x64xf32>
    %cst = arith.constant dense<0.000000e+00> : vector<4x64xf32>
    %12 = vector.multi_reduction <add>, %4, %cst [2] : vector<4x64x64xf32> to vector<4x64xf32>
    %13 = vector.shape_cast %12 : vector<4x64xf32> to vector<4x64x1xf32>
    %cst_17 = arith.constant 6.400000e+01 : f32
    %14 = vector.broadcast %cst_17 : f32 to vector<4x64x1xf32>
    %15 = arith.divf %13, %14 : vector<4x64x1xf32>
    %16 = arith.mulf %4, %4 : vector<4x64x64xf32>
    %cst_18 = arith.constant dense<0.000000e+00> : vector<4x64xf32>
    %17 = vector.multi_reduction <add>, %16, %cst_18 [2] : vector<4x64x64xf32> to vector<4x64xf32>
    %18 = vector.shape_cast %17 : vector<4x64xf32> to vector<4x64x1xf32>
    %cst_19 = arith.constant 6.400000e+01 : f32
    %19 = vector.broadcast %cst_19 : f32 to vector<4x64x1xf32>
    %20 = arith.divf %18, %19 : vector<4x64x1xf32>
    %21 = arith.mulf %15, %15 : vector<4x64x1xf32>
    %22 = arith.subf %20, %21 : vector<4x64x1xf32>
    %23 = vector.broadcast %15 : vector<4x64x1xf32> to vector<4x64x64xf32>
    %24 = arith.subf %4, %23 : vector<4x64x64xf32>
    %cst_20 = arith.constant 9.99999974E-6 : f32
    %25 = vector.broadcast %cst_20 : f32 to vector<4x64x1xf32>
    %26 = arith.addf %22, %25 : vector<4x64x1xf32>
    %27 = math.rsqrt %26 : vector<4x64x1xf32>
    %28 = vector.broadcast %27 : vector<4x64x1xf32> to vector<4x64x64xf32>
    %29 = arith.mulf %24, %28 : vector<4x64x64xf32>
    %30 = vector.shape_cast %5 : vector<1x64xf32> to vector<1x1x64xf32>
    %31 = vector.broadcast %30 : vector<1x1x64xf32> to vector<4x64x64xf32>
    %32 = arith.mulf %29, %31 : vector<4x64x64xf32>
    %33 = vector.shape_cast %6 : vector<1x64xf32> to vector<1x1x64xf32>
    %34 = vector.broadcast %33 : vector<1x1x64xf32> to vector<4x64x64xf32>
    %35 = arith.addf %32, %34 : vector<4x64x64xf32>
    %36 = vector.shape_cast %35 : vector<4x64x64xf32> to vector<256x64xf32>
    %37 = arith.truncf %36 : vector<256x64xf32> to vector<256x64xbf16>
    %cst_21 = arith.constant dense<0.000000e+00> : vector<256x192xf32>
    %38 = tpu.matmul %37, %7, %cst_21 {dimension_numbers = #tpu.dot_dimension_numbers<[1], [0], [0], [1], [0, 0, 1, 1], [], []>} : vector<256x64xbf16>, vector<64x192xbf16>, vector<256x192xf32> -> vector<256x192xf32>
    %39 = vector.broadcast %8 : vector<1x192xf32> to vector<256x192xf32>
    %40 = arith.addf %38, %39 : vector<256x192xf32>
    %41 = vector.extract_strided_slice %40 {offsets = [0, 0], sizes = [256, 32], strides = [1, 1]} : vector<256x192xf32> to vector<256x32xf32>
    %42 = vector.shape_cast %41 : vector<256x32xf32> to vector<4x64x32xf32>
    %43 = arith.truncf %42 : vector<4x64x32xf32> to vector<4x64x32xbf16>
    %44 = vector.extract_strided_slice %40 {offsets = [0, 64], sizes = [256, 32], strides = [1, 1]} : vector<256x192xf32> to vector<256x32xf32>
    %45 = vector.shape_cast %44 : vector<256x32xf32> to vector<4x64x32xf32>
    %46 = arith.truncf %45 : vector<4x64x32xf32> to vector<4x64x32xbf16>
    %47 = vector.extract_strided_slice %40 {offsets = [0, 128], sizes = [256, 32], strides = [1, 1]} : vector<256x192xf32> to vector<256x32xf32>
    %48 = vector.shape_cast %47 : vector<256x32xf32> to vector<4x64x32xf32>
    %49 = arith.truncf %48 : vector<4x64x32xf32> to vector<4x64x32xbf16>
    "tpu.trace_start"() <{level = 10 : i32, message = "bqd,bkd->bqk"}> : () -> ()
    %cst_22 = arith.constant dense<0.000000e+00> : vector<4x64x64xf32>
    %50 = tpu.matmul %43, %46, %cst_22 {dimension_numbers = #tpu.dot_dimension_numbers<[2], [2], [1], [1], [0, 0, 0, 1, 1, 1], [0], [0]>} : vector<4x64x32xbf16>, vector<4x64x32xbf16>, vector<4x64x64xf32> -> vector<4x64x64xf32>
    "tpu.trace_stop"() : () -> ()
    %cst_23 = arith.constant dense<0xFF800000> : vector<4x64xf32>
    %51 = vector.multi_reduction <maximumf>, %50, %cst_23 [2] : vector<4x64x64xf32> to vector<4x64xf32>
    %52 = vector.shape_cast %51 : vector<4x64xf32> to vector<4x64x1xf32>
    %53 = vector.broadcast %52 : vector<4x64x1xf32> to vector<4x64x64xf32>
    %54 = arith.subf %50, %53 : vector<4x64x64xf32>
    %55 = math.exp %54 : vector<4x64x64xf32>
    %cst_24 = arith.constant dense<0.000000e+00> : vector<4x64xf32>
    %56 = vector.multi_reduction <add>, %55, %cst_24 [2] : vector<4x64x64xf32> to vector<4x64xf32>
    %57 = vector.shape_cast %56 : vector<4x64xf32> to vector<4x64x1xf32>
    %58 = tpu.reciprocal %57 {approx = true} : vector<4x64x1xf32> -> vector<4x64x1xf32>
    %59 = vector.broadcast %58 : vector<4x64x1xf32> to vector<4x64x64xf32>
    %60 = arith.mulf %55, %59 : vector<4x64x64xf32>
    %61 = arith.truncf %60 : vector<4x64x64xf32> to vector<4x64x64xbf16>
    "tpu.trace_start"() <{level = 10 : i32, message = "bqk,bkd->bqd"}> : () -> ()
    %cst_25 = arith.constant dense<0.000000e+00> : vector<4x64x32xf32>
    %62 = tpu.matmul %61, %49, %cst_25 {dimension_numbers = #tpu.dot_dimension_numbers<[2], [1], [1], [2], [0, 0, 0, 1, 1, 2], [0], [0]>} : vector<4x64x64xbf16>, vector<4x64x32xbf16>, vector<4x64x32xf32> -> vector<4x64x32xf32>
    "tpu.trace_stop"() : () -> ()
    %63 = vector.extract_strided_slice %40 {offsets = [0, 32], sizes = [256, 32], strides = [1, 1]} : vector<256x192xf32> to vector<256x32xf32>
    %64 = vector.shape_cast %63 : vector<256x32xf32> to vector<4x64x32xf32>
    %65 = arith.truncf %64 : vector<4x64x32xf32> to vector<4x64x32xbf16>
    %66 = vector.extract_strided_slice %40 {offsets = [0, 96], sizes = [256, 32], strides = [1, 1]} : vector<256x192xf32> to vector<256x32xf32>
    %67 = vector.shape_cast %66 : vector<256x32xf32> to vector<4x64x32xf32>
    %68 = arith.truncf %67 : vector<4x64x32xf32> to vector<4x64x32xbf16>
    %69 = vector.extract_strided_slice %40 {offsets = [0, 160], sizes = [256, 32], strides = [1, 1]} : vector<256x192xf32> to vector<256x32xf32>
    %70 = vector.shape_cast %69 : vector<256x32xf32> to vector<4x64x32xf32>
    %71 = arith.truncf %70 : vector<4x64x32xf32> to vector<4x64x32xbf16>
    "tpu.trace_start"() <{level = 10 : i32, message = "bqd,bkd->bqk"}> : () -> ()
    %cst_26 = arith.constant dense<0.000000e+00> : vector<4x64x64xf32>
    %72 = tpu.matmul %65, %68, %cst_26 {dimension_numbers = #tpu.dot_dimension_numbers<[2], [2], [1], [1], [0, 0, 0, 1, 1, 1], [0], [0]>} : vector<4x64x32xbf16>, vector<4x64x32xbf16>, vector<4x64x64xf32> -> vector<4x64x64xf32>
    "tpu.trace_stop"() : () -> ()
    %cst_27 = arith.constant dense<0xFF800000> : vector<4x64xf32>
    %73 = vector.multi_reduction <maximumf>, %72, %cst_27 [2] : vector<4x64x64xf32> to vector<4x64xf32>
    %74 = vector.shape_cast %73 : vector<4x64xf32> to vector<4x64x1xf32>
    %75 = vector.broadcast %74 : vector<4x64x1xf32> to vector<4x64x64xf32>
    %76 = arith.subf %72, %75 : vector<4x64x64xf32>
    %77 = math.exp %76 : vector<4x64x64xf32>
    %cst_28 = arith.constant dense<0.000000e+00> : vector<4x64xf32>
    %78 = vector.multi_reduction <add>, %77, %cst_28 [2] : vector<4x64x64xf32> to vector<4x64xf32>
    %79 = vector.shape_cast %78 : vector<4x64xf32> to vector<4x64x1xf32>
    %80 = tpu.reciprocal %79 {approx = true} : vector<4x64x1xf32> -> vector<4x64x1xf32>
    %81 = vector.broadcast %80 : vector<4x64x1xf32> to vector<4x64x64xf32>
    %82 = arith.mulf %77, %81 : vector<4x64x64xf32>
    %83 = arith.truncf %82 : vector<4x64x64xf32> to vector<4x64x64xbf16>
    "tpu.trace_start"() <{level = 10 : i32, message = "bqk,bkd->bqd"}> : () -> ()
    %cst_29 = arith.constant dense<0.000000e+00> : vector<4x64x32xf32>
    %84 = tpu.matmul %83, %71, %cst_29 {dimension_numbers = #tpu.dot_dimension_numbers<[2], [1], [1], [2], [0, 0, 0, 1, 1, 2], [0], [0]>} : vector<4x64x64xbf16>, vector<4x64x32xbf16>, vector<4x64x32xf32> -> vector<4x64x32xf32>
    "tpu.trace_stop"() : () -> ()
    %85 = tpu.concatenate %62, %84 in 2 : vector<4x64x32xf32>, vector<4x64x32xf32> -> vector<4x64x64xf32>
    %86 = vector.shape_cast %85 : vector<4x64x64xf32> to vector<256x64xf32>
    %87 = arith.truncf %86 : vector<256x64xf32> to vector<256x64xbf16>
    %cst_30 = arith.constant dense<0.000000e+00> : vector<256x64xf32>
    %88 = tpu.matmul %87, %9, %cst_30 {dimension_numbers = #tpu.dot_dimension_numbers<[1], [0], [0], [1], [0, 0, 1, 1], [], []>} : vector<256x64xbf16>, vector<64x64xbf16>, vector<256x64xf32> -> vector<256x64xf32>
    %89 = vector.broadcast %10 : vector<1x64xf32> to vector<256x64xf32>
    %90 = arith.addf %88, %89 : vector<256x64xf32>
    %91 = vector.broadcast %11 : vector<1x64xf32> to vector<256x64xf32>
    %92 = arith.mulf %90, %91 : vector<256x64xf32>
    %93 = vector.shape_cast %92 : vector<256x64xf32> to vector<4x64x64xf32>
    %94 = vector.shape_cast %93 : vector<4x64x64xf32> to vector<2x2x8x8x64xf32>
    %95 = tpu.transpose %94, [0, 2, 1, 3, 4] : vector<2x2x8x8x64xf32> -> vector<2x8x2x8x64xf32>
    %96 = vector.shape_cast %95 : vector<2x8x2x8x64xf32> to vector<16x16x64xf32>
    %97 = arith.addf %1, %96 : vector<16x16x64xf32>
    %c0_31 = arith.constant 0 : index
    %c0_32 = arith.constant 0 : index
    %c0_33 = arith.constant 0 : index
    %c0_34 = arith.constant 0 : index
    %98 = vector.load %arg10[%c0_31, %c0_32, %c0_33, %c0_34] : memref<1x16x16x64xf32, #tpu.memory_space<vmem>>, vector<1x16x16x64xf32>
    %99 = vector.shape_cast %98 : vector<1x16x16x64xf32> to vector<16x16x64xf32>
    %100 = vector.shape_cast %97 : vector<16x16x64xf32> to vector<1x16x16x64xf32>
    tpu.vector_store %arg10[%c0_31, %c0_32, %c0_33, %c0_34], %100 {strides = array<i32>} : memref<1x16x16x64xf32, #tpu.memory_space<vmem>>, vector<1x16x16x64xf32>,
    return
  }
  func.func @transform_0(%arg0: i32, %arg1: i32) -> (i32, i32, i32, i32) {
    %c0_i32 = arith.constant 0 : i32
    %c0_i32_0 = arith.constant 0 : i32
    %c0_i32_1 = arith.constant 0 : i32
    return %arg0, %arg1, %c0_i32, %c0_i32_0 : i32, i32, i32, i32
  }
  func.func @transform_1(%arg0: i32, %arg1: i32) -> (i32, i32) {
    %c0_i32 = arith.constant 0 : i32
    %c0_i32_0 = arith.constant 0 : i32
    %c0_i32_1 = arith.constant 0 : i32
    return %c0_i32, %c0_i32_0 : i32, i32
  }
  func.func @transform_2(%arg0: i32, %arg1: i32) -> (i32, i32) {
    %c0_i32 = arith.constant 0 : i32
    %c0_i32_0 = arith.constant 0 : i32
    %c0_i32_1 = arith.constant 0 : i32
    return %c0_i32, %c0_i32_0 : i32, i32
  }
  func.func @transform_3(%arg0: i32, %arg1: i32) -> (i32, i32) {
    %c0_i32 = arith.constant 0 : i32
    %c0_i32_0 = arith.constant 0 : i32
    %c0_i32_1 = arith.constant 0 : i32
    return %c0_i32, %c0_i32_0 : i32, i32
  }
  func.func @transform_4(%arg0: i32, %arg1: i32) -> (i32, i32) {
    %c0_i32 = arith.constant 0 : i32
    %c0_i32_0 = arith.constant 0 : i32
    %c0_i32_1 = arith.constant 0 : i32
    return %c0_i32, %c0_i32_0 : i32, i32
  }
  func.func @transform_5(%arg0: i32, %arg1: i32) -> (i32, i32) {
    %c0_i32 = arith.constant 0 : i32
    %c0_i32_0 = arith.constant 0 : i32
    %c0_i32_1 = arith.constant 0 : i32
    return %c0_i32, %c0_i32_0 : i32, i32
  }
  func.func @transform_6(%arg0: i32, %arg1: i32) -> (i32, i32) {
    %c0_i32 = arith.constant 0 : i32
    %c0_i32_0 = arith.constant 0 : i32
    %c0_i32_1 = arith.constant 0 : i32
    return %c0_i32, %c0_i32_0 : i32, i32
  }
  func.func @transform_7(%arg0: i32, %arg1: i32) -> (i32, i32) {
    %c0_i32 = arith.constant 0 : i32
    %c0_i32_0 = arith.constant 0 : i32
    %c0_i32_1 = arith.constant 0 : i32
    return %c0_i32, %c0_i32_0 : i32, i32
  }
  func.func @transform_8(%arg0: i32, %arg1: i32) -> (i32, i32, i32, i32) {
    %c0_i32 = arith.constant 0 : i32
    %c0_i32_0 = arith.constant 0 : i32
    %c0_i32_1 = arith.constant 0 : i32
    return %arg0, %arg1, %c0_i32, %c0_i32_0 : i32, i32, i32, i32
  }
}

</mosaic_0001>

<llo_original>
// kernel: tpu_custom_call.1
$region0: #{tpu_custom_call.1}
  #allocation0 [shape = 'u32[]', space=smem, size = 0x4, offset = 0x4, fixed_abs, tag = 'smem constant byte address 0x4 - core index']
  #allocation1 [shape = 'u32[144,128]{1,0:T(1,128)}', space=vmem, size = 0x12000, scoped, tag = 'internal scratch']
  %s0 = inlined_call_operand.hbm [shape: f32[2,16,16,64], index: 0, kind: input, shape index: {}]
  %s1 = inlined_call_operand.vmem [shape: f32[1,64], index: 1, kind: input, shape index: {}]
  %s2 = inlined_call_operand.vmem [shape: f32[1,64], index: 2, kind: input, shape index: {}]
  %s3 = inlined_call_operand.hbm [shape: bf16[64,192], index: 3, kind: input, shape index: {}]
  %s4 = inlined_call_operand.vmem [shape: f32[1,192], index: 4, kind: input, shape index: {}]
  %s5 = inlined_call_operand.hbm [shape: bf16[64,64], index: 5, kind: input, shape index: {}]
  %s6 = inlined_call_operand.vmem [shape: f32[1,64], index: 6, kind: input, shape index: {}]
  %s7 = inlined_call_operand.vmem [shape: f32[1,64], index: 7, kind: input, shape index: {}]
  %s8 = inlined_call_operand.hbm [shape: f32[2,16,16,64], index: 8, kind: output, shape index: {}]
  %s9 = sld [smem:[#allocation0]]
  $region77: #{tpu_custom_call.1} parent=0
    _
  %s11 = ssub.s32 1, %s9
  %s12 = scalar_select 0, %s11, %s9
  $region1: #{tpu_custom_call.1} parent=0
    #allocation2 [shape = 'u8[262144]{0}', space=vmem, size = 0x40000, scoped, tag = 'input window, operand 0']
    #allocation3 [shape = 's32[2]{0}', space=sflag, size = 0x8, scoped, tag = 'scoped memory for tpu_custom_call.1']
    #allocation4 [shape = 's32[2]{0}', space=sflag, size = 0x8, scoped, tag = 'scoped memory for tpu_custom_call.1']
    #allocation5 [shape = 'u8[32768]{0}', space=vmem, size = 0x8000, scoped, tag = 'input window, operand 3, single buffered']
    #allocation6 [shape = 's32[1]{0}', space=sflag, size = 0x4, scoped, tag = 'scoped memory for tpu_custom_call.1']
    #allocation7 [shape = 'u8[16384]{0}', space=vmem, size = 0x4000, scoped, tag = 'input window, operand 5, single buffered']
    #allocation8 [shape = 'u8[262144]{0}', space=vmem, size = 0x40000, scoped, tag = 'output window, operand 0']
    %13 = vsyncpa [#allocation3], 0
    %s14 = scalar_lea.sflag [#allocation3], 1
    %15 = vsyncpa %s14, 0
    %16 = vsyncpa [#allocation6], 0
    %17 = vsyncpa [#allocation4], 0
    %s18 = scalar_lea.sflag [#allocation4], 1
    %19 = vsyncpa %s18, 0
    loop: start=0, step=1, limit=4
    $region2: #{tpu_custom_call.1} parent=1 // loop_pre_header
      _
    $region3: #{tpu_custom_call.1} parent=1 // loop_header
      %s21 = sphi 0, %s25
      %p22 = scmp.ge.s32.totalorder %s21, 4
      %s28 = sphi 0, %s40
      %s29 = sphi 0, %s36
      %s30 = sphi 0, %s28
      %s31 = sphi 0, %s29
      %s32 = sphi 0, %s30
      %s33 = sphi 0, %s31
      %s45 = sphi 0, %s47
      %s48 = sphi 0, %s45
      %s49 = sphi 0, %s48
      %s65 = sphi 0, %s49
      %s69 = sphi 0, %s69
      %s71 = sphi 0, %s69
      %s72 = sphi 0, %s71
      %s86 = sphi 0, %s72
      %s90 = sphi 0, %s90
      %s92 = sphi 0, %s90
      %s93 = sphi 0, %s92
      %s107 = sphi 0, %s93
      %s111 = sphi 0, %s111
      %s113 = sphi 0, %s111
      %s114 = sphi 0, %s113
      %s128 = sphi 0, %s114
      %s132 = sphi 0, %s132
      %s134 = sphi 0, %s132
      %s135 = sphi 0, %s134
      %s149 = sphi 0, %s135
      %s153 = sphi 0, %s153
      %s155 = sphi 0, %s153
      %s156 = sphi 0, %s155
      %s170 = sphi 0, %s156
      %s174 = sphi 0, %s174
      %s176 = sphi 0, %s174
      %s177 = sphi 0, %s176
      %s191 = sphi 0, %s177
      %s195 = sphi 0, %s195
      %s197 = sphi 0, %s195
      %s198 = sphi 0, %s197
      %s212 = sphi 0, %s198
      %s220 = sphi 0, %s222
      %s223 = sphi 0, %s220
      %s224 = sphi 0, %s223
      %s240 = sphi 0, %s224
    $region4: #{tpu_custom_call.1} parent=1 // loop_header_branch
      %24 = sbr.rel (%p22) target = $region8
    $region5: #{tpu_custom_call.1} parent=1 // loop_body
      %s26 = ssub.s32 %s21, 1
      %s27 = ssub.s32 %s21, 2
      %s34 = sadd.s32 1, %s29
      %p35 = scmp.ge.s32.totalorder %s34, 1
      %s36 = scalar_select %p35, 0, %s34
      %s37 = sadd.s32 1, %s28
      %s38 = scalar_select %p35, %s37, %s28
      %p39 = scmp.ge.s32.totalorder %s38, 2
      %s40 = scalar_select %p39, 0, %s38
      %s41 = ssub.s32 %s28, %s40
      %s42 = ssub.s32 %s29, %s36
      %s43 = sor.u32 %s41, %s42
      %p44 = scmp.eq.s32.totalorder %s43, 0
      %s46 = sadd.s32 %s45, 1
      %s47 = scalar_select %p44, %s45, %s46
      %p50 = pneg %p44
      %p51 = scmp.eq.s32.totalorder %s21, 1
      %p52 = por %p50, %p51
      %p53 = scmp.ne.s32.totalorder %s45, %s48
      %p54 = scmp.eq.s32.totalorder %s21, 0
      %p55 = por %p53, %p54
      %p56 = scmp.ne.s32.totalorder %s45, %s48
      %p57 = scmp.eq.s32.totalorder %s26, 1
      %p58 = por %p56, %p57
      %p59 = scmp.ne.s32.totalorder %s48, %s49
      %p60 = scmp.eq.s32.totalorder %s26, 0
      %p61 = por %p59, %p60
      %p62 = scmp.ne.s32.totalorder %s48, %s49
      %p63 = scmp.eq.s32.totalorder %s27, 1
      %p64 = por %p62, %p63
      %p66 = scmp.ne.s32.totalorder %s49, %s65
      %p67 = scmp.eq.s32.totalorder %s27, 0
      %p68 = por %p66, %p67
      %s70 = sadd.s32 %s69, 1
      %p73 = scmp.eq.s32.totalorder %s21, 1
      %p74 = scmp.ne.s32.totalorder %s69, %s71
      %p75 = scmp.eq.s32.totalorder %s21, 0
      %p76 = por %p74, %p75
      %p77 = scmp.ne.s32.totalorder %s69, %s71
      %p78 = scmp.eq.s32.totalorder %s26, 1
      %p79 = por %p77, %p78
      %p80 = scmp.ne.s32.totalorder %s71, %s72
      %p81 = scmp.eq.s32.totalorder %s26, 0
      %p82 = por %p80, %p81
      %p83 = scmp.ne.s32.totalorder %s71, %s72
      %p84 = scmp.eq.s32.totalorder %s27, 1
      %p85 = por %p83, %p84
      %p87 = scmp.ne.s32.totalorder %s72, %s86
      %p88 = scmp.eq.s32.totalorder %s27, 0
      %p89 = por %p87, %p88
      %s91 = sadd.s32 %s90, 1
      %p94 = scmp.eq.s32.totalorder %s21, 1
      %p95 = scmp.ne.s32.totalorder %s90, %s92
      %p96 = scmp.eq.s32.totalorder %s21, 0
      %p97 = por %p95, %p96
      %p98 = scmp.ne.s32.totalorder %s90, %s92
      %p99 = scmp.eq.s32.totalorder %s26, 1
      %p100 = por %p98, %p99
      %p101 = scmp.ne.s32.totalorder %s92, %s93
      %p102 = scmp.eq.s32.totalorder %s26, 0
      %p103 = por %p101, %p102
      %p104 = scmp.ne.s32.totalorder %s92, %s93
      %p105 = scmp.eq.s32.totalorder %s27, 1
      %p106 = por %p104, %p105
      %p108 = scmp.ne.s32.totalorder %s93, %s107
      %p109 = scmp.eq.s32.totalorder %s27, 0
      %p110 = por %p108, %p109
      %s112 = sadd.s32 %s111, 1
      %p115 = scmp.eq.s32.totalorder %s21, 1
      %p116 = scmp.ne.s32.totalorder %s111, %s113
      %p117 = scmp.eq.s32.totalorder %s21, 0
      %p118 = por %p116, %p117
      %p119 = scmp.ne.s32.totalorder %s111, %s113
      %p120 = scmp.eq.s32.totalorder %s26, 1
      %p121 = por %p119, %p120
      %p122 = scmp.ne.s32.totalorder %s113, %s114
      %p123 = scmp.eq.s32.totalorder %s26, 0
      %p124 = por %p122, %p123
      %p125 = scmp.ne.s32.totalorder %s113, %s114
      %p126 = scmp.eq.s32.totalorder %s27, 1
      %p127 = por %p125, %p126
      %p129 = scmp.ne.s32.totalorder %s114, %s128
      %p130 = scmp.eq.s32.totalorder %s27, 0
      %p131 = por %p129, %p130
      %s133 = sadd.s32 %s132, 1
      %p136 = scmp.eq.s32.totalorder %s21, 1
      %p137 = scmp.ne.s32.totalorder %s132, %s134
      %p138 = scmp.eq.s32.totalorder %s21, 0
      %p139 = por %p137, %p138
      %p140 = scmp.ne.s32.totalorder %s132, %s134
      %p141 = scmp.eq.s32.totalorder %s26, 1
      %p142 = por %p140, %p141
      %p143 = scmp.ne.s32.totalorder %s134, %s135
      %p144 = scmp.eq.s32.totalorder %s26, 0
      %p145 = por %p143, %p144
      %p146 = scmp.ne.s32.totalorder %s134, %s135
      %p147 = scmp.eq.s32.totalorder %s27, 1
      %p148 = por %p146, %p147
      %p150 = scmp.ne.s32.totalorder %s135, %s149
      %p151 = scmp.eq.s32.totalorder %s27, 0
      %p152 = por %p150, %p151
      %s154 = sadd.s32 %s153, 1
      %p157 = scmp.eq.s32.totalorder %s21, 1
      %p158 = scmp.ne.s32.totalorder %s153, %s155
      %p159 = scmp.eq.s32.totalorder %s21, 0
      %p160 = por %p158, %p159
      %p161 = scmp.ne.s32.totalorder %s153, %s155
      %p162 = scmp.eq.s32.totalorder %s26, 1
      %p163 = por %p161, %p162
      %p164 = scmp.ne.s32.totalorder %s155, %s156
      %p165 = scmp.eq.s32.totalorder %s26, 0
      %p166 = por %p164, %p165
      %p167 = scmp.ne.s32.totalorder %s155, %s156
      %p168 = scmp.eq.s32.totalorder %s27, 1
      %p169 = por %p167, %p168
      %p171 = scmp.ne.s32.totalorder %s156, %s170
      %p172 = scmp.eq.s32.totalorder %s27, 0
      %p173 = por %p171, %p172
      %s175 = sadd.s32 %s174, 1
      %p178 = scmp.eq.s32.totalorder %s21, 1
      %p179 = scmp.ne.s32.totalorder %s174, %s176
      %p180 = scmp.eq.s32.totalorder %s21, 0
      %p181 = por %p179, %p180
      %p182 = scmp.ne.s32.totalorder %s174, %s176
      %p183 = scmp.eq.s32.totalorder %s26, 1
      %p184 = por %p182, %p183
      %p185 = scmp.ne.s32.totalorder %s176, %s177
      %p186 = scmp.eq.s32.totalorder %s26, 0
      %p187 = por %p185, %p186
      %p188 = scmp.ne.s32.totalorder %s176, %s177
      %p189 = scmp.eq.s32.totalorder %s27, 1
      %p190 = por %p188, %p189
      %p192 = scmp.ne.s32.totalorder %s177, %s191
      %p193 = scmp.eq.s32.totalorder %s27, 0
      %p194 = por %p192, %p193
      %s196 = sadd.s32 %s195, 1
      %p199 = scmp.eq.s32.totalorder %s21, 1
      %p200 = scmp.ne.s32.totalorder %s195, %s197
      %p201 = scmp.eq.s32.totalorder %s21, 0
      %p202 = por %p200, %p201
      %p203 = scmp.ne.s32.totalorder %s195, %s197
      %p204 = scmp.eq.s32.totalorder %s26, 1
      %p205 = por %p203, %p204
      %p206 = scmp.ne.s32.totalorder %s197, %s198
      %p207 = scmp.eq.s32.totalorder %s26, 0
      %p208 = por %p206, %p207
      %p209 = scmp.ne.s32.totalorder %s197, %s198
      %p210 = scmp.eq.s32.totalorder %s27, 1
      %p211 = por %p209, %p210
      %p213 = scmp.ne.s32.totalorder %s198, %s212
      %p214 = scmp.eq.s32.totalorder %s27, 0
      %p215 = por %p213, %p214
      %s216 = ssub.s32 %s28, %s40
      %s217 = ssub.s32 %s29, %s36
      %s218 = sor.u32 %s216, %s217
      %p219 = scmp.eq.s32.totalorder %s218, 0
      %s221 = sadd.s32 %s220, 1
      %s222 = scalar_select %p219, %s220, %s221
      %p225 = pneg %p219
      %p226 = scmp.eq.s32.totalorder %s21, 1
      %p227 = por %p225, %p226
      %p228 = scmp.ne.s32.totalorder %s220, %s223
      %p229 = scmp.eq.s32.totalorder %s21, 0
      %p230 = por %p228, %p229
      %p231 = scmp.ne.s32.totalorder %s220, %s223
      %p232 = scmp.eq.s32.totalorder %s26, 1
      %p233 = por %p231, %p232
      %p234 = scmp.ne.s32.totalorder %s223, %s224
      %p235 = scmp.eq.s32.totalorder %s26, 0
      %p236 = por %p234, %p235
      %p237 = scmp.ne.s32.totalorder %s223, %s224
      %p238 = scmp.eq.s32.totalorder %s27, 1
      %p239 = por %p237, %p238
      %p241 = scmp.ne.s32.totalorder %s224, %s240
      %p242 = scmp.eq.s32.totalorder %s27, 0
      %p243 = por %p241, %p242
      %p244 = scmp.le.s32.totalorder 1, %s21
      %p245 = scmp.lt.s32.totalorder %s21, 3
      %p246 = pnand %p244, %p245
      %p247 = pneg %p246
      // Predicated region
      $region9: #{tpu_custom_call.1} parent=5 // pred_check
        _
      $region10: #{tpu_custom_call.1} parent=5 // pred_check_branch
        %249 = sbr.rel (%p246) target = $region12
      $region11: #{tpu_custom_call.1} parent=5 // pred_region
        %s250 = ssub.s32 %s21, 1
        // Predicated region
        $region13: #{tpu_custom_call.1} parent=11 // pred_check
          %p251 = pneg %p82
        $region14: #{tpu_custom_call.1} parent=11 // pred_check_branch
          %253 = sbr.rel (%p251) target = $region16
        $region15: #{tpu_custom_call.1} parent=11 // pred_region
          _
        $region16: #{tpu_custom_call.1} parent=11 // pred_fallthru
          _
        // Predicated region
        $region17: #{tpu_custom_call.1} parent=11 // pred_check
          %p254 = pneg %p103
        $region18: #{tpu_custom_call.1} parent=11 // pred_check_branch
          %256 = sbr.rel (%p254) target = $region20
        $region19: #{tpu_custom_call.1} parent=11 // pred_region
          _
        $region20: #{tpu_custom_call.1} parent=11 // pred_fallthru
          _
        // Predicated region
        $region21: #{tpu_custom_call.1} parent=11 // pred_check
          %p257 = pneg %p124
        $region22: #{tpu_custom_call.1} parent=11 // pred_check_branch
          %259 = sbr.rel (%p257) target = $region24
        $region23: #{tpu_custom_call.1} parent=11 // pred_region
          %s261 = ssub.s32 1024, 1024
          %262 = vsyncadd [#allocation6], %s261
          %s263 = sshll.u32 [#allocation5], 4
          %s264 = int_to_ptr.vmem [resolvable:$true] %s263
          %269 = dma.hbm_to_vmem [thread:$0]  %s3, 1024, %s264, [#allocation6], 128, 128, 8
        $region24: #{tpu_custom_call.1} parent=11 // pred_fallthru
          _
        // Predicated region
        $region25: #{tpu_custom_call.1} parent=11 // pred_check
          %p270 = pneg %p145
        $region26: #{tpu_custom_call.1} parent=11 // pred_check_branch
          %272 = sbr.rel (%p270) target = $region28
        $region27: #{tpu_custom_call.1} parent=11 // pred_region
          _
        $region28: #{tpu_custom_call.1} parent=11 // pred_fallthru
          _
        // Predicated region
        $region29: #{tpu_custom_call.1} parent=11 // pred_check
          %p273 = pneg %p166
        $region30: #{tpu_custom_call.1} parent=11 // pred_check_branch
          %275 = sbr.rel (%p273) target = $region32
        $region31: #{tpu_custom_call.1} parent=11 // pred_region
          %s277 = ssub.s32 512, 512
          %278 = vsyncadd [#allocation6], %s277
          %s279 = sshll.u32 [#allocation7], 4
          %s280 = int_to_ptr.vmem [resolvable:$true] %s279
          %285 = dma.hbm_to_vmem [thread:$0]  %s5, 512, %s280, [#allocation6], 64, 64, 4
        $region32: #{tpu_custom_call.1} parent=11 // pred_fallthru
          _
        // Predicated region
        $region33: #{tpu_custom_call.1} parent=11 // pred_check
          %p286 = pneg %p187
        $region34: #{tpu_custom_call.1} parent=11 // pred_check_branch
          %288 = sbr.rel (%p286) target = $region36
        $region35: #{tpu_custom_call.1} parent=11 // pred_region
          _
        $region36: #{tpu_custom_call.1} parent=11 // pred_fallthru
          _
        // Predicated region
        $region37: #{tpu_custom_call.1} parent=11 // pred_check
          %p289 = pneg %p208
        $region38: #{tpu_custom_call.1} parent=11 // pred_check_branch
          %291 = sbr.rel (%p289) target = $region40
        $region39: #{tpu_custom_call.1} parent=11 // pred_region
          _
        $region40: #{tpu_custom_call.1} parent=11 // pred_fallthru
          _
      $region12: #{tpu_custom_call.1} parent=5 // pred_fallthru
        _
      %p292 = scmp.lt.s32.totalorder %s21, 2
      // Predicated region
      $region41: #{tpu_custom_call.1} parent=5 // pred_check
        %p293 = pneg %p292
      $region42: #{tpu_custom_call.1} parent=5 // pred_check_branch
        %295 = sbr.rel (%p293) target = $region44
      $region43: #{tpu_custom_call.1} parent=5 // pred_region
        // Predicated region
        $region45: #{tpu_custom_call.1} parent=43 // pred_check
          %p296 = pneg %p55
        $region46: #{tpu_custom_call.1} parent=43 // pred_check_branch
          %298 = sbr.rel (%p296) target = $region48
        $region47: #{tpu_custom_call.1} parent=43 // pred_region
          %s299 = sand.u32 %s45, 1
          %s300 = scalar_lea.sflag [#allocation3], %s299
          %s301 = sand.u32 %s45, 1
          %s302 = smul.addr %s301, 256
          %s303 = scalar_lea.vmem [#allocation2], %s302
          %s304 = smul.u32 16, %s29
          %s306 = ssub.s32 4096, 4096
          %307 = vsyncadd %s300, %s306
          %s308 = smul.addr %s304, 2
          %s309 = smul.addr %s28, 32
          %s310 = sadd.s32 %s308, %s309
          %s311 = smul.addr %s310, 128
          %s312 = scalar_lea.hbm %s0, %s311
          %s313 = sshll.u32 %s303, 4
          %s314 = int_to_ptr.vmem [resolvable:$true] %s313
          %319 = dma.hbm_to_vmem [thread:$0]  %s312, 4096, %s314, %s300, 128, 128, 8
        $region48: #{tpu_custom_call.1} parent=43 // pred_fallthru
          _
      $region44: #{tpu_custom_call.1} parent=5 // pred_fallthru
        _
      %p320 = scmp.le.s32.totalorder 1, %s21
      %p321 = scmp.lt.s32.totalorder %s21, 3
      %p322 = pnand %p320, %p321
      %p323 = pneg %p322
      // Predicated region
      $region49: #{tpu_custom_call.1} parent=5 // pred_check
        _
      $region50: #{tpu_custom_call.1} parent=5 // pred_check_branch
        %325 = sbr.rel (%p322) target = $region52
      $region51: #{tpu_custom_call.1} parent=5 // pred_region
        %s326 = ssub.s32 %s21, 1
        %s327 = sand.u32 %s48, 1
        %s328 = scalar_lea.sflag [#allocation3], %s327
        %s329 = sand.u32 %s48, 1
        %s330 = smul.addr %s329, 256
        %s331 = scalar_lea.vmem [#allocation2], %s330
        // Predicated region
        $region53: #{tpu_custom_call.1} parent=51 // pred_check
          %p332 = pneg %p61
        $region54: #{tpu_custom_call.1} parent=51 // pred_check_branch
          %334 = sbr.rel (%p332) target = $region56
        $region55: #{tpu_custom_call.1} parent=51 // pred_region
          %335 = dma.done %s328, 4096
        $region56: #{tpu_custom_call.1} parent=51 // pred_fallthru
          _
        // Predicated region
        $region57: #{tpu_custom_call.1} parent=51 // pred_check
          %p336 = pneg %p124
        $region58: #{tpu_custom_call.1} parent=51 // pred_check_branch
          %338 = sbr.rel (%p336) target = $region60
        $region59: #{tpu_custom_call.1} parent=51 // pred_region
          %339 = dma.done [#allocation6], 1024
        $region60: #{tpu_custom_call.1} parent=51 // pred_fallthru
          _
        // Predicated region
        $region61: #{tpu_custom_call.1} parent=51 // pred_check
          %p340 = pneg %p166
        $region62: #{tpu_custom_call.1} parent=51 // pred_check_branch
          %342 = sbr.rel (%p340) target = $region64
        $region63: #{tpu_custom_call.1} parent=51 // pred_region
          %343 = dma.done [#allocation6], 512
        $region64: #{tpu_custom_call.1} parent=51 // pred_fallthru
          _
        %s344 = sand.u32 %s48, 1
        %s345 = scalar_lea.sflag [#allocation3], %s344
        %s346 = sand.u32 %s48, 1
        %s347 = smul.addr %s346, 256
        %s348 = scalar_lea.vmem [#allocation2], %s347
        %p349 = pneg %p61
        %p350 = pneg %p58
        %p351 = pneg %p82
        %p352 = pneg %p79
        %p353 = pneg %p103
        %p354 = pneg %p100
        %p355 = pneg %p124
        %p356 = pneg %p121
        %p357 = pneg %p145
        %p358 = pneg %p142
        %p359 = pneg %p166
        %p360 = pneg %p163
        %p361 = pneg %p187
        %p362 = pneg %p184
        %p363 = pneg %p208
        %p364 = pneg %p205
        %p365 = pneg %p236
        %p366 = pneg %p233
        %s367 = sand.u32 %s223, 1
        %s368 = scalar_lea.sflag [#allocation4], %s367
        %s369 = sand.u32 %s223, 1
        %s370 = smul.addr %s369, 256
        %s371 = scalar_lea.vmem [#allocation8], %s370
        %s372 = smul.u32 16, %s31
        %s373 = smul.u32 16, %s31
        %v375 = vld [vmem:[%s331] sm:$0xff]
        %v376 = vld [vmem:[%s331 + $0x8] sm:$0xff]
        %v377 = vld [vmem:[%s331 + $0x10] sm:$0xff]
        %v378 = vld [vmem:[%s331 + $0x18] sm:$0xff]
        %v379 = vld [vmem:[%s331 + $0x20] sm:$0xff]
        %v380 = vld [vmem:[%s331 + $0x28] sm:$0xff]
        %v381 = vld [vmem:[%s331 + $0x30] sm:$0xff]
        %v382 = vld [vmem:[%s331 + $0x38] sm:$0xff]
        %v383 = vld [vmem:[%s331 + $0x40] sm:$0xff]
        %v384 = vld [vmem:[%s331 + $0x48] sm:$0xff]
        %v385 = vld [vmem:[%s331 + $0x50] sm:$0xff]
        %v386 = vld [vmem:[%s331 + $0x58] sm:$0xff]
        %v387 = vld [vmem:[%s331 + $0x60] sm:$0xff]
        %v388 = vld [vmem:[%s331 + $0x68] sm:$0xff]
        %v389 = vld [vmem:[%s331 + $0x70] sm:$0xff]
        %v390 = vld [vmem:[%s331 + $0x78] sm:$0xff]
        %v391 = vld [vmem:[%s331 + $0x80] sm:$0xff]
        %v392 = vld [vmem:[%s331 + $0x88] sm:$0xff]
        %v393 = vld [vmem:[%s331 + $0x90] sm:$0xff]
        %v394 = vld [vmem:[%s331 + $0x98] sm:$0xff]
        %v395 = vld [vmem:[%s331 + $0xa0] sm:$0xff]
        %v396 = vld [vmem:[%s331 + $0xa8] sm:$0xff]
        %v397 = vld [vmem:[%s331 + $0xb0] sm:$0xff]
        %v398 = vld [vmem:[%s331 + $0xb8] sm:$0xff]
        %v399 = vld [vmem:[%s331 + $0xc0] sm:$0xff]
        %v400 = vld [vmem:[%s331 + $0xc8] sm:$0xff]
        %v401 = vld [vmem:[%s331 + $0xd0] sm:$0xff]
        %v402 = vld [vmem:[%s331 + $0xd8] sm:$0xff]
        %v403 = vld [vmem:[%s331 + $0xe0] sm:$0xff]
        %v404 = vld [vmem:[%s331 + $0xe8] sm:$0xff]
        %v405 = vld [vmem:[%s331 + $0xf0] sm:$0xff]
        %v406 = vld [vmem:[%s331 + $0xf8] sm:$0xff]
        %v407 = vld [vmem:[%s1] sm:$0x1]
        %v408 = vld [vmem:[%s2] sm:$0x1]
        %v409 = vld [vmem:[#allocation5] sm:$0xff]
        %v410 = vld [vmem:[#allocation5 + $0x8] sm:$0xff]
        %v411 = vld [vmem:[#allocation5 + $0x10] sm:$0xff]
        %v412 = vld [vmem:[#allocation5 + $0x18] sm:$0xff]
        %v413 = vld [vmem:[#allocation5 + $0x20] sm:$0xff]
        %v414 = vld [vmem:[#allocation5 + $0x28] sm:$0xff]
        %v415 = vld [vmem:[#allocation5 + $0x30] sm:$0xff]
        %v416 = vld [vmem:[#allocation5 + $0x38] sm:$0xff]
        %v417 = vld [vmem:[%s4] sm:$0x3]
        %v418 = vld [vmem:[#allocation7] sm:$0xf]
        %v419 = vld [vmem:[#allocation7 + $0x4] sm:$0xf]
        %v420 = vld [vmem:[#allocation7 + $0x8] sm:$0xf]
        %v421 = vld [vmem:[#allocation7 + $0xc] sm:$0xf]
        %v422 = vld [vmem:[#allocation7 + $0x10] sm:$0xf]
        %v423 = vld [vmem:[#allocation7 + $0x14] sm:$0xf]
        %v424 = vld [vmem:[#allocation7 + $0x18] sm:$0xf]
        %v425 = vld [vmem:[#allocation7 + $0x1c] sm:$0xf]
        %v426 = vld [vmem:[%s6] sm:$0x1]
        %v427 = vld [vmem:[%s7] sm:$0x1]
        %vm428 = vcmask 523264
        %v429 = vsel %vm428, %v375, 0.0
        %430 = vadd.xlane.f32.xlu0 %v429
        %v431 = vpop.xlane.xlu0 %430
        %v432 = vsel %vm428, %v377, 0.0
        %433 = vadd.xlane.f32.xlu0 %v432
        %v434 = vpop.xlane.xlu0 %433
        %v435 = vsel %vm428, %v379, 0.0
        %436 = vadd.xlane.f32.xlu0 %v435
        %v437 = vpop.xlane.xlu0 %436
        %v438 = vsel %vm428, %v381, 0.0
        %439 = vadd.xlane.f32.xlu0 %v438
        %v440 = vpop.xlane.xlu0 %439
        %v441 = vsel %vm428, %v383, 0.0
        %442 = vadd.xlane.f32.xlu0 %v441
        %v443 = vpop.xlane.xlu0 %442
        %v444 = vsel %vm428, %v385, 0.0
        %445 = vadd.xlane.f32.xlu0 %v444
        %v446 = vpop.xlane.xlu0 %445
        %v447 = vsel %vm428, %v387, 0.0
        %448 = vadd.xlane.f32.xlu0 %v447
        %v449 = vpop.xlane.xlu0 %448
        %v450 = vsel %vm428, %v389, 0.0
        %451 = vadd.xlane.f32.xlu0 %v450
        %v452 = vpop.xlane.xlu0 %451
        %v453 = vsel %vm428, %v376, 0.0
        %454 = vadd.xlane.f32.xlu0 %v453
        %v455 = vpop.xlane.xlu0 %454
        %v456 = vsel %vm428, %v378, 0.0
        %457 = vadd.xlane.f32.xlu0 %v456
        %v458 = vpop.xlane.xlu0 %457
        %v459 = vsel %vm428, %v380, 0.0
        %460 = vadd.xlane.f32.xlu0 %v459
        %v461 = vpop.xlane.xlu0 %460
        %v462 = vsel %vm428, %v382, 0.0
        %463 = vadd.xlane.f32.xlu0 %v462
        %v464 = vpop.xlane.xlu0 %463
        %v465 = vsel %vm428, %v384, 0.0
        %466 = vadd.xlane.f32.xlu0 %v465
        %v467 = vpop.xlane.xlu0 %466
        %v468 = vsel %vm428, %v386, 0.0
        %469 = vadd.xlane.f32.xlu0 %v468
        %v470 = vpop.xlane.xlu0 %469
        %v471 = vsel %vm428, %v388, 0.0
        %472 = vadd.xlane.f32.xlu0 %v471
        %v473 = vpop.xlane.xlu0 %472
        %v474 = vsel %vm428, %v390, 0.0
        %475 = vadd.xlane.f32.xlu0 %v474
        %v476 = vpop.xlane.xlu0 %475
        %v477 = vsel %vm428, %v391, 0.0
        %478 = vadd.xlane.f32.xlu0 %v477
        %v479 = vpop.xlane.xlu0 %478
        %v480 = vsel %vm428, %v393, 0.0
        %481 = vadd.xlane.f32.xlu0 %v480
        %v482 = vpop.xlane.xlu0 %481
        %v483 = vsel %vm428, %v395, 0.0
        %484 = vadd.xlane.f32.xlu0 %v483
        %v485 = vpop.xlane.xlu0 %484
        %v486 = vsel %vm428, %v397, 0.0
        %487 = vadd.xlane.f32.xlu0 %v486
        %v488 = vpop.xlane.xlu0 %487
        %v489 = vsel %vm428, %v399, 0.0
        %490 = vadd.xlane.f32.xlu0 %v489
        %v491 = vpop.xlane.xlu0 %490
        %v492 = vsel %vm428, %v401, 0.0
        %493 = vadd.xlane.f32.xlu0 %v492
        %v494 = vpop.xlane.xlu0 %493
        %v495 = vsel %vm428, %v403, 0.0
        %496 = vadd.xlane.f32.xlu0 %v495
        %v497 = vpop.xlane.xlu0 %496
        %v498 = vsel %vm428, %v405, 0.0
        %499 = vadd.xlane.f32.xlu0 %v498
        %v500 = vpop.xlane.xlu0 %499
        %v501 = vsel %vm428, %v392, 0.0
        %502 = vadd.xlane.f32.xlu0 %v501
        %v503 = vpop.xlane.xlu0 %502
        %v504 = vsel %vm428, %v394, 0.0
        %505 = vadd.xlane.f32.xlu0 %v504
        %v506 = vpop.xlane.xlu0 %505
        %v507 = vsel %vm428, %v396, 0.0
        %508 = vadd.xlane.f32.xlu0 %v507
        %v509 = vpop.xlane.xlu0 %508
        %v510 = vsel %vm428, %v398, 0.0
        %511 = vadd.xlane.f32.xlu0 %v510
        %v512 = vpop.xlane.xlu0 %511
        %v513 = vsel %vm428, %v400, 0.0
        %514 = vadd.xlane.f32.xlu0 %v513
        %v515 = vpop.xlane.xlu0 %514
        %v516 = vsel %vm428, %v402, 0.0
        %517 = vadd.xlane.f32.xlu0 %v516
        %v518 = vpop.xlane.xlu0 %517
        %v519 = vsel %vm428, %v404, 0.0
        %520 = vadd.xlane.f32.xlu0 %v519
        %v521 = vpop.xlane.xlu0 %520
        %v522 = vsel %vm428, %v406, 0.0
        %523 = vadd.xlane.f32.xlu0 %v522
        %v524 = vpop.xlane.xlu0 %523
        %v525 = vrcp.pop 64.0
        %v526 = vmul.f32 %v431, %v525
        %v527 = vmul.f32 %v434, %v525
        %v528 = vmul.f32 %v437, %v525
        %v529 = vmul.f32 %v440, %v525
        %v530 = vmul.f32 %v443, %v525
        %v531 = vmul.f32 %v446, %v525
        %v532 = vmul.f32 %v449, %v525
        %v533 = vmul.f32 %v452, %v525
        %v534 = vmul.f32 %v455, %v525
        %v535 = vmul.f32 %v458, %v525
        %v536 = vmul.f32 %v461, %v525
        %v537 = vmul.f32 %v464, %v525
        %v538 = vmul.f32 %v467, %v525
        %v539 = vmul.f32 %v470, %v525
        %v540 = vmul.f32 %v473, %v525
        %v541 = vmul.f32 %v476, %v525
        %v542 = vmul.f32 %v479, %v525
        %v543 = vmul.f32 %v482, %v525
        %v544 = vmul.f32 %v485, %v525
        %v545 = vmul.f32 %v488, %v525
        %v546 = vmul.f32 %v491, %v525
        %v547 = vmul.f32 %v494, %v525
        %v548 = vmul.f32 %v497, %v525
        %v549 = vmul.f32 %v500, %v525
        %v550 = vmul.f32 %v503, %v525
        %v551 = vmul.f32 %v506, %v525
        %v552 = vmul.f32 %v509, %v525
        %v553 = vmul.f32 %v512, %v525
        %v554 = vmul.f32 %v515, %v525
        %v555 = vmul.f32 %v518, %v525
        %v556 = vmul.f32 %v521, %v525
        %v557 = vmul.f32 %v524, %v525
        %v558 = vmul.f32 %v375, %v375
        %v559 = vmul.f32 %v377, %v377
        %v560 = vmul.f32 %v379, %v379
        %v561 = vmul.f32 %v381, %v381
        %v562 = vmul.f32 %v383, %v383
        %v563 = vmul.f32 %v385, %v385
        %v564 = vmul.f32 %v387, %v387
        %v565 = vmul.f32 %v389, %v389
        %v566 = vmul.f32 %v376, %v376
        %v567 = vmul.f32 %v378, %v378
        %v568 = vmul.f32 %v380, %v380
        %v569 = vmul.f32 %v382, %v382
        %v570 = vmul.f32 %v384, %v384
        %v571 = vmul.f32 %v386, %v386
        %v572 = vmul.f32 %v388, %v388
        %v573 = vmul.f32 %v390, %v390
        %v574 = vmul.f32 %v391, %v391
        %v575 = vmul.f32 %v393, %v393
        %v576 = vmul.f32 %v395, %v395
        %v577 = vmul.f32 %v397, %v397
        %v578 = vmul.f32 %v399, %v399
        %v579 = vmul.f32 %v401, %v401
        %v580 = vmul.f32 %v403, %v403
        %v581 = vmul.f32 %v405, %v405
        %v582 = vmul.f32 %v392, %v392
        %v583 = vmul.f32 %v394, %v394
        %v584 = vmul.f32 %v396, %v396
        %v585 = vmul.f32 %v398, %v398
        %v586 = vmul.f32 %v400, %v400
        %v587 = vmul.f32 %v402, %v402
        %v588 = vmul.f32 %v404, %v404
        %v589 = vmul.f32 %v406, %v406
        %v590 = vsel %vm428, %v558, 0.0
        %591 = vadd.xlane.f32.xlu0 %v590
        %v592 = vpop.xlane.xlu0 %591
        %v593 = vsel %vm428, %v559, 0.0
        %594 = vadd.xlane.f32.xlu0 %v593
        %v595 = vpop.xlane.xlu0 %594
        %v596 = vsel %vm428, %v560, 0.0
        %597 = vadd.xlane.f32.xlu0 %v596
        %v598 = vpop.xlane.xlu0 %597
        %v599 = vsel %vm428, %v561, 0.0
        %600 = vadd.xlane.f32.xlu0 %v599
        %v601 = vpop.xlane.xlu0 %600
        %v602 = vsel %vm428, %v562, 0.0
        %603 = vadd.xlane.f32.xlu0 %v602
        %v604 = vpop.xlane.xlu0 %603
        %v605 = vsel %vm428, %v563, 0.0
        %606 = vadd.xlane.f32.xlu0 %v605
        %v607 = vpop.xlane.xlu0 %606
        %v608 = vsel %vm428, %v564, 0.0
        %609 = vadd.xlane.f32.xlu0 %v608
        %v610 = vpop.xlane.xlu0 %609
        %v611 = vsel %vm428, %v565, 0.0
        %612 = vadd.xlane.f32.xlu0 %v611
        %v613 = vpop.xlane.xlu0 %612
        %v614 = vsel %vm428, %v566, 0.0
        %615 = vadd.xlane.f32.xlu0 %v614
        %v616 = vpop.xlane.xlu0 %615
        %v617 = vsel %vm428, %v567, 0.0
        %618 = vadd.xlane.f32.xlu0 %v617
        %v619 = vpop.xlane.xlu0 %618
        %v620 = vsel %vm428, %v568, 0.0
        %621 = vadd.xlane.f32.xlu0 %v620
        %v622 = vpop.xlane.xlu0 %621
        %v623 = vsel %vm428, %v569, 0.0
        %624 = vadd.xlane.f32.xlu0 %v623
        %v625 = vpop.xlane.xlu0 %624
        %v626 = vsel %vm428, %v570, 0.0
        %627 = vadd.xlane.f32.xlu0 %v626
        %v628 = vpop.xlane.xlu0 %627
        %v629 = vsel %vm428, %v571, 0.0
        %630 = vadd.xlane.f32.xlu0 %v629
        %v631 = vpop.xlane.xlu0 %630
        %v632 = vsel %vm428, %v572, 0.0
        %633 = vadd.xlane.f32.xlu0 %v632
        %v634 = vpop.xlane.xlu0 %633
        %v635 = vsel %vm428, %v573, 0.0
        %636 = vadd.xlane.f32.xlu0 %v635
        %v637 = vpop.xlane.xlu0 %636
        %v638 = vsel %vm428, %v574, 0.0
        %639 = vadd.xlane.f32.xlu0 %v638
        %v640 = vpop.xlane.xlu0 %639
        %v641 = vsel %vm428, %v575, 0.0
        %642 = vadd.xlane.f32.xlu0 %v641
        %v643 = vpop.xlane.xlu0 %642
        %v644 = vsel %vm428, %v576, 0.0
        %645 = vadd.xlane.f32.xlu0 %v644
        %v646 = vpop.xlane.xlu0 %645
        %v647 = vsel %vm428, %v577, 0.0
        %648 = vadd.xlane.f32.xlu0 %v647
        %v649 = vpop.xlane.xlu0 %648
        %v650 = vsel %vm428, %v578, 0.0
        %651 = vadd.xlane.f32.xlu0 %v650
        %v652 = vpop.xlane.xlu0 %651
        %v653 = vsel %vm428, %v579, 0.0
        %654 = vadd.xlane.f32.xlu0 %v653
        %v655 = vpop.xlane.xlu0 %654
        %v656 = vsel %vm428, %v580, 0.0
        %657 = vadd.xlane.f32.xlu0 %v656
        %v658 = vpop.xlane.xlu0 %657
        %v659 = vsel %vm428, %v581, 0.0
        %660 = vadd.xlane.f32.xlu0 %v659
        %v661 = vpop.xlane.xlu0 %660
        %v662 = vsel %vm428, %v582, 0.0
        %663 = vadd.xlane.f32.xlu0 %v662
        %v664 = vpop.xlane.xlu0 %663
        %v665 = vsel %vm428, %v583, 0.0
        %666 = vadd.xlane.f32.xlu0 %v665
        %v667 = vpop.xlane.xlu0 %666
        %v668 = vsel %vm428, %v584, 0.0
        %669 = vadd.xlane.f32.xlu0 %v668
        %v670 = vpop.xlane.xlu0 %669
        %v671 = vsel %vm428, %v585, 0.0
        %672 = vadd.xlane.f32.xlu0 %v671
        %v673 = vpop.xlane.xlu0 %672
        %v674 = vsel %vm428, %v586, 0.0
        %675 = vadd.xlane.f32.xlu0 %v674
        %v676 = vpop.xlane.xlu0 %675
        %v677 = vsel %vm428, %v587, 0.0
        %678 = vadd.xlane.f32.xlu0 %v677
        %v679 = vpop.xlane.xlu0 %678
        %v680 = vsel %vm428, %v588, 0.0
        %681 = vadd.xlane.f32.xlu0 %v680
        %v682 = vpop.xlane.xlu0 %681
        %v683 = vsel %vm428, %v589, 0.0
        %684 = vadd.xlane.f32.xlu0 %v683
        %v685 = vpop.xlane.xlu0 %684
        %v686 = vmul.f32 %v592, %v525
        %v687 = vmul.f32 %v595, %v525
        %v688 = vmul.f32 %v598, %v525
        %v689 = vmul.f32 %v601, %v525
        %v690 = vmul.f32 %v604, %v525
        %v691 = vmul.f32 %v607, %v525
        %v692 = vmul.f32 %v610, %v525
        %v693 = vmul.f32 %v613, %v525
        %v694 = vmul.f32 %v616, %v525
        %v695 = vmul.f32 %v619, %v525
        %v696 = vmul.f32 %v622, %v525
        %v697 = vmul.f32 %v625, %v525
        %v698 = vmul.f32 %v628, %v525
        %v699 = vmul.f32 %v631, %v525
        %v700 = vmul.f32 %v634, %v525
        %v701 = vmul.f32 %v637, %v525
        %v702 = vmul.f32 %v640, %v525
        %v703 = vmul.f32 %v643, %v525
        %v704 = vmul.f32 %v646, %v525
        %v705 = vmul.f32 %v649, %v525
        %v706 = vmul.f32 %v652, %v525
        %v707 = vmul.f32 %v655, %v525
        %v708 = vmul.f32 %v658, %v525
        %v709 = vmul.f32 %v661, %v525
        %v710 = vmul.f32 %v664, %v525
        %v711 = vmul.f32 %v667, %v525
        %v712 = vmul.f32 %v670, %v525
        %v713 = vmul.f32 %v673, %v525
        %v714 = vmul.f32 %v676, %v525
        %v715 = vmul.f32 %v679, %v525
        %v716 = vmul.f32 %v682, %v525
        %v717 = vmul.f32 %v685, %v525
        %v718 = vmul.f32 %v526, %v526
        %v719 = vmul.f32 %v527, %v527
        %v720 = vmul.f32 %v528, %v528
        %v721 = vmul.f32 %v529, %v529
        %v722 = vmul.f32 %v530, %v530
        %v723 = vmul.f32 %v531, %v531
        %v724 = vmul.f32 %v532, %v532
        %v725 = vmul.f32 %v533, %v533
        %v726 = vmul.f32 %v534, %v534
        %v727 = vmul.f32 %v535, %v535
        %v728 = vmul.f32 %v536, %v536
        %v729 = vmul.f32 %v537, %v537
        %v730 = vmul.f32 %v538, %v538
        %v731 = vmul.f32 %v539, %v539
        %v732 = vmul.f32 %v540, %v540
        %v733 = vmul.f32 %v541, %v541
        %v734 = vmul.f32 %v542, %v542
        %v735 = vmul.f32 %v543, %v543
        %v736 = vmul.f32 %v544, %v544
        %v737 = vmul.f32 %v545, %v545
        %v738 = vmul.f32 %v546, %v546
        %v739 = vmul.f32 %v547, %v547
        %v740 = vmul.f32 %v548, %v548
        %v741 = vmul.f32 %v549, %v549
        %v742 = vmul.f32 %v550, %v550
        %v743 = vmul.f32 %v551, %v551
        %v744 = vmul.f32 %v552, %v552
        %v745 = vmul.f32 %v553, %v553
        %v746 = vmul.f32 %v554, %v554
        %v747 = vmul.f32 %v555, %v555
        %v748 = vmul.f32 %v556, %v556
        %v749 = vmul.f32 %v557, %v557
        %v750 = vsub.f32 %v686, %v718
        %v751 = vsub.f32 %v687, %v719
        %v752 = vsub.f32 %v688, %v720
        %v753 = vsub.f32 %v689, %v721
        %v754 = vsub.f32 %v690, %v722
        %v755 = vsub.f32 %v691, %v723
        %v756 = vsub.f32 %v692, %v724
        %v757 = vsub.f32 %v693, %v725
        %v758 = vsub.f32 %v694, %v726
        %v759 = vsub.f32 %v695, %v727
        %v760 = vsub.f32 %v696, %v728
        %v761 = vsub.f32 %v697, %v729
        %v762 = vsub.f32 %v698, %v730
        %v763 = vsub.f32 %v699, %v731
        %v764 = vsub.f32 %v700, %v732
        %v765 = vsub.f32 %v701, %v733
        %v766 = vsub.f32 %v702, %v734
        %v767 = vsub.f32 %v703, %v735
        %v768 = vsub.f32 %v704, %v736
        %v769 = vsub.f32 %v705, %v737
        %v770 = vsub.f32 %v706, %v738
        %v771 = vsub.f32 %v707, %v739
        %v772 = vsub.f32 %v708, %v740
        %v773 = vsub.f32 %v709, %v741
        %v774 = vsub.f32 %v710, %v742
        %v775 = vsub.f32 %v711, %v743
        %v776 = vsub.f32 %v712, %v744
        %v777 = vsub.f32 %v713, %v745
        %v778 = vsub.f32 %v714, %v746
        %v779 = vsub.f32 %v715, %v747
        %v780 = vsub.f32 %v716, %v748
        %v781 = vsub.f32 %v717, %v749
        %v782 = vsub.f32 %v375, %v526
        %v783 = vsub.f32 %v377, %v527
        %v784 = vsub.f32 %v379, %v528
        %v785 = vsub.f32 %v381, %v529
        %v786 = vsub.f32 %v383, %v530
        %v787 = vsub.f32 %v385, %v531
        %v788 = vsub.f32 %v387, %v532
        %v789 = vsub.f32 %v389, %v533
        %v790 = vsub.f32 %v376, %v534
        %v791 = vsub.f32 %v378, %v535
        %v792 = vsub.f32 %v380, %v536
        %v793 = vsub.f32 %v382, %v537
        %v794 = vsub.f32 %v384, %v538
        %v795 = vsub.f32 %v386, %v539
        %v796 = vsub.f32 %v388, %v540
        %v797 = vsub.f32 %v390, %v541
        %v798 = vsub.f32 %v391, %v542
        %v799 = vsub.f32 %v393, %v543
        %v800 = vsub.f32 %v395, %v544
        %v801 = vsub.f32 %v397, %v545
        %v802 = vsub.f32 %v399, %v546
        %v803 = vsub.f32 %v401, %v547
        %v804 = vsub.f32 %v403, %v548
        %v805 = vsub.f32 %v405, %v549
        %v806 = vsub.f32 %v392, %v550
        %v807 = vsub.f32 %v394, %v551
        %v808 = vsub.f32 %v396, %v552
        %v809 = vsub.f32 %v398, %v553
        %v810 = vsub.f32 %v400, %v554
        %v811 = vsub.f32 %v402, %v555
        %v812 = vsub.f32 %v404, %v556
        %v813 = vsub.f32 %v406, %v557
        %v814 = vadd.f32 %v750, 1e-05
        %v815 = vadd.f32 %v751, 1e-05
        %v816 = vadd.f32 %v752, 1e-05
        %v817 = vadd.f32 %v753, 1e-05
        %v818 = vadd.f32 %v754, 1e-05
        %v819 = vadd.f32 %v755, 1e-05
        %v820 = vadd.f32 %v756, 1e-05
        %v821 = vadd.f32 %v757, 1e-05
        %v822 = vadd.f32 %v758, 1e-05
        %v823 = vadd.f32 %v759, 1e-05
        %v824 = vadd.f32 %v760, 1e-05
        %v825 = vadd.f32 %v761, 1e-05
        %v826 = vadd.f32 %v762, 1e-05
        %v827 = vadd.f32 %v763, 1e-05
        %v828 = vadd.f32 %v764, 1e-05
        %v829 = vadd.f32 %v765, 1e-05
        %v830 = vadd.f32 %v766, 1e-05
        %v831 = vadd.f32 %v767, 1e-05
        %v832 = vadd.f32 %v768, 1e-05
        %v833 = vadd.f32 %v769, 1e-05
        %v834 = vadd.f32 %v770, 1e-05
        %v835 = vadd.f32 %v771, 1e-05
        %v836 = vadd.f32 %v772, 1e-05
        %v837 = vadd.f32 %v773, 1e-05
        %v838 = vadd.f32 %v774, 1e-05
        %v839 = vadd.f32 %v775, 1e-05
        %v840 = vadd.f32 %v776, 1e-05
        %v841 = vadd.f32 %v777, 1e-05
        %v842 = vadd.f32 %v778, 1e-05
        %v843 = vadd.f32 %v779, 1e-05
        %v844 = vadd.f32 %v780, 1e-05
        %v845 = vadd.f32 %v781, 1e-05
        %v846 = vrsqrt.pop %v814
        %v847 = vrsqrt.pop %v815
        %v848 = vrsqrt.pop %v816
        %v849 = vrsqrt.pop %v817
        %v850 = vrsqrt.pop %v818
        %v851 = vrsqrt.pop %v819
        %v852 = vrsqrt.pop %v820
        %v853 = vrsqrt.pop %v821
        %v854 = vrsqrt.pop %v822
        %v855 = vrsqrt.pop %v823
        %v856 = vrsqrt.pop %v824
        %v857 = vrsqrt.pop %v825
        %v858 = vrsqrt.pop %v826
        %v859 = vrsqrt.pop %v827
        %v860 = vrsqrt.pop %v828
        %v861 = vrsqrt.pop %v829
        %v862 = vrsqrt.pop %v830
        %v863 = vrsqrt.pop %v831
        %v864 = vrsqrt.pop %v832
        %v865 = vrsqrt.pop %v833
        %v866 = vrsqrt.pop %v834
        %v867 = vrsqrt.pop %v835
        %v868 = vrsqrt.pop %v836
        %v869 = vrsqrt.pop %v837
        %v870 = vrsqrt.pop %v838
        %v871 = vrsqrt.pop %v839
        %v872 = vrsqrt.pop %v840
        %v873 = vrsqrt.pop %v841
        %v874 = vrsqrt.pop %v842
        %v875 = vrsqrt.pop %v843
        %v876 = vrsqrt.pop %v844
        %v877 = vrsqrt.pop %v845
        %v878 = vmul.f32 %v782, %v846
        %v879 = vmul.f32 %v783, %v847
        %v880 = vmul.f32 %v784, %v848
        %v881 = vmul.f32 %v785, %v849
        %v882 = vmul.f32 %v786, %v850
        %v883 = vmul.f32 %v787, %v851
        %v884 = vmul.f32 %v788, %v852
        %v885 = vmul.f32 %v789, %v853
        %v886 = vmul.f32 %v790, %v854
        %v887 = vmul.f32 %v791, %v855
        %v888 = vmul.f32 %v792, %v856
        %v889 = vmul.f32 %v793, %v857
        %v890 = vmul.f32 %v794, %v858
        %v891 = vmul.f32 %v795, %v859
        %v892 = vmul.f32 %v796, %v860
        %v893 = vmul.f32 %v797, %v861
        %v894 = vmul.f32 %v798, %v862
        %v895 = vmul.f32 %v799, %v863
        %v896 = vmul.f32 %v800, %v864
        %v897 = vmul.f32 %v801, %v865
        %v898 = vmul.f32 %v802, %v866
        %v899 = vmul.f32 %v803, %v867
        %v900 = vmul.f32 %v804, %v868
        %v901 = vmul.f32 %v805, %v869
        %v902 = vmul.f32 %v806, %v870
        %v903 = vmul.f32 %v807, %v871
        %v904 = vmul.f32 %v808, %v872
        %v905 = vmul.f32 %v809, %v873
        %v906 = vmul.f32 %v810, %v874
        %v907 = vmul.f32 %v811, %v875
        %v908 = vmul.f32 %v812, %v876
        %v909 = vmul.f32 %v813, %v877
        %v911 = vlaneseq
        %v912 = vshrl.u32 %v911, 7
        %v913 = vsub.s32 0, %v912
        %v914 = vrot.slane %v407, %v913
        %v916 = vmul.f32 %v878, %v914
        %v917 = vmul.f32 %v879, %v914
        %v918 = vmul.f32 %v880, %v914
        %v919 = vmul.f32 %v881, %v914
        %v920 = vmul.f32 %v882, %v914
        %v921 = vmul.f32 %v883, %v914
        %v922 = vmul.f32 %v884, %v914
        %v923 = vmul.f32 %v885, %v914
        %v924 = vmul.f32 %v886, %v914
        %v925 = vmul.f32 %v887, %v914
        %v926 = vmul.f32 %v888, %v914
        %v927 = vmul.f32 %v889, %v914
        %v928 = vmul.f32 %v890, %v914
        %v929 = vmul.f32 %v891, %v914
        %v930 = vmul.f32 %v892, %v914
        %v931 = vmul.f32 %v893, %v914
        %v932 = vmul.f32 %v894, %v914
        %v933 = vmul.f32 %v895, %v914
        %v934 = vmul.f32 %v896, %v914
        %v935 = vmul.f32 %v897, %v914
        %v936 = vmul.f32 %v898, %v914
        %v937 = vmul.f32 %v899, %v914
        %v938 = vmul.f32 %v900, %v914
        %v939 = vmul.f32 %v901, %v914
        %v940 = vmul.f32 %v902, %v914
        %v941 = vmul.f32 %v903, %v914
        %v942 = vmul.f32 %v904, %v914
        %v943 = vmul.f32 %v905, %v914
        %v944 = vmul.f32 %v906, %v914
        %v945 = vmul.f32 %v907, %v914
        %v946 = vmul.f32 %v908, %v914
        %v947 = vmul.f32 %v909, %v914
        %v949 = vlaneseq
        %v950 = vshrl.u32 %v949, 7
        %v951 = vsub.s32 0, %v950
        %v952 = vrot.slane %v408, %v951
        %v954 = vadd.f32 %v916, %v952
        %v955 = vadd.f32 %v917, %v952
        %v956 = vadd.f32 %v918, %v952
        %v957 = vadd.f32 %v919, %v952
        %v958 = vadd.f32 %v920, %v952
        %v959 = vadd.f32 %v921, %v952
        %v960 = vadd.f32 %v922, %v952
        %v961 = vadd.f32 %v923, %v952
        %v962 = vadd.f32 %v924, %v952
        %v963 = vadd.f32 %v925, %v952
        %v964 = vadd.f32 %v926, %v952
        %v965 = vadd.f32 %v927, %v952
        %v966 = vadd.f32 %v928, %v952
        %v967 = vadd.f32 %v929, %v952
        %v968 = vadd.f32 %v930, %v952
        %v969 = vadd.f32 %v931, %v952
        %v970 = vadd.f32 %v932, %v952
        %v971 = vadd.f32 %v933, %v952
        %v972 = vadd.f32 %v934, %v952
        %v973 = vadd.f32 %v935, %v952
        %v974 = vadd.f32 %v936, %v952
        %v975 = vadd.f32 %v937, %v952
        %v976 = vadd.f32 %v938, %v952
        %v977 = vadd.f32 %v939, %v952
        %v978 = vadd.f32 %v940, %v952
        %v979 = vadd.f32 %v941, %v952
        %v980 = vadd.f32 %v942, %v952
        %v981 = vadd.f32 %v943, %v952
        %v982 = vadd.f32 %v944, %v952
        %v983 = vadd.f32 %v945, %v952
        %v984 = vadd.f32 %v946, %v952
        %v985 = vadd.f32 %v947, %v952
        %v986 = vpack.c.bf16 %v955, %v954
        %v987 = vpack.c.bf16 %v957, %v956
        %v988 = vpack.c.bf16 %v959, %v958
        %v989 = vpack.c.bf16 %v961, %v960
        %v990 = vpack.c.bf16 %v963, %v962
        %v991 = vpack.c.bf16 %v965, %v964
        %v992 = vpack.c.bf16 %v967, %v966
        %v993 = vpack.c.bf16 %v969, %v968
        %v994 = vpack.c.bf16 %v971, %v970
        %v995 = vpack.c.bf16 %v973, %v972
        %v996 = vpack.c.bf16 %v975, %v974
        %v997 = vpack.c.bf16 %v977, %v976
        %v998 = vpack.c.bf16 %v979, %v978
        %v999 = vpack.c.bf16 %v981, %v980
        %v1000 = vpack.c.bf16 %v983, %v982
        %v1001 = vpack.c.bf16 %v985, %v984
        %v1003 = vlaneseq
        %v1004 = vshrl.u32 %v1003, 7
        %v1005 = vsub.s32 0, %v1004
        %v1006 = vrot.slane %v417, %v1005
        %v1007 = vlaneseq
        %v1008 = vshrl.u32 %v1007, 7
        %v1009 = vsub.s32 1, %v1008
        %v1010 = vrot.slane %v417, %v1009
        %v1021 = vunpack.c.l.b16 %v409
        %v1022 = vunpack.c.h.b16 %v409
        %v1023 = vunpack.c.l.b16 %v410
        %v1024 = vunpack.c.h.b16 %v410
        %v1025 = vunpack.c.l.b16 %v411
        %v1026 = vunpack.c.h.b16 %v411
        %v1027 = vunpack.c.l.b16 %v412
        %v1028 = vunpack.c.h.b16 %v412
        %v1029 = vunpack.c.l.b16 %v413
        %v1030 = vunpack.c.h.b16 %v413
        %v1031 = vunpack.c.l.b16 %v414
        %v1032 = vunpack.c.h.b16 %v414
        %v1033 = vunpack.c.l.b16 %v415
        %v1034 = vunpack.c.h.b16 %v415
        %v1035 = vunpack.c.l.b16 %v416
        %v1036 = vunpack.c.h.b16 %v416
        %v1037 = vpack.c.b16 %v1023, %v1021
        %v1038 = vpack.c.b16 %v1024, %v1022
        %v1039 = vpack.c.b16 %v1027, %v1025
        %v1040 = vpack.c.b16 %v1028, %v1026
        %v1041 = vpack.c.b16 %v1031, %v1029
        %v1042 = vpack.c.b16 %v1032, %v1030
        %v1043 = vpack.c.b16 %v1035, %v1033
        %v1044 = vpack.c.b16 %v1036, %v1034
        %v1054 = vsel %vm428, %v986, 0
        %v1057 = vsel %vm428, %v987, 0
        %v1060 = vsel %vm428, %v988, 0
        %v1063 = vsel %vm428, %v989, 0
        %v1066 = vsel %vm428, %v990, 0
        %v1069 = vsel %vm428, %v991, 0
        %v1072 = vsel %vm428, %v992, 0
        %v1075 = vsel %vm428, %v993, 0
        %v1078 = vsel %vm428, %v994, 0
        %v1081 = vsel %vm428, %v995, 0
        %v1084 = vsel %vm428, %v996, 0
        %v1087 = vsel %vm428, %v997, 0
        %v1090 = vsel %vm428, %v998, 0
        %v1093 = vsel %vm428, %v999, 0
        %v1096 = vsel %vm428, %v1000, 0
        %v1099 = vsel %vm428, %v1001, 0
        %1101 = vmatprep.subr.bf16.mxu0 %v1038
        %1102 = vmatpush1.bf16.msra.mxu0 %v1037
        %1103 = vmatprep.subr.bf16.mxu0 %v1040
        %1104 = vmatpush1.bf16.msra.mxu0 %v1039
        %1105 = vmatprep.subr.bf16.mxu0 %v1042
        %1106 = vmatpush1.bf16.msra.mxu0 %v1041
        %1107 = vmatprep.subr.bf16.mxu0 %v1044
        %1108 = vmatpush1.bf16.msra.mxu0 %v1043
        %1109 = vmatprep.subr.bf16.mxu0 0
        %1110 = vmatpush1.bf16.msra.mxu0 0
        %1111 = vmatprep.subr.bf16.mxu0 0
        %1112 = vmatpush1.bf16.msra.mxu0 0
        %1113 = vmatprep.subr.bf16.mxu0 0
        %1114 = vmatpush1.bf16.msra.mxu0 0
        %1115 = vmatprep.subr.bf16.mxu0 0
        %1116 = vmatpush1.bf16.msra.mxu0 0
        %1117 = vmatprep.subr.bf16.mxu0 0
        %1118 = vmatpush1.bf16.msra.mxu0 0
        %1119 = vmatprep.subr.bf16.mxu0 0
        %1120 = vmatpush1.bf16.msra.mxu0 0
        %1121 = vmatprep.subr.bf16.mxu0 0
        %1122 = vmatpush1.bf16.msra.mxu0 0
        %1123 = vmatprep.subr.bf16.mxu0 0
        %1124 = vmatpush1.bf16.msra.mxu0 0
        %1125 = vmatprep.subr.bf16.mxu0 0
        %1126 = vmatpush1.bf16.msra.mxu0 0
        %1127 = vmatprep.subr.bf16.mxu0 0
        %1128 = vmatpush1.bf16.msra.mxu0 0
        %1129 = vmatprep.subr.bf16.mxu0 0
        %1130 = vmatpush1.bf16.msra.mxu0 0
        %1131 = vmatprep.subr.bf16.mxu0 0
        %1132 = vmatpush1.bf16.msra.mxu0 0
        %1133 = vmatprep.mubr.bf16.mxu0 0
        %1134 = vmatmul.mubr.bf16.gmra.mrb[0].mxu0 %v1054
        %v1135 = vpop.f32.mrb[0].mxu0
        %v1136 = vadd.f32 %v1006, %v1135
        %v1137 = vpop.f32.mrb[0].mxu0
        %v1138 = vadd.f32 %v1010, %v1137
        %v1139 = vpop.f32.mrb[0].mxu0
        %v1140 = vadd.f32 %v1006, %v1139
        %v1141 = vpop.f32.mrb[0].mxu0
        %v1142 = vadd.f32 %v1010, %v1141
        %1143 = vmatprep.mubr.bf16.mxu0 0
        %1144 = vmatmul.mubr.bf16.gmra.mrb[0].mxu0 %v1057
        %v1145 = vpop.f32.mrb[0].mxu0
        %v1146 = vadd.f32 %v1006, %v1145
        %v1147 = vpop.f32.mrb[0].mxu0
        %v1148 = vadd.f32 %v1010, %v1147
        %v1149 = vpop.f32.mrb[0].mxu0
        %v1150 = vadd.f32 %v1006, %v1149
        %v1151 = vpop.f32.mrb[0].mxu0
        %v1152 = vadd.f32 %v1010, %v1151
        %1153 = vmatprep.mubr.bf16.mxu0 0
        %1154 = vmatmul.mubr.bf16.gmra.mrb[0].mxu0 %v1060
        %v1155 = vpop.f32.mrb[0].mxu0
        %v1156 = vadd.f32 %v1006, %v1155
        %v1157 = vpop.f32.mrb[0].mxu0
        %v1158 = vadd.f32 %v1010, %v1157
        %v1159 = vpop.f32.mrb[0].mxu0
        %v1160 = vadd.f32 %v1006, %v1159
        %v1161 = vpop.f32.mrb[0].mxu0
        %v1162 = vadd.f32 %v1010, %v1161
        %1163 = vmatprep.mubr.bf16.mxu0 0
        %1164 = vmatmul.mubr.bf16.gmra.mrb[0].mxu0 %v1063
        %v1165 = vpop.f32.mrb[0].mxu0
        %v1166 = vadd.f32 %v1006, %v1165
        %v1167 = vpop.f32.mrb[0].mxu0
        %v1168 = vadd.f32 %v1010, %v1167
        %v1169 = vpop.f32.mrb[0].mxu0
        %v1170 = vadd.f32 %v1006, %v1169
        %v1171 = vpop.f32.mrb[0].mxu0
        %v1172 = vadd.f32 %v1010, %v1171
        %1173 = vmatprep.mubr.bf16.mxu0 0
        %1174 = vmatmul.mubr.bf16.gmra.mrb[0].mxu0 %v1066
        %v1175 = vpop.f32.mrb[0].mxu0
        %v1176 = vadd.f32 %v1006, %v1175
        %v1177 = vpop.f32.mrb[0].mxu0
        %v1178 = vadd.f32 %v1010, %v1177
        %v1179 = vpop.f32.mrb[0].mxu0
        %v1180 = vadd.f32 %v1006, %v1179
        %v1181 = vpop.f32.mrb[0].mxu0
        %v1182 = vadd.f32 %v1010, %v1181
        %1183 = vmatprep.mubr.bf16.mxu0 0
        %1184 = vmatmul.mubr.bf16.gmra.mrb[0].mxu0 %v1069
        %v1185 = vpop.f32.mrb[0].mxu0
        %v1186 = vadd.f32 %v1006, %v1185
        %v1187 = vpop.f32.mrb[0].mxu0
        %v1188 = vadd.f32 %v1010, %v1187
        %v1189 = vpop.f32.mrb[0].mxu0
        %v1190 = vadd.f32 %v1006, %v1189
        %v1191 = vpop.f32.mrb[0].mxu0
        %v1192 = vadd.f32 %v1010, %v1191
        %1193 = vmatprep.mubr.bf16.mxu0 0
        %1194 = vmatmul.mubr.bf16.gmra.mrb[0].mxu0 %v1072
        %v1195 = vpop.f32.mrb[0].mxu0
        %v1196 = vadd.f32 %v1006, %v1195
        %v1197 = vpop.f32.mrb[0].mxu0
        %v1198 = vadd.f32 %v1010, %v1197
        %v1199 = vpop.f32.mrb[0].mxu0
        %v1200 = vadd.f32 %v1006, %v1199
        %v1201 = vpop.f32.mrb[0].mxu0
        %v1202 = vadd.f32 %v1010, %v1201
        %1203 = vmatprep.mubr.bf16.mxu0 0
        %1204 = vmatmul.mubr.bf16.gmra.mrb[0].mxu0 %v1075
        %v1205 = vpop.f32.mrb[0].mxu0
        %v1206 = vadd.f32 %v1006, %v1205
        %v1207 = vpop.f32.mrb[0].mxu0
        %v1208 = vadd.f32 %v1010, %v1207
        %v1209 = vpop.f32.mrb[0].mxu0
        %v1210 = vadd.f32 %v1006, %v1209
        %v1211 = vpop.f32.mrb[0].mxu0
        %v1212 = vadd.f32 %v1010, %v1211
        %1213 = vmatprep.mubr.bf16.mxu0 0
        %1214 = vmatmul.mubr.bf16.gmra.mrb[0].mxu0 %v1078
        %v1215 = vpop.f32.mrb[0].mxu0
        %v1216 = vadd.f32 %v1006, %v1215
        %v1217 = vpop.f32.mrb[0].mxu0
        %v1218 = vadd.f32 %v1010, %v1217
        %v1219 = vpop.f32.mrb[0].mxu0
        %v1220 = vadd.f32 %v1006, %v1219
        %v1221 = vpop.f32.mrb[0].mxu0
        %v1222 = vadd.f32 %v1010, %v1221
        %1223 = vmatprep.mubr.bf16.mxu0 0
        %1224 = vmatmul.mubr.bf16.gmra.mrb[0].mxu0 %v1081
        %v1225 = vpop.f32.mrb[0].mxu0
        %v1226 = vadd.f32 %v1006, %v1225
        %v1227 = vpop.f32.mrb[0].mxu0
        %v1228 = vadd.f32 %v1010, %v1227
        %v1229 = vpop.f32.mrb[0].mxu0
        %v1230 = vadd.f32 %v1006, %v1229
        %v1231 = vpop.f32.mrb[0].mxu0
        %v1232 = vadd.f32 %v1010, %v1231
        %1233 = vmatprep.mubr.bf16.mxu0 0
        %1234 = vmatmul.mubr.bf16.gmra.mrb[0].mxu0 %v1084
        %v1235 = vpop.f32.mrb[0].mxu0
        %v1236 = vadd.f32 %v1006, %v1235
        %v1237 = vpop.f32.mrb[0].mxu0
        %v1238 = vadd.f32 %v1010, %v1237
        %v1239 = vpop.f32.mrb[0].mxu0
        %v1240 = vadd.f32 %v1006, %v1239
        %v1241 = vpop.f32.mrb[0].mxu0
        %v1242 = vadd.f32 %v1010, %v1241
        %1243 = vmatprep.mubr.bf16.mxu0 0
        %1244 = vmatmul.mubr.bf16.gmra.mrb[0].mxu0 %v1087
        %v1245 = vpop.f32.mrb[0].mxu0
        %v1246 = vadd.f32 %v1006, %v1245
        %v1247 = vpop.f32.mrb[0].mxu0
        %v1248 = vadd.f32 %v1010, %v1247
        %v1249 = vpop.f32.mrb[0].mxu0
        %v1250 = vadd.f32 %v1006, %v1249
        %v1251 = vpop.f32.mrb[0].mxu0
        %v1252 = vadd.f32 %v1010, %v1251
        %1253 = vmatprep.mubr.bf16.mxu0 0
        %1254 = vmatmul.mubr.bf16.gmra.mrb[0].mxu0 %v1090
        %v1255 = vpop.f32.mrb[0].mxu0
        %v1256 = vadd.f32 %v1006, %v1255
        %v1257 = vpop.f32.mrb[0].mxu0
        %v1258 = vadd.f32 %v1010, %v1257
        %v1259 = vpop.f32.mrb[0].mxu0
        %v1260 = vadd.f32 %v1006, %v1259
        %v1261 = vpop.f32.mrb[0].mxu0
        %v1262 = vadd.f32 %v1010, %v1261
        %1263 = vmatprep.mubr.bf16.mxu0 0
        %1264 = vmatmul.mubr.bf16.gmra.mrb[0].mxu0 %v1093
        %v1265 = vpop.f32.mrb[0].mxu0
        %v1266 = vadd.f32 %v1006, %v1265
        %v1267 = vpop.f32.mrb[0].mxu0
        %v1268 = vadd.f32 %v1010, %v1267
        %v1269 = vpop.f32.mrb[0].mxu0
        %v1270 = vadd.f32 %v1006, %v1269
        %v1271 = vpop.f32.mrb[0].mxu0
        %v1272 = vadd.f32 %v1010, %v1271
        %1273 = vmatprep.mubr.bf16.mxu0 0
        %1274 = vmatmul.mubr.bf16.gmra.mrb[0].mxu0 %v1096
        %v1275 = vpop.f32.mrb[0].mxu0
        %v1276 = vadd.f32 %v1006, %v1275
        %v1277 = vpop.f32.mrb[0].mxu0
        %v1278 = vadd.f32 %v1010, %v1277
        %v1279 = vpop.f32.mrb[0].mxu0
        %v1280 = vadd.f32 %v1006, %v1279
        %v1281 = vpop.f32.mrb[0].mxu0
        %v1282 = vadd.f32 %v1010, %v1281
        %1283 = vmatprep.mubr.bf16.mxu0 0
        %1284 = vmatmul.mubr.bf16.gmra.mrb[0].mxu0 %v1099
        %v1285 = vpop.f32.mrb[0].mxu0
        %v1286 = vadd.f32 %v1006, %v1285
        %v1287 = vpop.f32.mrb[0].mxu0
        %v1288 = vadd.f32 %v1010, %v1287
        %v1289 = vpop.f32.mrb[0].mxu0
        %v1290 = vadd.f32 %v1006, %v1289
        %v1291 = vpop.f32.mrb[0].mxu0
        %v1292 = vadd.f32 %v1010, %v1291
        %1293 = vdwg.mxu0
        %v1294 = vpack.c.bf16 %v1140, %v1136
        %v1295 = vpack.c.bf16 %v1150, %v1146
        %v1296 = vpack.c.bf16 %v1160, %v1156
        %v1297 = vpack.c.bf16 %v1170, %v1166
        %v1298 = vpack.c.bf16 %v1180, %v1176
        %v1299 = vpack.c.bf16 %v1190, %v1186
        %v1300 = vpack.c.bf16 %v1200, %v1196
        %v1301 = vpack.c.bf16 %v1210, %v1206
        %v1302 = vpack.c.bf16 %v1220, %v1216
        %v1303 = vpack.c.bf16 %v1230, %v1226
        %v1304 = vpack.c.bf16 %v1240, %v1236
        %v1305 = vpack.c.bf16 %v1250, %v1246
        %v1306 = vpack.c.bf16 %v1260, %v1256
        %v1307 = vpack.c.bf16 %v1270, %v1266
        %v1308 = vpack.c.bf16 %v1280, %v1276
        %v1309 = vpack.c.bf16 %v1290, %v1286
        %v1310 = vpack.c.bf16 %v1142, %v1138
        %v1311 = vpack.c.bf16 %v1152, %v1148
        %v1312 = vpack.c.bf16 %v1162, %v1158
        %v1313 = vpack.c.bf16 %v1172, %v1168
        %v1314 = vpack.c.bf16 %v1182, %v1178
        %v1315 = vpack.c.bf16 %v1192, %v1188
        %v1316 = vpack.c.bf16 %v1202, %v1198
        %v1317 = vpack.c.bf16 %v1212, %v1208
        %v1318 = vpack.c.bf16 %v1222, %v1218
        %v1319 = vpack.c.bf16 %v1232, %v1228
        %v1320 = vpack.c.bf16 %v1242, %v1238
        %v1321 = vpack.c.bf16 %v1252, %v1248
        %v1322 = vpack.c.bf16 %v1262, %v1258
        %v1323 = vpack.c.bf16 %v1272, %v1268
        %v1324 = vpack.c.bf16 %v1282, %v1278
        %v1325 = vpack.c.bf16 %v1292, %v1288
        %1330 = vrot.lane.b32.xlu0 %v1294, 64
        %v1331 = vpop.permute.xlu0 %1330
        %1332 = vrot.lane.b32.xlu0 %v1295, 64
        %v1333 = vpop.permute.xlu0 %1332
        %1334 = vrot.lane.b32.xlu0 %v1296, 64
        %v1335 = vpop.permute.xlu0 %1334
        %1336 = vrot.lane.b32.xlu0 %v1297, 64
        %v1337 = vpop.permute.xlu0 %1336
        %vm1338 = vcmask 261120
        %v1340 = vsel %vm1338, %v1294, 0
        %v1343 = vsel %vm1338, %v1295, 0
        %v1346 = vsel %vm1338, %v1296, 0
        %v1349 = vsel %vm1338, %v1297, 0
        %v1352 = vsel %vm1338, %v1331, 0
        %v1355 = vsel %vm1338, %v1333, 0
        %v1358 = vsel %vm1338, %v1335, 0
        %v1361 = vsel %vm1338, %v1337, 0
        %1363 = vmatprep.subr.bf16.mxu0 0
        %1364 = vmatpush1.bf16.xpose.msra.mxu0 %v1352
        %1365 = vmatprep.subr.bf16.mxu0 0
        %1366 = vmatpush1.bf16.xpose.msra.mxu0 %v1355
        %1367 = vmatprep.subr.bf16.mxu0 0
        %1368 = vmatpush1.bf16.xpose.msra.mxu0 %v1358
        %1369 = vmatprep.subr.bf16.mxu0 0
        %1370 = vmatpush1.bf16.xpose.msra.mxu0 %v1361
        %1371 = vmatprep.subr.bf16.mxu0 0
        %1372 = vmatpush1.bf16.xpose.msra.mxu0 0
        %1373 = vmatprep.subr.bf16.mxu0 0
        %1374 = vmatpush1.bf16.xpose.msra.mxu0 0
        %1375 = vmatprep.subr.bf16.mxu0 0
        %1376 = vmatpush1.bf16.xpose.msra.mxu0 0
        %1377 = vmatprep.subr.bf16.mxu0 0
        %1378 = vmatpush1.bf16.xpose.msra.mxu0 0
        %1379 = vmatprep.subr.bf16.mxu0 0
        %1380 = vmatpush1.bf16.xpose.msra.mxu0 0
        %1381 = vmatprep.subr.bf16.mxu0 0
        %1382 = vmatpush1.bf16.xpose.msra.mxu0 0
        %1383 = vmatprep.subr.bf16.mxu0 0
        %1384 = vmatpush1.bf16.xpose.msra.mxu0 0
        %1385 = vmatprep.subr.bf16.mxu0 0
        %1386 = vmatpush1.bf16.xpose.msra.mxu0 0
        %1387 = vmatprep.subr.bf16.mxu0 0
        %1388 = vmatpush1.bf16.xpose.msra.mxu0 0
        %1389 = vmatprep.subr.bf16.mxu0 0
        %1390 = vmatpush1.bf16.xpose.msra.mxu0 0
        %1391 = vmatprep.subr.bf16.mxu0 0
        %1392 = vmatpush1.bf16.xpose.msra.mxu0 0
        %1393 = vmatprep.subr.bf16.mxu0 0
        %1394 = vmatpush1.bf16.xpose.msra.mxu0 0
        %1395 = vmatprep.mubr.bf16.mxu0 0
        %1396 = vmatmul.mubr.bf16.gmra.mrb[0].mxu0 %v1340
        %v1397 = vpop.f32.mrb[0].mxu0
        %v1398 = vadd.f32 0.0, %v1397
        %v1399 = vpop.f32.mrb[0].mxu0
        %v1400 = vpop.f32.mrb[0].mxu0
        %v1401 = vadd.f32 0.0, %v1400
        %v1402 = vpop.f32.mrb[0].mxu0
        %1403 = vmatprep.mubr.bf16.mxu0 0
        %1404 = vmatmul.mubr.bf16.gmra.mrb[0].mxu0 %v1343
        %v1405 = vpop.f32.mrb[0].mxu0
        %v1406 = vadd.f32 0.0, %v1405
        %v1407 = vpop.f32.mrb[0].mxu0
        %v1408 = vpop.f32.mrb[0].mxu0
        %v1409 = vadd.f32 0.0, %v1408
        %v1410 = vpop.f32.mrb[0].mxu0
        %1411 = vmatprep.mubr.bf16.mxu0 0
        %1412 = vmatmul.mubr.bf16.gmra.mrb[0].mxu0 %v1346
        %v1413 = vpop.f32.mrb[0].mxu0
        %v1414 = vadd.f32 0.0, %v1413
        %v1415 = vpop.f32.mrb[0].mxu0
        %v1416 = vpop.f32.mrb[0].mxu0
        %v1417 = vadd.f32 0.0, %v1416
        %v1418 = vpop.f32.mrb[0].mxu0
        %1419 = vmatprep.mubr.bf16.mxu0 0
        %1420 = vmatmul.mubr.bf16.gmra.mrb[0].mxu0 %v1349
        %v1421 = vpop.f32.mrb[0].mxu0
        %v1422 = vadd.f32 0.0, %v1421
        %v1423 = vpop.f32.mrb[0].mxu0
        %v1424 = vpop.f32.mrb[0].mxu0
        %v1425 = vadd.f32 0.0, %v1424
        %v1426 = vpop.f32.mrb[0].mxu0
        %1427 = vdwg.mxu0
        %1432 = vrot.lane.b32.xlu0 %v1298, 64
        %v1433 = vpop.permute.xlu0 %1432
        %1434 = vrot.lane.b32.xlu0 %v1299, 64
        %v1435 = vpop.permute.xlu0 %1434
        %1436 = vrot.lane.b32.xlu0 %v1300, 64
        %v1437 = vpop.permute.xlu0 %1436
        %1438 = vrot.lane.b32.xlu0 %v1301, 64
        %v1439 = vpop.permute.xlu0 %1438
        %v1441 = vsel %vm1338, %v1298, 0
        %v1444 = vsel %vm1338, %v1299, 0
        %v1447 = vsel %vm1338, %v1300, 0
        %v1450 = vsel %vm1338, %v1301, 0
        %v1453 = vsel %vm1338, %v1433, 0
        %v1456 = vsel %vm1338, %v1435, 0
        %v1459 = vsel %vm1338, %v1437, 0
        %v1462 = vsel %vm1338, %v1439, 0
        %1464 = vmatprep.subr.bf16.mxu0 0
        %1465 = vmatpush1.bf16.xpose.msra.mxu0 %v1453
        %1466 = vmatprep.subr.bf16.mxu0 0
        %1467 = vmatpush1.bf16.xpose.msra.mxu0 %v1456
        %1468 = vmatprep.subr.bf16.mxu0 0
        %1469 = vmatpush1.bf16.xpose.msra.mxu0 %v1459
        %1470 = vmatprep.subr.bf16.mxu0 0
        %1471 = vmatpush1.bf16.xpose.msra.mxu0 %v1462
        %1472 = vmatprep.subr.bf16.mxu0 0
        %1473 = vmatpush1.bf16.xpose.msra.mxu0 0
        %1474 = vmatprep.subr.bf16.mxu0 0
        %1475 = vmatpush1.bf16.xpose.msra.mxu0 0
        %1476 = vmatprep.subr.bf16.mxu0 0
        %1477 = vmatpush1.bf16.xpose.msra.mxu0 0
        %1478 = vmatprep.subr.bf16.mxu0 0
        %1479 = vmatpush1.bf16.xpose.msra.mxu0 0
        %1480 = vmatprep.subr.bf16.mxu0 0
        %1481 = vmatpush1.bf16.xpose.msra.mxu0 0
        %1482 = vmatprep.subr.bf16.mxu0 0
        %1483 = vmatpush1.bf16.xpose.msra.mxu0 0
        %1484 = vmatprep.subr.bf16.mxu0 0
        %1485 = vmatpush1.bf16.xpose.msra.mxu0 0
        %1486 = vmatprep.subr.bf16.mxu0 0
        %1487 = vmatpush1.bf16.xpose.msra.mxu0 0
        %1488 = vmatprep.subr.bf16.mxu0 0
        %1489 = vmatpush1.bf16.xpose.msra.mxu0 0
        %1490 = vmatprep.subr.bf16.mxu0 0
        %1491 = vmatpush1.bf16.xpose.msra.mxu0 0
        %1492 = vmatprep.subr.bf16.mxu0 0
        %1493 = vmatpush1.bf16.xpose.msra.mxu0 0
        %1494 = vmatprep.subr.bf16.mxu0 0
        %1495 = vmatpush1.bf16.xpose.msra.mxu0 0
        %1496 = vmatprep.mubr.bf16.mxu0 0
        %1497 = vmatmul.mubr.bf16.gmra.mrb[0].mxu0 %v1441
        %v1498 = vpop.f32.mrb[0].mxu0
        %v1499 = vadd.f32 0.0, %v1498
        %v1500 = vpop.f32.mrb[0].mxu0
        %v1501 = vpop.f32.mrb[0].mxu0
        %v1502 = vadd.f32 0.0, %v1501
        %v1503 = vpop.f32.mrb[0].mxu0
        %1504 = vmatprep.mubr.bf16.mxu0 0
        %1505 = vmatmul.mubr.bf16.gmra.mrb[0].mxu0 %v1444
        %v1506 = vpop.f32.mrb[0].mxu0
        %v1507 = vadd.f32 0.0, %v1506
        %v1508 = vpop.f32.mrb[0].mxu0
        %v1509 = vpop.f32.mrb[0].mxu0
        %v1510 = vadd.f32 0.0, %v1509
        %v1511 = vpop.f32.mrb[0].mxu0
        %1512 = vmatprep.mubr.bf16.mxu0 0
        %1513 = vmatmul.mubr.bf16.gmra.mrb[0].mxu0 %v1447
        %v1514 = vpop.f32.mrb[0].mxu0
        %v1515 = vadd.f32 0.0, %v1514
        %v1516 = vpop.f32.mrb[0].mxu0
        %v1517 = vpop.f32.mrb[0].mxu0
        %v1518 = vadd.f32 0.0, %v1517
        %v1519 = vpop.f32.mrb[0].mxu0
        %1520 = vmatprep.mubr.bf16.mxu0 0
        %1521 = vmatmul.mubr.bf16.gmra.mrb[0].mxu0 %v1450
        %v1522 = vpop.f32.mrb[0].mxu0
        %v1523 = vadd.f32 0.0, %v1522
        %v1524 = vpop.f32.mrb[0].mxu0
        %v1525 = vpop.f32.mrb[0].mxu0
        %v1526 = vadd.f32 0.0, %v1525
        %v1527 = vpop.f32.mrb[0].mxu0
        %1528 = vdwg.mxu0
        %1533 = vrot.lane.b32.xlu0 %v1302, 64
        %v1534 = vpop.permute.xlu0 %1533
        %1535 = vrot.lane.b32.xlu0 %v1303, 64
        %v1536 = vpop.permute.xlu0 %1535
        %1537 = vrot.lane.b32.xlu0 %v1304, 64
        %v1538 = vpop.permute.xlu0 %1537
        %1539 = vrot.lane.b32.xlu0 %v1305, 64
        %v1540 = vpop.permute.xlu0 %1539
        %v1542 = vsel %vm1338, %v1302, 0
        %v1545 = vsel %vm1338, %v1303, 0
        %v1548 = vsel %vm1338, %v1304, 0
        %v1551 = vsel %vm1338, %v1305, 0
        %v1554 = vsel %vm1338, %v1534, 0
        %v1557 = vsel %vm1338, %v1536, 0
        %v1560 = vsel %vm1338, %v1538, 0
        %v1563 = vsel %vm1338, %v1540, 0
        %1565 = vmatprep.subr.bf16.mxu0 0
        %1566 = vmatpush1.bf16.xpose.msra.mxu0 %v1554
        %1567 = vmatprep.subr.bf16.mxu0 0
        %1568 = vmatpush1.bf16.xpose.msra.mxu0 %v1557
        %1569 = vmatprep.subr.bf16.mxu0 0
        %1570 = vmatpush1.bf16.xpose.msra.mxu0 %v1560
        %1571 = vmatprep.subr.bf16.mxu0 0
        %1572 = vmatpush1.bf16.xpose.msra.mxu0 %v1563
        %1573 = vmatprep.subr.bf16.mxu0 0
        %1574 = vmatpush1.bf16.xpose.msra.mxu0 0
        %1575 = vmatprep.subr.bf16.mxu0 0
        %1576 = vmatpush1.bf16.xpose.msra.mxu0 0
        %1577 = vmatprep.subr.bf16.mxu0 0
        %1578 = vmatpush1.bf16.xpose.msra.mxu0 0
        %1579 = vmatprep.subr.bf16.mxu0 0
        %1580 = vmatpush1.bf16.xpose.msra.mxu0 0
        %1581 = vmatprep.subr.bf16.mxu0 0
        %1582 = vmatpush1.bf16.xpose.msra.mxu0 0
        %1583 = vmatprep.subr.bf16.mxu0 0
        %1584 = vmatpush1.bf16.xpose.msra.mxu0 0
        %1585 = vmatprep.subr.bf16.mxu0 0
        %1586 = vmatpush1.bf16.xpose.msra.mxu0 0
        %1587 = vmatprep.subr.bf16.mxu0 0
        %1588 = vmatpush1.bf16.xpose.msra.mxu0 0
        %1589 = vmatprep.subr.bf16.mxu0 0
        %1590 = vmatpush1.bf16.xpose.msra.mxu0 0
        %1591 = vmatprep.subr.bf16.mxu0 0
        %1592 = vmatpush1.bf16.xpose.msra.mxu0 0
        %1593 = vmatprep.subr.bf16.mxu0 0
        %1594 = vmatpush1.bf16.xpose.msra.mxu0 0
        %1595 = vmatprep.subr.bf16.mxu0 0
        %1596 = vmatpush1.bf16.xpose.msra.mxu0 0
        %1597 = vmatprep.mubr.bf16.mxu0 0
        %1598 = vmatmul.mubr.bf16.gmra.mrb[0].mxu0 %v1542
        %v1599 = vpop.f32.mrb[0].mxu0
        %v1600 = vadd.f32 0.0, %v1599
        %v1601 = vpop.f32.mrb[0].mxu0
        %v1602 = vpop.f32.mrb[0].mxu0
        %v1603 = vadd.f32 0.0, %v1602
        %v1604 = vpop.f32.mrb[0].mxu0
        %1605 = vmatprep.mubr.bf16.mxu0 0
        %1606 = vmatmul.mubr.bf16.gmra.mrb[0].mxu0 %v1545
        %v1607 = vpop.f32.mrb[0].mxu0
        %v1608 = vadd.f32 0.0, %v1607
        %v1609 = vpop.f32.mrb[0].mxu0
        %v1610 = vpop.f32.mrb[0].mxu0
        %v1611 = vadd.f32 0.0, %v1610
        %v1612 = vpop.f32.mrb[0].mxu0
        %1613 = vmatprep.mubr.bf16.mxu0 0
        %1614 = vmatmul.mubr.bf16.gmra.mrb[0].mxu0 %v1548
        %v1615 = vpop.f32.mrb[0].mxu0
        %v1616 = vadd.f32 0.0, %v1615
        %v1617 = vpop.f32.mrb[0].mxu0
        %v1618 = vpop.f32.mrb[0].mxu0
        %v1619 = vadd.f32 0.0, %v1618
        %v1620 = vpop.f32.mrb[0].mxu0
        %1621 = vmatprep.mubr.bf16.mxu0 0
        %1622 = vmatmul.mubr.bf16.gmra.mrb[0].mxu0 %v1551
        %v1623 = vpop.f32.mrb[0].mxu0
        %v1624 = vadd.f32 0.0, %v1623
        %v1625 = vpop.f32.mrb[0].mxu0
        %v1626 = vpop.f32.mrb[0].mxu0
        %v1627 = vadd.f32 0.0, %v1626
        %v1628 = vpop.f32.mrb[0].mxu0
        %1629 = vdwg.mxu0
        %1634 = vrot.lane.b32.xlu0 %v1306, 64
        %v1635 = vpop.permute.xlu0 %1634
        %1636 = vrot.lane.b32.xlu0 %v1307, 64
        %v1637 = vpop.permute.xlu0 %1636
        %1638 = vrot.lane.b32.xlu0 %v1308, 64
        %v1639 = vpop.permute.xlu0 %1638
        %1640 = vrot.lane.b32.xlu0 %v1309, 64
        %v1641 = vpop.permute.xlu0 %1640
        %v1643 = vsel %vm1338, %v1306, 0
        %v1646 = vsel %vm1338, %v1307, 0
        %v1649 = vsel %vm1338, %v1308, 0
        %v1652 = vsel %vm1338, %v1309, 0
        %v1655 = vsel %vm1338, %v1635, 0
        %v1658 = vsel %vm1338, %v1637, 0
        %v1661 = vsel %vm1338, %v1639, 0
        %v1664 = vsel %vm1338, %v1641, 0
        %1666 = vmatprep.subr.bf16.mxu0 0
        %1667 = vmatpush1.bf16.xpose.msra.mxu0 %v1655
        %1668 = vmatprep.subr.bf16.mxu0 0
        %1669 = vmatpush1.bf16.xpose.msra.mxu0 %v1658
        %1670 = vmatprep.subr.bf16.mxu0 0
        %1671 = vmatpush1.bf16.xpose.msra.mxu0 %v1661
        %1672 = vmatprep.subr.bf16.mxu0 0
        %1673 = vmatpush1.bf16.xpose.msra.mxu0 %v1664
        %1674 = vmatprep.subr.bf16.mxu0 0
        %1675 = vmatpush1.bf16.xpose.msra.mxu0 0
        %1676 = vmatprep.subr.bf16.mxu0 0
        %1677 = vmatpush1.bf16.xpose.msra.mxu0 0
        %1678 = vmatprep.subr.bf16.mxu0 0
        %1679 = vmatpush1.bf16.xpose.msra.mxu0 0
        %1680 = vmatprep.subr.bf16.mxu0 0
        %1681 = vmatpush1.bf16.xpose.msra.mxu0 0
        %1682 = vmatprep.subr.bf16.mxu0 0
        %1683 = vmatpush1.bf16.xpose.msra.mxu0 0
        %1684 = vmatprep.subr.bf16.mxu0 0
        %1685 = vmatpush1.bf16.xpose.msra.mxu0 0
        %1686 = vmatprep.subr.bf16.mxu0 0
        %1687 = vmatpush1.bf16.xpose.msra.mxu0 0
        %1688 = vmatprep.subr.bf16.mxu0 0
        %1689 = vmatpush1.bf16.xpose.msra.mxu0 0
        %1690 = vmatprep.subr.bf16.mxu0 0
        %1691 = vmatpush1.bf16.xpose.msra.mxu0 0
        %1692 = vmatprep.subr.bf16.mxu0 0
        %1693 = vmatpush1.bf16.xpose.msra.mxu0 0
        %1694 = vmatprep.subr.bf16.mxu0 0
        %1695 = vmatpush1.bf16.xpose.msra.mxu0 0
        %1696 = vmatprep.subr.bf16.mxu0 0
        %1697 = vmatpush1.bf16.xpose.msra.mxu0 0
        %1698 = vmatprep.mubr.bf16.mxu0 0
        %1699 = vmatmul.mubr.bf16.gmra.mrb[0].mxu0 %v1643
        %v1700 = vpop.f32.mrb[0].mxu0
        %v1701 = vadd.f32 0.0, %v1700
        %v1702 = vpop.f32.mrb[0].mxu0
        %v1703 = vpop.f32.mrb[0].mxu0
        %v1704 = vadd.f32 0.0, %v1703
        %v1705 = vpop.f32.mrb[0].mxu0
        %1706 = vmatprep.mubr.bf16.mxu0 0
        %1707 = vmatmul.mubr.bf16.gmra.mrb[0].mxu0 %v1646
        %v1708 = vpop.f32.mrb[0].mxu0
        %v1709 = vadd.f32 0.0, %v1708
        %v1710 = vpop.f32.mrb[0].mxu0
        %v1711 = vpop.f32.mrb[0].mxu0
        %v1712 = vadd.f32 0.0, %v1711
        %v1713 = vpop.f32.mrb[0].mxu0
        %1714 = vmatprep.mubr.bf16.mxu0 0
        %1715 = vmatmul.mubr.bf16.gmra.mrb[0].mxu0 %v1649
        %v1716 = vpop.f32.mrb[0].mxu0
        %v1717 = vadd.f32 0.0, %v1716
        %v1718 = vpop.f32.mrb[0].mxu0
        %v1719 = vpop.f32.mrb[0].mxu0
        %v1720 = vadd.f32 0.0, %v1719
        %v1721 = vpop.f32.mrb[0].mxu0
        %1722 = vmatprep.mubr.bf16.mxu0 0
        %1723 = vmatmul.mubr.bf16.gmra.mrb[0].mxu0 %v1652
        %v1724 = vpop.f32.mrb[0].mxu0
        %v1725 = vadd.f32 0.0, %v1724
        %v1726 = vpop.f32.mrb[0].mxu0
        %v1727 = vpop.f32.mrb[0].mxu0
        %v1728 = vadd.f32 0.0, %v1727
        %v1729 = vpop.f32.mrb[0].mxu0
        %1730 = vdwg.mxu0
        %v1731 = vsel %vm428, %v1398, -inf
        %1732 = vmax.xlane.f32.xlu0 %v1731
        %v1733 = vpop.xlane.xlu0 %1732
        %v1734 = vsel %vm428, %v1401, -inf
        %1735 = vmax.xlane.f32.xlu0 %v1734
        %v1736 = vpop.xlane.xlu0 %1735
        %v1737 = vsel %vm428, %v1406, -inf
        %1738 = vmax.xlane.f32.xlu0 %v1737
        %v1739 = vpop.xlane.xlu0 %1738
        %v1740 = vsel %vm428, %v1409, -inf
        %1741 = vmax.xlane.f32.xlu0 %v1740
        %v1742 = vpop.xlane.xlu0 %1741
        %v1743 = vsel %vm428, %v1414, -inf
        %1744 = vmax.xlane.f32.xlu0 %v1743
        %v1745 = vpop.xlane.xlu0 %1744
        %v1746 = vsel %vm428, %v1417, -inf
        %1747 = vmax.xlane.f32.xlu0 %v1746
        %v1748 = vpop.xlane.xlu0 %1747
        %v1749 = vsel %vm428, %v1422, -inf
        %1750 = vmax.xlane.f32.xlu0 %v1749
        %v1751 = vpop.xlane.xlu0 %1750
        %v1752 = vsel %vm428, %v1425, -inf
        %1753 = vmax.xlane.f32.xlu0 %v1752
        %v1754 = vpop.xlane.xlu0 %1753
        %v1755 = vsel %vm428, %v1499, -inf
        %1756 = vmax.xlane.f32.xlu0 %v1755
        %v1757 = vpop.xlane.xlu0 %1756
        %v1758 = vsel %vm428, %v1502, -inf
        %1759 = vmax.xlane.f32.xlu0 %v1758
        %v1760 = vpop.xlane.xlu0 %1759
        %v1761 = vsel %vm428, %v1507, -inf
        %1762 = vmax.xlane.f32.xlu0 %v1761
        %v1763 = vpop.xlane.xlu0 %1762
        %v1764 = vsel %vm428, %v1510, -inf
        %1765 = vmax.xlane.f32.xlu0 %v1764
        %v1766 = vpop.xlane.xlu0 %1765
        %v1767 = vsel %vm428, %v1515, -inf
        %1768 = vmax.xlane.f32.xlu0 %v1767
        %v1769 = vpop.xlane.xlu0 %1768
        %v1770 = vsel %vm428, %v1518, -inf
        %1771 = vmax.xlane.f32.xlu0 %v1770
        %v1772 = vpop.xlane.xlu0 %1771
        %v1773 = vsel %vm428, %v1523, -inf
        %1774 = vmax.xlane.f32.xlu0 %v1773
        %v1775 = vpop.xlane.xlu0 %1774
        %v1776 = vsel %vm428, %v1526, -inf
        %1777 = vmax.xlane.f32.xlu0 %v1776
        %v1778 = vpop.xlane.xlu0 %1777
        %v1779 = vsel %vm428, %v1600, -inf
        %1780 = vmax.xlane.f32.xlu0 %v1779
        %v1781 = vpop.xlane.xlu0 %1780
        %v1782 = vsel %vm428, %v1603, -inf
        %1783 = vmax.xlane.f32.xlu0 %v1782
        %v1784 = vpop.xlane.xlu0 %1783
        %v1785 = vsel %vm428, %v1608, -inf
        %1786 = vmax.xlane.f32.xlu0 %v1785
        %v1787 = vpop.xlane.xlu0 %1786
        %v1788 = vsel %vm428, %v1611, -inf
        %1789 = vmax.xlane.f32.xlu0 %v1788
        %v1790 = vpop.xlane.xlu0 %1789
        %v1791 = vsel %vm428, %v1616, -inf
        %1792 = vmax.xlane.f32.xlu0 %v1791
        %v1793 = vpop.xlane.xlu0 %1792
        %v1794 = vsel %vm428, %v1619, -inf
        %1795 = vmax.xlane.f32.xlu0 %v1794
        %v1796 = vpop.xlane.xlu0 %1795
        %v1797 = vsel %vm428, %v1624, -inf
        %1798 = vmax.xlane.f32.xlu0 %v1797
        %v1799 = vpop.xlane.xlu0 %1798
        %v1800 = vsel %vm428, %v1627, -inf
        %1801 = vmax.xlane.f32.xlu0 %v1800
        %v1802 = vpop.xlane.xlu0 %1801
        %v1803 = vsel %vm428, %v1701, -inf
        %1804 = vmax.xlane.f32.xlu0 %v1803
        %v1805 = vpop.xlane.xlu0 %1804
        %v1806 = vsel %vm428, %v1704, -inf
        %1807 = vmax.xlane.f32.xlu0 %v1806
        %v1808 = vpop.xlane.xlu0 %1807
        %v1809 = vsel %vm428, %v1709, -inf
        %1810 = vmax.xlane.f32.xlu0 %v1809
        %v1811 = vpop.xlane.xlu0 %1810
        %v1812 = vsel %vm428, %v1712, -inf
        %1813 = vmax.xlane.f32.xlu0 %v1812
        %v1814 = vpop.xlane.xlu0 %1813
        %v1815 = vsel %vm428, %v1717, -inf
        %1816 = vmax.xlane.f32.xlu0 %v1815
        %v1817 = vpop.xlane.xlu0 %1816
        %v1818 = vsel %vm428, %v1720, -inf
        %1819 = vmax.xlane.f32.xlu0 %v1818
        %v1820 = vpop.xlane.xlu0 %1819
        %v1821 = vsel %vm428, %v1725, -inf
        %1822 = vmax.xlane.f32.xlu0 %v1821
        %v1823 = vpop.xlane.xlu0 %1822
        %v1824 = vsel %vm428, %v1728, -inf
        %1825 = vmax.xlane.f32.xlu0 %v1824
        %v1826 = vpop.xlane.xlu0 %1825
        %v1827 = vsub.f32 %v1398, %v1733
        %v1828 = vsub.f32 %v1401, %v1736
        %v1829 = vsub.f32 %v1406, %v1739
        %v1830 = vsub.f32 %v1409, %v1742
        %v1831 = vsub.f32 %v1414, %v1745
        %v1832 = vsub.f32 %v1417, %v1748
        %v1833 = vsub.f32 %v1422, %v1751
        %v1834 = vsub.f32 %v1425, %v1754
        %v1835 = vsub.f32 %v1499, %v1757
        %v1836 = vsub.f32 %v1502, %v1760
        %v1837 = vsub.f32 %v1507, %v1763
        %v1838 = vsub.f32 %v1510, %v1766
        %v1839 = vsub.f32 %v1515, %v1769
        %v1840 = vsub.f32 %v1518, %v1772
        %v1841 = vsub.f32 %v1523, %v1775
        %v1842 = vsub.f32 %v1526, %v1778
        %v1843 = vsub.f32 %v1600, %v1781
        %v1844 = vsub.f32 %v1603, %v1784
        %v1845 = vsub.f32 %v1608, %v1787
        %v1846 = vsub.f32 %v1611, %v1790
        %v1847 = vsub.f32 %v1616, %v1793
        %v1848 = vsub.f32 %v1619, %v1796
        %v1849 = vsub.f32 %v1624, %v1799
        %v1850 = vsub.f32 %v1627, %v1802
        %v1851 = vsub.f32 %v1701, %v1805
        %v1852 = vsub.f32 %v1704, %v1808
        %v1853 = vsub.f32 %v1709, %v1811
        %v1854 = vsub.f32 %v1712, %v1814
        %v1855 = vsub.f32 %v1717, %v1817
        %v1856 = vsub.f32 %v1720, %v1820
        %v1857 = vsub.f32 %v1725, %v1823
        %v1858 = vsub.f32 %v1728, %v1826
        %v1859 = vmul.f32 %v1827, 1.442695
        %v1860 = vpow.pop %v1859
        %v1861 = vmul.f32 %v1828, 1.442695
        %v1862 = vpow.pop %v1861
        %v1863 = vmul.f32 %v1829, 1.442695
        %v1864 = vpow.pop %v1863
        %v1865 = vmul.f32 %v1830, 1.442695
        %v1866 = vpow.pop %v1865
        %v1867 = vmul.f32 %v1831, 1.442695
        %v1868 = vpow.pop %v1867
        %v1869 = vmul.f32 %v1832, 1.442695
        %v1870 = vpow.pop %v1869
        %v1871 = vmul.f32 %v1833, 1.442695
        %v1872 = vpow.pop %v1871
        %v1873 = vmul.f32 %v1834, 1.442695
        %v1874 = vpow.pop %v1873
        %v1875 = vmul.f32 %v1835, 1.442695
        %v1876 = vpow.pop %v1875
        %v1877 = vmul.f32 %v1836, 1.442695
        %v1878 = vpow.pop %v1877
        %v1879 = vmul.f32 %v1837, 1.442695
        %v1880 = vpow.pop %v1879
        %v1881 = vmul.f32 %v1838, 1.442695
        %v1882 = vpow.pop %v1881
        %v1883 = vmul.f32 %v1839, 1.442695
        %v1884 = vpow.pop %v1883
        %v1885 = vmul.f32 %v1840, 1.442695
        %v1886 = vpow.pop %v1885
        %v1887 = vmul.f32 %v1841, 1.442695
        %v1888 = vpow.pop %v1887
        %v1889 = vmul.f32 %v1842, 1.442695
        %v1890 = vpow.pop %v1889
        %v1891 = vmul.f32 %v1843, 1.442695
        %v1892 = vpow.pop %v1891
        %v1893 = vmul.f32 %v1844, 1.442695
        %v1894 = vpow.pop %v1893
        %v1895 = vmul.f32 %v1845, 1.442695
        %v1896 = vpow.pop %v1895
        %v1897 = vmul.f32 %v1846, 1.442695
        %v1898 = vpow.pop %v1897
        %v1899 = vmul.f32 %v1847, 1.442695
        %v1900 = vpow.pop %v1899
        %v1901 = vmul.f32 %v1848, 1.442695
        %v1902 = vpow.pop %v1901
        %v1903 = vmul.f32 %v1849, 1.442695
        %v1904 = vpow.pop %v1903
        %v1905 = vmul.f32 %v1850, 1.442695
        %v1906 = vpow.pop %v1905
        %v1907 = vmul.f32 %v1851, 1.442695
        %v1908 = vpow.pop %v1907
        %v1909 = vmul.f32 %v1852, 1.442695
        %v1910 = vpow.pop %v1909
        %v1911 = vmul.f32 %v1853, 1.442695
        %v1912 = vpow.pop %v1911
        %v1913 = vmul.f32 %v1854, 1.442695
        %v1914 = vpow.pop %v1913
        %v1915 = vmul.f32 %v1855, 1.442695
        %v1916 = vpow.pop %v1915
        %v1917 = vmul.f32 %v1856, 1.442695
        %v1918 = vpow.pop %v1917
        %v1919 = vmul.f32 %v1857, 1.442695
        %v1920 = vpow.pop %v1919
        %v1921 = vmul.f32 %v1858, 1.442695
        %v1922 = vpow.pop %v1921
        %v1923 = vsel %vm428, %v1860, 0.0
        %1924 = vadd.xlane.f32.xlu0 %v1923
        %v1925 = vpop.xlane.xlu0 %1924
        %v1926 = vsel %vm428, %v1862, 0.0
        %1927 = vadd.xlane.f32.xlu0 %v1926
        %v1928 = vpop.xlane.xlu0 %1927
        %v1929 = vsel %vm428, %v1864, 0.0
        %1930 = vadd.xlane.f32.xlu0 %v1929
        %v1931 = vpop.xlane.xlu0 %1930
        %v1932 = vsel %vm428, %v1866, 0.0
        %1933 = vadd.xlane.f32.xlu0 %v1932
        %v1934 = vpop.xlane.xlu0 %1933
        %v1935 = vsel %vm428, %v1868, 0.0
        %1936 = vadd.xlane.f32.xlu0 %v1935
        %v1937 = vpop.xlane.xlu0 %1936
        %v1938 = vsel %vm428, %v1870, 0.0
        %1939 = vadd.xlane.f32.xlu0 %v1938
        %v1940 = vpop.xlane.xlu0 %1939
        %v1941 = vsel %vm428, %v1872, 0.0
        %1942 = vadd.xlane.f32.xlu0 %v1941
        %v1943 = vpop.xlane.xlu0 %1942
        %v1944 = vsel %vm428, %v1874, 0.0
        %1945 = vadd.xlane.f32.xlu0 %v1944
        %v1946 = vpop.xlane.xlu0 %1945
        %v1947 = vsel %vm428, %v1876, 0.0
        %1948 = vadd.xlane.f32.xlu0 %v1947
        %v1949 = vpop.xlane.xlu0 %1948
        %v1950 = vsel %vm428, %v1878, 0.0
        %1951 = vadd.xlane.f32.xlu0 %v1950
        %v1952 = vpop.xlane.xlu0 %1951
        %v1953 = vsel %vm428, %v1880, 0.0
        %1954 = vadd.xlane.f32.xlu0 %v1953
        %v1955 = vpop.xlane.xlu0 %1954
        %v1956 = vsel %vm428, %v1882, 0.0
        %1957 = vadd.xlane.f32.xlu0 %v1956
        %v1958 = vpop.xlane.xlu0 %1957
        %v1959 = vsel %vm428, %v1884, 0.0
        %1960 = vadd.xlane.f32.xlu0 %v1959
        %v1961 = vpop.xlane.xlu0 %1960
        %v1962 = vsel %vm428, %v1886, 0.0
        %1963 = vadd.xlane.f32.xlu0 %v1962
        %v1964 = vpop.xlane.xlu0 %1963
        %v1965 = vsel %vm428, %v1888, 0.0
        %1966 = vadd.xlane.f32.xlu0 %v1965
        %v1967 = vpop.xlane.xlu0 %1966
        %v1968 = vsel %vm428, %v1890, 0.0
        %1969 = vadd.xlane.f32.xlu0 %v1968
        %v1970 = vpop.xlane.xlu0 %1969
        %v1971 = vsel %vm428, %v1892, 0.0
        %1972 = vadd.xlane.f32.xlu0 %v1971
        %v1973 = vpop.xlane.xlu0 %1972
        %v1974 = vsel %vm428, %v1894, 0.0
        %1975 = vadd.xlane.f32.xlu0 %v1974
        %v1976 = vpop.xlane.xlu0 %1975
        %v1977 = vsel %vm428, %v1896, 0.0
        %1978 = vadd.xlane.f32.xlu0 %v1977
        %v1979 = vpop.xlane.xlu0 %1978
        %v1980 = vsel %vm428, %v1898, 0.0
        %1981 = vadd.xlane.f32.xlu0 %v1980
        %v1982 = vpop.xlane.xlu0 %1981
        %v1983 = vsel %vm428, %v1900, 0.0
        %1984 = vadd.xlane.f32.xlu0 %v1983
        %v1985 = vpop.xlane.xlu0 %1984
        %v1986 = vsel %vm428, %v1902, 0.0
        %1987 = vadd.xlane.f32.xlu0 %v1986
        %v1988 = vpop.xlane.xlu0 %1987
        %v1989 = vsel %vm428, %v1904, 0.0
        %1990 = vadd.xlane.f32.xlu0 %v1989
        %v1991 = vpop.xlane.xlu0 %1990
        %v1992 = vsel %vm428, %v1906, 0.0
        %1993 = vadd.xlane.f32.xlu0 %v1992
        %v1994 = vpop.xlane.xlu0 %1993
        %v1995 = vsel %vm428, %v1908, 0.0
        %1996 = vadd.xlane.f32.xlu0 %v1995
        %v1997 = vpop.xlane.xlu0 %1996
        %v1998 = vsel %vm428, %v1910, 0.0
        %1999 = vadd.xlane.f32.xlu0 %v1998
        %v2000 = vpop.xlane.xlu0 %1999
        %v2001 = vsel %vm428, %v1912, 0.0
        %2002 = vadd.xlane.f32.xlu0 %v2001
        %v2003 = vpop.xlane.xlu0 %2002
        %v2004 = vsel %vm428, %v1914, 0.0
        %2005 = vadd.xlane.f32.xlu0 %v2004
        %v2006 = vpop.xlane.xlu0 %2005
        %v2007 = vsel %vm428, %v1916, 0.0
        %2008 = vadd.xlane.f32.xlu0 %v2007
        %v2009 = vpop.xlane.xlu0 %2008
        %v2010 = vsel %vm428, %v1918, 0.0
        %2011 = vadd.xlane.f32.xlu0 %v2010
        %v2012 = vpop.xlane.xlu0 %2011
        %v2013 = vsel %vm428, %v1920, 0.0
        %2014 = vadd.xlane.f32.xlu0 %v2013
        %v2015 = vpop.xlane.xlu0 %2014
        %v2016 = vsel %vm428, %v1922, 0.0
        %2017 = vadd.xlane.f32.xlu0 %v2016
        %v2018 = vpop.xlane.xlu0 %2017
        %v2019 = vrcp.pop %v1925
        %v2020 = vrcp.pop %v1928
        %v2021 = vrcp.pop %v1931
        %v2022 = vrcp.pop %v1934
        %v2023 = vrcp.pop %v1937
        %v2024 = vrcp.pop %v1940
        %v2025 = vrcp.pop %v1943
        %v2026 = vrcp.pop %v1946
        %v2027 = vrcp.pop %v1949
        %v2028 = vrcp.pop %v1952
        %v2029 = vrcp.pop %v1955
        %v2030 = vrcp.pop %v1958
        %v2031 = vrcp.pop %v1961
        %v2032 = vrcp.pop %v1964
        %v2033 = vrcp.pop %v1967
        %v2034 = vrcp.pop %v1970
        %v2035 = vrcp.pop %v1973
        %v2036 = vrcp.pop %v1976
        %v2037 = vrcp.pop %v1979
        %v2038 = vrcp.pop %v1982
        %v2039 = vrcp.pop %v1985
        %v2040 = vrcp.pop %v1988
        %v2041 = vrcp.pop %v1991
        %v2042 = vrcp.pop %v1994
        %v2043 = vrcp.pop %v1997
        %v2044 = vrcp.pop %v2000
        %v2045 = vrcp.pop %v2003
        %v2046 = vrcp.pop %v2006
        %v2047 = vrcp.pop %v2009
        %v2048 = vrcp.pop %v2012
        %v2049 = vrcp.pop %v2015
        %v2050 = vrcp.pop %v2018
        %v2051 = vmul.f32 %v1860, %v2019
        %v2052 = vmul.f32 %v1862, %v2020
        %v2053 = vmul.f32 %v1864, %v2021
        %v2054 = vmul.f32 %v1866, %v2022
        %v2055 = vmul.f32 %v1868, %v2023
        %v2056 = vmul.f32 %v1870, %v2024
        %v2057 = vmul.f32 %v1872, %v2025
        %v2058 = vmul.f32 %v1874, %v2026
        %v2059 = vmul.f32 %v1876, %v2027
        %v2060 = vmul.f32 %v1878, %v2028
        %v2061 = vmul.f32 %v1880, %v2029
        %v2062 = vmul.f32 %v1882, %v2030
        %v2063 = vmul.f32 %v1884, %v2031
        %v2064 = vmul.f32 %v1886, %v2032
        %v2065 = vmul.f32 %v1888, %v2033
        %v2066 = vmul.f32 %v1890, %v2034
        %v2067 = vmul.f32 %v1892, %v2035
        %v2068 = vmul.f32 %v1894, %v2036
        %v2069 = vmul.f32 %v1896, %v2037
        %v2070 = vmul.f32 %v1898, %v2038
        %v2071 = vmul.f32 %v1900, %v2039
        %v2072 = vmul.f32 %v1902, %v2040
        %v2073 = vmul.f32 %v1904, %v2041
        %v2074 = vmul.f32 %v1906, %v2042
        %v2075 = vmul.f32 %v1908, %v2043
        %v2076 = vmul.f32 %v1910, %v2044
        %v2077 = vmul.f32 %v1912, %v2045
        %v2078 = vmul.f32 %v1914, %v2046
        %v2079 = vmul.f32 %v1916, %v2047
        %v2080 = vmul.f32 %v1918, %v2048
        %v2081 = vmul.f32 %v1920, %v2049
        %v2082 = vmul.f32 %v1922, %v2050
        %v2083 = vpack.c.bf16 %v2052, %v2051
        %v2084 = vpack.c.bf16 %v2054, %v2053
        %v2085 = vpack.c.bf16 %v2056, %v2055
        %v2086 = vpack.c.bf16 %v2058, %v2057
        %v2087 = vpack.c.bf16 %v2060, %v2059
        %v2088 = vpack.c.bf16 %v2062, %v2061
        %v2089 = vpack.c.bf16 %v2064, %v2063
        %v2090 = vpack.c.bf16 %v2066, %v2065
        %v2091 = vpack.c.bf16 %v2068, %v2067
        %v2092 = vpack.c.bf16 %v2070, %v2069
        %v2093 = vpack.c.bf16 %v2072, %v2071
        %v2094 = vpack.c.bf16 %v2074, %v2073
        %v2095 = vpack.c.bf16 %v2076, %v2075
        %v2096 = vpack.c.bf16 %v2078, %v2077
        %v2097 = vpack.c.bf16 %v2080, %v2079
        %v2098 = vpack.c.bf16 %v2082, %v2081
        %v2100 = vsel %vm428, %v2083, 0
        %v2103 = vsel %vm428, %v2084, 0
        %v2106 = vsel %vm428, %v2085, 0
        %v2109 = vsel %vm428, %v2086, 0
        %2111 = vmatprep.subr.bf16.mxu0 0
        %2112 = vmatpush1.bf16.msra.mxu0 %v1310
        %2113 = vmatprep.subr.bf16.mxu0 0
        %2114 = vmatpush1.bf16.msra.mxu0 %v1311
        %2115 = vmatprep.subr.bf16.mxu0 0
        %2116 = vmatpush1.bf16.msra.mxu0 %v1312
        %2117 = vmatprep.subr.bf16.mxu0 0
        %2118 = vmatpush1.bf16.msra.mxu0 %v1313
        %2119 = vmatprep.subr.bf16.mxu0 0
        %2120 = vmatpush1.bf16.msra.mxu0 0
        %2121 = vmatprep.subr.bf16.mxu0 0
        %2122 = vmatpush1.bf16.msra.mxu0 0
        %2123 = vmatprep.subr.bf16.mxu0 0
        %2124 = vmatpush1.bf16.msra.mxu0 0
        %2125 = vmatprep.subr.bf16.mxu0 0
        %2126 = vmatpush1.bf16.msra.mxu0 0
        %2127 = vmatprep.subr.bf16.mxu0 0
        %2128 = vmatpush1.bf16.msra.mxu0 0
        %2129 = vmatprep.subr.bf16.mxu0 0
        %2130 = vmatpush1.bf16.msra.mxu0 0
        %2131 = vmatprep.subr.bf16.mxu0 0
        %2132 = vmatpush1.bf16.msra.mxu0 0
        %2133 = vmatprep.subr.bf16.mxu0 0
        %2134 = vmatpush1.bf16.msra.mxu0 0
        %2135 = vmatprep.subr.bf16.mxu0 0
        %2136 = vmatpush1.bf16.msra.mxu0 0
        %2137 = vmatprep.subr.bf16.mxu0 0
        %2138 = vmatpush1.bf16.msra.mxu0 0
        %2139 = vmatprep.subr.bf16.mxu0 0
        %2140 = vmatpush1.bf16.msra.mxu0 0
        %2141 = vmatprep.subr.bf16.mxu0 0
        %2142 = vmatpush1.bf16.msra.mxu0 0
        %2143 = vmatprep.mubr.bf16.mxu0 0
        %2144 = vmatmul.mubr.bf16.gmra.mrb[0].mxu0 %v2100
        %v2145 = vpop.f32.mrb[0].mxu0
        %v2146 = vadd.f32 0.0, %v2145
        %v2147 = vpop.f32.mrb[0].mxu0
        %v2148 = vpop.f32.mrb[0].mxu0
        %v2149 = vadd.f32 0.0, %v2148
        %v2150 = vpop.f32.mrb[0].mxu0
        %2151 = vmatprep.mubr.bf16.mxu0 0
        %2152 = vmatmul.mubr.bf16.gmra.mrb[0].mxu0 %v2103
        %v2153 = vpop.f32.mrb[0].mxu0
        %v2154 = vadd.f32 0.0, %v2153
        %v2155 = vpop.f32.mrb[0].mxu0
        %v2156 = vpop.f32.mrb[0].mxu0
        %v2157 = vadd.f32 0.0, %v2156
        %v2158 = vpop.f32.mrb[0].mxu0
        %2159 = vmatprep.mubr.bf16.mxu0 0
        %2160 = vmatmul.mubr.bf16.gmra.mrb[0].mxu0 %v2106
        %v2161 = vpop.f32.mrb[0].mxu0
        %v2162 = vadd.f32 0.0, %v2161
        %v2163 = vpop.f32.mrb[0].mxu0
        %v2164 = vpop.f32.mrb[0].mxu0
        %v2165 = vadd.f32 0.0, %v2164
        %v2166 = vpop.f32.mrb[0].mxu0
        %2167 = vmatprep.mubr.bf16.mxu0 0
        %2168 = vmatmul.mubr.bf16.gmra.mrb[0].mxu0 %v2109
        %v2169 = vpop.f32.mrb[0].mxu0
        %v2170 = vadd.f32 0.0, %v2169
        %v2171 = vpop.f32.mrb[0].mxu0
        %v2172 = vpop.f32.mrb[0].mxu0
        %v2173 = vadd.f32 0.0, %v2172
        %v2174 = vpop.f32.mrb[0].mxu0
        %2175 = vdwg.mxu0
        %v2177 = vsel %vm428, %v2087, 0
        %v2180 = vsel %vm428, %v2088, 0
        %v2183 = vsel %vm428, %v2089, 0
        %v2186 = vsel %vm428, %v2090, 0
        %2188 = vmatprep.subr.bf16.mxu0 0
        %2189 = vmatpush1.bf16.msra.mxu0 %v1314
        %2190 = vmatprep.subr.bf16.mxu0 0
        %2191 = vmatpush1.bf16.msra.mxu0 %v1315
        %2192 = vmatprep.subr.bf16.mxu0 0
        %2193 = vmatpush1.bf16.msra.mxu0 %v1316
        %2194 = vmatprep.subr.bf16.mxu0 0
        %2195 = vmatpush1.bf16.msra.mxu0 %v1317
        %2196 = vmatprep.subr.bf16.mxu0 0
        %2197 = vmatpush1.bf16.msra.mxu0 0
        %2198 = vmatprep.subr.bf16.mxu0 0
        %2199 = vmatpush1.bf16.msra.mxu0 0
        %2200 = vmatprep.subr.bf16.mxu0 0
        %2201 = vmatpush1.bf16.msra.mxu0 0
        %2202 = vmatprep.subr.bf16.mxu0 0
        %2203 = vmatpush1.bf16.msra.mxu0 0
        %2204 = vmatprep.subr.bf16.mxu0 0
        %2205 = vmatpush1.bf16.msra.mxu0 0
        %2206 = vmatprep.subr.bf16.mxu0 0
        %2207 = vmatpush1.bf16.msra.mxu0 0
        %2208 = vmatprep.subr.bf16.mxu0 0
        %2209 = vmatpush1.bf16.msra.mxu0 0
        %2210 = vmatprep.subr.bf16.mxu0 0
        %2211 = vmatpush1.bf16.msra.mxu0 0
        %2212 = vmatprep.subr.bf16.mxu0 0
        %2213 = vmatpush1.bf16.msra.mxu0 0
        %2214 = vmatprep.subr.bf16.mxu0 0
        %2215 = vmatpush1.bf16.msra.mxu0 0
        %2216 = vmatprep.subr.bf16.mxu0 0
        %2217 = vmatpush1.bf16.msra.mxu0 0
        %2218 = vmatprep.subr.bf16.mxu0 0
        %2219 = vmatpush1.bf16.msra.mxu0 0
        %2220 = vmatprep.mubr.bf16.mxu0 0
        %2221 = vmatmul.mubr.bf16.gmra.mrb[0].mxu0 %v2177
        %v2222 = vpop.f32.mrb[0].mxu0
        %v2223 = vadd.f32 0.0, %v2222
        %v2224 = vpop.f32.mrb[0].mxu0
        %v2225 = vpop.f32.mrb[0].mxu0
        %v2226 = vadd.f32 0.0, %v2225
        %v2227 = vpop.f32.mrb[0].mxu0
        %2228 = vmatprep.mubr.bf16.mxu0 0
        %2229 = vmatmul.mubr.bf16.gmra.mrb[0].mxu0 %v2180
        %v2230 = vpop.f32.mrb[0].mxu0
        %v2231 = vadd.f32 0.0, %v2230
        %v2232 = vpop.f32.mrb[0].mxu0
        %v2233 = vpop.f32.mrb[0].mxu0
        %v2234 = vadd.f32 0.0, %v2233
        %v2235 = vpop.f32.mrb[0].mxu0
        %2236 = vmatprep.mubr.bf16.mxu0 0
        %2237 = vmatmul.mubr.bf16.gmra.mrb[0].mxu0 %v2183
        %v2238 = vpop.f32.mrb[0].mxu0
        %v2239 = vadd.f32 0.0, %v2238
        %v2240 = vpop.f32.mrb[0].mxu0
        %v2241 = vpop.f32.mrb[0].mxu0
        %v2242 = vadd.f32 0.0, %v2241
        %v2243 = vpop.f32.mrb[0].mxu0
        %2244 = vmatprep.mubr.bf16.mxu0 0
        %2245 = vmatmul.mubr.bf16.gmra.mrb[0].mxu0 %v2186
        %v2246 = vpop.f32.mrb[0].mxu0
        %v2247 = vadd.f32 0.0, %v2246
        %v2248 = vpop.f32.mrb[0].mxu0
        %v2249 = vpop.f32.mrb[0].mxu0
        %v2250 = vadd.f32 0.0, %v2249
        %v2251 = vpop.f32.mrb[0].mxu0
        %2252 = vdwg.mxu0
        %v2254 = vsel %vm428, %v2091, 0
        %v2257 = vsel %vm428, %v2092, 0
        %v2260 = vsel %vm428, %v2093, 0
        %v2263 = vsel %vm428, %v2094, 0
        %2265 = vmatprep.subr.bf16.mxu0 0
        %2266 = vmatpush1.bf16.msra.mxu0 %v1318
        %2267 = vmatprep.subr.bf16.mxu0 0
        %2268 = vmatpush1.bf16.msra.mxu0 %v1319
        %2269 = vmatprep.subr.bf16.mxu0 0
        %2270 = vmatpush1.bf16.msra.mxu0 %v1320
        %2271 = vmatprep.subr.bf16.mxu0 0
        %2272 = vmatpush1.bf16.msra.mxu0 %v1321
        %2273 = vmatprep.subr.bf16.mxu0 0
        %2274 = vmatpush1.bf16.msra.mxu0 0
        %2275 = vmatprep.subr.bf16.mxu0 0
        %2276 = vmatpush1.bf16.msra.mxu0 0
        %2277 = vmatprep.subr.bf16.mxu0 0
        %2278 = vmatpush1.bf16.msra.mxu0 0
        %2279 = vmatprep.subr.bf16.mxu0 0
        %2280 = vmatpush1.bf16.msra.mxu0 0
        %2281 = vmatprep.subr.bf16.mxu0 0
        %2282 = vmatpush1.bf16.msra.mxu0 0
        %2283 = vmatprep.subr.bf16.mxu0 0
        %2284 = vmatpush1.bf16.msra.mxu0 0
        %2285 = vmatprep.subr.bf16.mxu0 0
        %2286 = vmatpush1.bf16.msra.mxu0 0
        %2287 = vmatprep.subr.bf16.mxu0 0
        %2288 = vmatpush1.bf16.msra.mxu0 0
        %2289 = vmatprep.subr.bf16.mxu0 0
        %2290 = vmatpush1.bf16.msra.mxu0 0
        %2291 = vmatprep.subr.bf16.mxu0 0
        %2292 = vmatpush1.bf16.msra.mxu0 0
        %2293 = vmatprep.subr.bf16.mxu0 0
        %2294 = vmatpush1.bf16.msra.mxu0 0
        %2295 = vmatprep.subr.bf16.mxu0 0
        %2296 = vmatpush1.bf16.msra.mxu0 0
        %2297 = vmatprep.mubr.bf16.mxu0 0
        %2298 = vmatmul.mubr.bf16.gmra.mrb[0].mxu0 %v2254
        %v2299 = vpop.f32.mrb[0].mxu0
        %v2300 = vadd.f32 0.0, %v2299
        %v2301 = vpop.f32.mrb[0].mxu0
        %v2302 = vpop.f32.mrb[0].mxu0
        %v2303 = vadd.f32 0.0, %v2302
        %v2304 = vpop.f32.mrb[0].mxu0
        %2305 = vmatprep.mubr.bf16.mxu0 0
        %2306 = vmatmul.mubr.bf16.gmra.mrb[0].mxu0 %v2257
        %v2307 = vpop.f32.mrb[0].mxu0
        %v2308 = vadd.f32 0.0, %v2307
        %v2309 = vpop.f32.mrb[0].mxu0
        %v2310 = vpop.f32.mrb[0].mxu0
        %v2311 = vadd.f32 0.0, %v2310
        %v2312 = vpop.f32.mrb[0].mxu0
        %2313 = vmatprep.mubr.bf16.mxu0 0
        %2314 = vmatmul.mubr.bf16.gmra.mrb[0].mxu0 %v2260
        %v2315 = vpop.f32.mrb[0].mxu0
        %v2316 = vadd.f32 0.0, %v2315
        %v2317 = vpop.f32.mrb[0].mxu0
        %v2318 = vpop.f32.mrb[0].mxu0
        %v2319 = vadd.f32 0.0, %v2318
        %v2320 = vpop.f32.mrb[0].mxu0
        %2321 = vmatprep.mubr.bf16.mxu0 0
        %2322 = vmatmul.mubr.bf16.gmra.mrb[0].mxu0 %v2263
        %v2323 = vpop.f32.mrb[0].mxu0
        %v2324 = vadd.f32 0.0, %v2323
        %v2325 = vpop.f32.mrb[0].mxu0
        %v2326 = vpop.f32.mrb[0].mxu0
        %v2327 = vadd.f32 0.0, %v2326
        %v2328 = vpop.f32.mrb[0].mxu0
        %2329 = vdwg.mxu0
        %v2331 = vsel %vm428, %v2095, 0
        %v2334 = vsel %vm428, %v2096, 0
        %v2337 = vsel %vm428, %v2097, 0
        %v2340 = vsel %vm428, %v2098, 0
        %2342 = vmatprep.subr.bf16.mxu0 0
        %2343 = vmatpush1.bf16.msra.mxu0 %v1322
        %2344 = vmatprep.subr.bf16.mxu0 0
        %2345 = vmatpush1.bf16.msra.mxu0 %v1323
        %2346 = vmatprep.subr.bf16.mxu0 0
        %2347 = vmatpush1.bf16.msra.mxu0 %v1324
        %2348 = vmatprep.subr.bf16.mxu0 0
        %2349 = vmatpush1.bf16.msra.mxu0 %v1325
        %2350 = vmatprep.subr.bf16.mxu0 0
        %2351 = vmatpush1.bf16.msra.mxu0 0
        %2352 = vmatprep.subr.bf16.mxu0 0
        %2353 = vmatpush1.bf16.msra.mxu0 0
        %2354 = vmatprep.subr.bf16.mxu0 0
        %2355 = vmatpush1.bf16.msra.mxu0 0
        %2356 = vmatprep.subr.bf16.mxu0 0
        %2357 = vmatpush1.bf16.msra.mxu0 0
        %2358 = vmatprep.subr.bf16.mxu0 0
        %2359 = vmatpush1.bf16.msra.mxu0 0
        %2360 = vmatprep.subr.bf16.mxu0 0
        %2361 = vmatpush1.bf16.msra.mxu0 0
        %2362 = vmatprep.subr.bf16.mxu0 0
        %2363 = vmatpush1.bf16.msra.mxu0 0
        %2364 = vmatprep.subr.bf16.mxu0 0
        %2365 = vmatpush1.bf16.msra.mxu0 0
        %2366 = vmatprep.subr.bf16.mxu0 0
        %2367 = vmatpush1.bf16.msra.mxu0 0
        %2368 = vmatprep.subr.bf16.mxu0 0
        %2369 = vmatpush1.bf16.msra.mxu0 0
        %2370 = vmatprep.subr.bf16.mxu0 0
        %2371 = vmatpush1.bf16.msra.mxu0 0
        %2372 = vmatprep.subr.bf16.mxu0 0
        %2373 = vmatpush1.bf16.msra.mxu0 0
        %2374 = vmatprep.mubr.bf16.mxu0 0
        %2375 = vmatmul.mubr.bf16.gmra.mrb[0].mxu0 %v2331
        %v2376 = vpop.f32.mrb[0].mxu0
        %v2377 = vadd.f32 0.0, %v2376
        %v2378 = vpop.f32.mrb[0].mxu0
        %v2379 = vpop.f32.mrb[0].mxu0
        %v2380 = vadd.f32 0.0, %v2379
        %v2381 = vpop.f32.mrb[0].mxu0
        %2382 = vmatprep.mubr.bf16.mxu0 0
        %2383 = vmatmul.mubr.bf16.gmra.mrb[0].mxu0 %v2334
        %v2384 = vpop.f32.mrb[0].mxu0
        %v2385 = vadd.f32 0.0, %v2384
        %v2386 = vpop.f32.mrb[0].mxu0
        %v2387 = vpop.f32.mrb[0].mxu0
        %v2388 = vadd.f32 0.0, %v2387
        %v2389 = vpop.f32.mrb[0].mxu0
        %2390 = vmatprep.mubr.bf16.mxu0 0
        %2391 = vmatmul.mubr.bf16.gmra.mrb[0].mxu0 %v2337
        %v2392 = vpop.f32.mrb[0].mxu0
        %v2393 = vadd.f32 0.0, %v2392
        %v2394 = vpop.f32.mrb[0].mxu0
        %v2395 = vpop.f32.mrb[0].mxu0
        %v2396 = vadd.f32 0.0, %v2395
        %v2397 = vpop.f32.mrb[0].mxu0
        %2398 = vmatprep.mubr.bf16.mxu0 0
        %2399 = vmatmul.mubr.bf16.gmra.mrb[0].mxu0 %v2340
        %v2400 = vpop.f32.mrb[0].mxu0
        %v2401 = vadd.f32 0.0, %v2400
        %v2402 = vpop.f32.mrb[0].mxu0
        %v2403 = vpop.f32.mrb[0].mxu0
        %v2404 = vadd.f32 0.0, %v2403
        %v2405 = vpop.f32.mrb[0].mxu0
        %2406 = vdwg.mxu0
        %2407 = vrot.lane.b32.xlu0 %v1294, 96
        %v2408 = vpop.permute.xlu0 %2407
        %2409 = vrot.lane.b32.xlu0 %v1295, 96
        %v2410 = vpop.permute.xlu0 %2409
        %2411 = vrot.lane.b32.xlu0 %v1296, 96
        %v2412 = vpop.permute.xlu0 %2411
        %2413 = vrot.lane.b32.xlu0 %v1297, 96
        %v2414 = vpop.permute.xlu0 %2413
        %2415 = vrot.lane.b32.xlu0 %v1294, 32
        %v2416 = vpop.permute.xlu0 %2415
        %2417 = vrot.lane.b32.xlu0 %v1295, 32
        %v2418 = vpop.permute.xlu0 %2417
        %2419 = vrot.lane.b32.xlu0 %v1296, 32
        %v2420 = vpop.permute.xlu0 %2419
        %2421 = vrot.lane.b32.xlu0 %v1297, 32
        %v2422 = vpop.permute.xlu0 %2421
        %v2424 = vsel %vm1338, %v2408, 0
        %v2427 = vsel %vm1338, %v2410, 0
        %v2430 = vsel %vm1338, %v2412, 0
        %v2433 = vsel %vm1338, %v2414, 0
        %v2436 = vsel %vm1338, %v2416, 0
        %v2439 = vsel %vm1338, %v2418, 0
        %v2442 = vsel %vm1338, %v2420, 0
        %v2445 = vsel %vm1338, %v2422, 0
        %2447 = vmatprep.subr.bf16.mxu0 0
        %2448 = vmatpush1.bf16.xpose.msra.mxu0 %v2436
        %2449 = vmatprep.subr.bf16.mxu0 0
        %2450 = vmatpush1.bf16.xpose.msra.mxu0 %v2439
        %2451 = vmatprep.subr.bf16.mxu0 0
        %2452 = vmatpush1.bf16.xpose.msra.mxu0 %v2442
        %2453 = vmatprep.subr.bf16.mxu0 0
        %2454 = vmatpush1.bf16.xpose.msra.mxu0 %v2445
        %2455 = vmatprep.subr.bf16.mxu0 0
        %2456 = vmatpush1.bf16.xpose.msra.mxu0 0
        %2457 = vmatprep.subr.bf16.mxu0 0
        %2458 = vmatpush1.bf16.xpose.msra.mxu0 0
        %2459 = vmatprep.subr.bf16.mxu0 0
        %2460 = vmatpush1.bf16.xpose.msra.mxu0 0
        %2461 = vmatprep.subr.bf16.mxu0 0
        %2462 = vmatpush1.bf16.xpose.msra.mxu0 0
        %2463 = vmatprep.subr.bf16.mxu0 0
        %2464 = vmatpush1.bf16.xpose.msra.mxu0 0
        %2465 = vmatprep.subr.bf16.mxu0 0
        %2466 = vmatpush1.bf16.xpose.msra.mxu0 0
        %2467 = vmatprep.subr.bf16.mxu0 0
        %2468 = vmatpush1.bf16.xpose.msra.mxu0 0
        %2469 = vmatprep.subr.bf16.mxu0 0
        %2470 = vmatpush1.bf16.xpose.msra.mxu0 0
        %2471 = vmatprep.subr.bf16.mxu0 0
        %2472 = vmatpush1.bf16.xpose.msra.mxu0 0
        %2473 = vmatprep.subr.bf16.mxu0 0
        %2474 = vmatpush1.bf16.xpose.msra.mxu0 0
        %2475 = vmatprep.subr.bf16.mxu0 0
        %2476 = vmatpush1.bf16.xpose.msra.mxu0 0
        %2477 = vmatprep.subr.bf16.mxu0 0
        %2478 = vmatpush1.bf16.xpose.msra.mxu0 0
        %2479 = vmatprep.mubr.bf16.mxu0 0
        %2480 = vmatmul.mubr.bf16.gmra.mrb[0].mxu0 %v2424
        %v2481 = vpop.f32.mrb[0].mxu0
        %v2482 = vadd.f32 0.0, %v2481
        %v2483 = vpop.f32.mrb[0].mxu0
        %v2484 = vpop.f32.mrb[0].mxu0
        %v2485 = vadd.f32 0.0, %v2484
        %v2486 = vpop.f32.mrb[0].mxu0
        %2487 = vmatprep.mubr.bf16.mxu0 0
        %2488 = vmatmul.mubr.bf16.gmra.mrb[0].mxu0 %v2427
        %v2489 = vpop.f32.mrb[0].mxu0
        %v2490 = vadd.f32 0.0, %v2489
        %v2491 = vpop.f32.mrb[0].mxu0
        %v2492 = vpop.f32.mrb[0].mxu0
        %v2493 = vadd.f32 0.0, %v2492
        %v2494 = vpop.f32.mrb[0].mxu0
        %2495 = vmatprep.mubr.bf16.mxu0 0
        %2496 = vmatmul.mubr.bf16.gmra.mrb[0].mxu0 %v2430
        %v2497 = vpop.f32.mrb[0].mxu0
        %v2498 = vadd.f32 0.0, %v2497
        %v2499 = vpop.f32.mrb[0].mxu0
        %v2500 = vpop.f32.mrb[0].mxu0
        %v2501 = vadd.f32 0.0, %v2500
        %v2502 = vpop.f32.mrb[0].mxu0
        %2503 = vmatprep.mubr.bf16.mxu0 0
        %2504 = vmatmul.mubr.bf16.gmra.mrb[0].mxu0 %v2433
        %v2505 = vpop.f32.mrb[0].mxu0
        %v2506 = vadd.f32 0.0, %v2505
        %v2507 = vpop.f32.mrb[0].mxu0
        %v2508 = vpop.f32.mrb[0].mxu0
        %v2509 = vadd.f32 0.0, %v2508
        %v2510 = vpop.f32.mrb[0].mxu0
        %2511 = vdwg.mxu0
        %2512 = vrot.lane.b32.xlu0 %v1298, 96
        %v2513 = vpop.permute.xlu0 %2512
        %2514 = vrot.lane.b32.xlu0 %v1299, 96
        %v2515 = vpop.permute.xlu0 %2514
        %2516 = vrot.lane.b32.xlu0 %v1300, 96
        %v2517 = vpop.permute.xlu0 %2516
        %2518 = vrot.lane.b32.xlu0 %v1301, 96
        %v2519 = vpop.permute.xlu0 %2518
        %2520 = vrot.lane.b32.xlu0 %v1298, 32
        %v2521 = vpop.permute.xlu0 %2520
        %2522 = vrot.lane.b32.xlu0 %v1299, 32
        %v2523 = vpop.permute.xlu0 %2522
        %2524 = vrot.lane.b32.xlu0 %v1300, 32
        %v2525 = vpop.permute.xlu0 %2524
        %2526 = vrot.lane.b32.xlu0 %v1301, 32
        %v2527 = vpop.permute.xlu0 %2526
        %v2529 = vsel %vm1338, %v2513, 0
        %v2532 = vsel %vm1338, %v2515, 0
        %v2535 = vsel %vm1338, %v2517, 0
        %v2538 = vsel %vm1338, %v2519, 0
        %v2541 = vsel %vm1338, %v2521, 0
        %v2544 = vsel %vm1338, %v2523, 0
        %v2547 = vsel %vm1338, %v2525, 0
        %v2550 = vsel %vm1338, %v2527, 0
        %2552 = vmatprep.subr.bf16.mxu0 0
        %2553 = vmatpush1.bf16.xpose.msra.mxu0 %v2541
        %2554 = vmatprep.subr.bf16.mxu0 0
        %2555 = vmatpush1.bf16.xpose.msra.mxu0 %v2544
        %2556 = vmatprep.subr.bf16.mxu0 0
        %2557 = vmatpush1.bf16.xpose.msra.mxu0 %v2547
        %2558 = vmatprep.subr.bf16.mxu0 0
        %2559 = vmatpush1.bf16.xpose.msra.mxu0 %v2550
        %2560 = vmatprep.subr.bf16.mxu0 0
        %2561 = vmatpush1.bf16.xpose.msra.mxu0 0
        %2562 = vmatprep.subr.bf16.mxu0 0
        %2563 = vmatpush1.bf16.xpose.msra.mxu0 0
        %2564 = vmatprep.subr.bf16.mxu0 0
        %2565 = vmatpush1.bf16.xpose.msra.mxu0 0
        %2566 = vmatprep.subr.bf16.mxu0 0
        %2567 = vmatpush1.bf16.xpose.msra.mxu0 0
        %2568 = vmatprep.subr.bf16.mxu0 0
        %2569 = vmatpush1.bf16.xpose.msra.mxu0 0
        %2570 = vmatprep.subr.bf16.mxu0 0
        %2571 = vmatpush1.bf16.xpose.msra.mxu0 0
        %2572 = vmatprep.subr.bf16.mxu0 0
        %2573 = vmatpush1.bf16.xpose.msra.mxu0 0
        %2574 = vmatprep.subr.bf16.mxu0 0
        %2575 = vmatpush1.bf16.xpose.msra.mxu0 0
        %2576 = vmatprep.subr.bf16.mxu0 0
        %2577 = vmatpush1.bf16.xpose.msra.mxu0 0
        %2578 = vmatprep.subr.bf16.mxu0 0
        %2579 = vmatpush1.bf16.xpose.msra.mxu0 0
        %2580 = vmatprep.subr.bf16.mxu0 0
        %2581 = vmatpush1.bf16.xpose.msra.mxu0 0
        %2582 = vmatprep.subr.bf16.mxu0 0
        %2583 = vmatpush1.bf16.xpose.msra.mxu0 0
        %2584 = vmatprep.mubr.bf16.mxu0 0
        %2585 = vmatmul.mubr.bf16.gmra.mrb[0].mxu0 %v2529
        %v2586 = vpop.f32.mrb[0].mxu0
        %v2587 = vadd.f32 0.0, %v2586
        %v2588 = vpop.f32.mrb[0].mxu0
        %v2589 = vpop.f32.mrb[0].mxu0
        %v2590 = vadd.f32 0.0, %v2589
        %v2591 = vpop.f32.mrb[0].mxu0
        %2592 = vmatprep.mubr.bf16.mxu0 0
        %2593 = vmatmul.mubr.bf16.gmra.mrb[0].mxu0 %v2532
        %v2594 = vpop.f32.mrb[0].mxu0
        %v2595 = vadd.f32 0.0, %v2594
        %v2596 = vpop.f32.mrb[0].mxu0
        %v2597 = vpop.f32.mrb[0].mxu0
        %v2598 = vadd.f32 0.0, %v2597
        %v2599 = vpop.f32.mrb[0].mxu0
        %2600 = vmatprep.mubr.bf16.mxu0 0
        %2601 = vmatmul.mubr.bf16.gmra.mrb[0].mxu0 %v2535
        %v2602 = vpop.f32.mrb[0].mxu0
        %v2603 = vadd.f32 0.0, %v2602
        %v2604 = vpop.f32.mrb[0].mxu0
        %v2605 = vpop.f32.mrb[0].mxu0
        %v2606 = vadd.f32 0.0, %v2605
        %v2607 = vpop.f32.mrb[0].mxu0
        %2608 = vmatprep.mubr.bf16.mxu0 0
        %2609 = vmatmul.mubr.bf16.gmra.mrb[0].mxu0 %v2538
        %v2610 = vpop.f32.mrb[0].mxu0
        %v2611 = vadd.f32 0.0, %v2610
        %v2612 = vpop.f32.mrb[0].mxu0
        %v2613 = vpop.f32.mrb[0].mxu0
        %v2614 = vadd.f32 0.0, %v2613
        %v2615 = vpop.f32.mrb[0].mxu0
        %2616 = vdwg.mxu0
        %2617 = vrot.lane.b32.xlu0 %v1302, 96
        %v2618 = vpop.permute.xlu0 %2617
        %2619 = vrot.lane.b32.xlu0 %v1303, 96
        %v2620 = vpop.permute.xlu0 %2619
        %2621 = vrot.lane.b32.xlu0 %v1304, 96
        %v2622 = vpop.permute.xlu0 %2621
        %2623 = vrot.lane.b32.xlu0 %v1305, 96
        %v2624 = vpop.permute.xlu0 %2623
        %2625 = vrot.lane.b32.xlu0 %v1302, 32
        %v2626 = vpop.permute.xlu0 %2625
        %2627 = vrot.lane.b32.xlu0 %v1303, 32
        %v2628 = vpop.permute.xlu0 %2627
        %2629 = vrot.lane.b32.xlu0 %v1304, 32
        %v2630 = vpop.permute.xlu0 %2629
        %2631 = vrot.lane.b32.xlu0 %v1305, 32
        %v2632 = vpop.permute.xlu0 %2631
        %v2634 = vsel %vm1338, %v2618, 0
        %v2637 = vsel %vm1338, %v2620, 0
        %v2640 = vsel %vm1338, %v2622, 0
        %v2643 = vsel %vm1338, %v2624, 0
        %v2646 = vsel %vm1338, %v2626, 0
        %v2649 = vsel %vm1338, %v2628, 0
        %v2652 = vsel %vm1338, %v2630, 0
        %v2655 = vsel %vm1338, %v2632, 0
        %2657 = vmatprep.subr.bf16.mxu0 0
        %2658 = vmatpush1.bf16.xpose.msra.mxu0 %v2646
        %2659 = vmatprep.subr.bf16.mxu0 0
        %2660 = vmatpush1.bf16.xpose.msra.mxu0 %v2649
        %2661 = vmatprep.subr.bf16.mxu0 0
        %2662 = vmatpush1.bf16.xpose.msra.mxu0 %v2652
        %2663 = vmatprep.subr.bf16.mxu0 0
        %2664 = vmatpush1.bf16.xpose.msra.mxu0 %v2655
        %2665 = vmatprep.subr.bf16.mxu0 0
        %2666 = vmatpush1.bf16.xpose.msra.mxu0 0
        %2667 = vmatprep.subr.bf16.mxu0 0
        %2668 = vmatpush1.bf16.xpose.msra.mxu0 0
        %2669 = vmatprep.subr.bf16.mxu0 0
        %2670 = vmatpush1.bf16.xpose.msra.mxu0 0
        %2671 = vmatprep.subr.bf16.mxu0 0
        %2672 = vmatpush1.bf16.xpose.msra.mxu0 0
        %2673 = vmatprep.subr.bf16.mxu0 0
        %2674 = vmatpush1.bf16.xpose.msra.mxu0 0
        %2675 = vmatprep.subr.bf16.mxu0 0
        %2676 = vmatpush1.bf16.xpose.msra.mxu0 0
        %2677 = vmatprep.subr.bf16.mxu0 0
        %2678 = vmatpush1.bf16.xpose.msra.mxu0 0
        %2679 = vmatprep.subr.bf16.mxu0 0
        %2680 = vmatpush1.bf16.xpose.msra.mxu0 0
        %2681 = vmatprep.subr.bf16.mxu0 0
        %2682 = vmatpush1.bf16.xpose.msra.mxu0 0
        %2683 = vmatprep.subr.bf16.mxu0 0
        %2684 = vmatpush1.bf16.xpose.msra.mxu0 0
        %2685 = vmatprep.subr.bf16.mxu0 0
        %2686 = vmatpush1.bf16.xpose.msra.mxu0 0
        %2687 = vmatprep.subr.bf16.mxu0 0
        %2688 = vmatpush1.bf16.xpose.msra.mxu0 0
        %2689 = vmatprep.mubr.bf16.mxu0 0
        %2690 = vmatmul.mubr.bf16.gmra.mrb[0].mxu0 %v2634
        %v2691 = vpop.f32.mrb[0].mxu0
        %v2692 = vadd.f32 0.0, %v2691
        %v2693 = vpop.f32.mrb[0].mxu0
        %v2694 = vpop.f32.mrb[0].mxu0
        %v2695 = vadd.f32 0.0, %v2694
        %v2696 = vpop.f32.mrb[0].mxu0
        %2697 = vmatprep.mubr.bf16.mxu0 0
        %2698 = vmatmul.mubr.bf16.gmra.mrb[0].mxu0 %v2637
        %v2699 = vpop.f32.mrb[0].mxu0
        %v2700 = vadd.f32 0.0, %v2699
        %v2701 = vpop.f32.mrb[0].mxu0
        %v2702 = vpop.f32.mrb[0].mxu0
        %v2703 = vadd.f32 0.0, %v2702
        %v2704 = vpop.f32.mrb[0].mxu0
        %2705 = vmatprep.mubr.bf16.mxu0 0
        %2706 = vmatmul.mubr.bf16.gmra.mrb[0].mxu0 %v2640
        %v2707 = vpop.f32.mrb[0].mxu0
        %v2708 = vadd.f32 0.0, %v2707
        %v2709 = vpop.f32.mrb[0].mxu0
        %v2710 = vpop.f32.mrb[0].mxu0
        %v2711 = vadd.f32 0.0, %v2710
        %v2712 = vpop.f32.mrb[0].mxu0
        %2713 = vmatprep.mubr.bf16.mxu0 0
        %2714 = vmatmul.mubr.bf16.gmra.mrb[0].mxu0 %v2643
        %v2715 = vpop.f32.mrb[0].mxu0
        %v2716 = vadd.f32 0.0, %v2715
        %v2717 = vpop.f32.mrb[0].mxu0
        %v2718 = vpop.f32.mrb[0].mxu0
        %v2719 = vadd.f32 0.0, %v2718
        %v2720 = vpop.f32.mrb[0].mxu0
        %2721 = vdwg.mxu0
        %2722 = vrot.lane.b32.xlu0 %v1306, 96
        %v2723 = vpop.permute.xlu0 %2722
        %2724 = vrot.lane.b32.xlu0 %v1307, 96
        %v2725 = vpop.permute.xlu0 %2724
        %2726 = vrot.lane.b32.xlu0 %v1308, 96
        %v2727 = vpop.permute.xlu0 %2726
        %2728 = vrot.lane.b32.xlu0 %v1309, 96
        %v2729 = vpop.permute.xlu0 %2728
        %2730 = vrot.lane.b32.xlu0 %v1306, 32
        %v2731 = vpop.permute.xlu0 %2730
        %2732 = vrot.lane.b32.xlu0 %v1307, 32
        %v2733 = vpop.permute.xlu0 %2732
        %2734 = vrot.lane.b32.xlu0 %v1308, 32
        %v2735 = vpop.permute.xlu0 %2734
        %2736 = vrot.lane.b32.xlu0 %v1309, 32
        %v2737 = vpop.permute.xlu0 %2736
        %v2739 = vsel %vm1338, %v2723, 0
        %v2742 = vsel %vm1338, %v2725, 0
        %v2745 = vsel %vm1338, %v2727, 0
        %v2748 = vsel %vm1338, %v2729, 0
        %v2751 = vsel %vm1338, %v2731, 0
        %v2754 = vsel %vm1338, %v2733, 0
        %v2757 = vsel %vm1338, %v2735, 0
        %v2760 = vsel %vm1338, %v2737, 0
        %2762 = vmatprep.subr.bf16.mxu0 0
        %2763 = vmatpush1.bf16.xpose.msra.mxu0 %v2751
        %2764 = vmatprep.subr.bf16.mxu0 0
        %2765 = vmatpush1.bf16.xpose.msra.mxu0 %v2754
        %2766 = vmatprep.subr.bf16.mxu0 0
        %2767 = vmatpush1.bf16.xpose.msra.mxu0 %v2757
        %2768 = vmatprep.subr.bf16.mxu0 0
        %2769 = vmatpush1.bf16.xpose.msra.mxu0 %v2760
        %2770 = vmatprep.subr.bf16.mxu0 0
        %2771 = vmatpush1.bf16.xpose.msra.mxu0 0
        %2772 = vmatprep.subr.bf16.mxu0 0
        %2773 = vmatpush1.bf16.xpose.msra.mxu0 0
        %2774 = vmatprep.subr.bf16.mxu0 0
        %2775 = vmatpush1.bf16.xpose.msra.mxu0 0
        %2776 = vmatprep.subr.bf16.mxu0 0
        %2777 = vmatpush1.bf16.xpose.msra.mxu0 0
        %2778 = vmatprep.subr.bf16.mxu0 0
        %2779 = vmatpush1.bf16.xpose.msra.mxu0 0
        %2780 = vmatprep.subr.bf16.mxu0 0
        %2781 = vmatpush1.bf16.xpose.msra.mxu0 0
        %2782 = vmatprep.subr.bf16.mxu0 0
        %2783 = vmatpush1.bf16.xpose.msra.mxu0 0
        %2784 = vmatprep.subr.bf16.mxu0 0
        %2785 = vmatpush1.bf16.xpose.msra.mxu0 0
        %2786 = vmatprep.subr.bf16.mxu0 0
        %2787 = vmatpush1.bf16.xpose.msra.mxu0 0
        %2788 = vmatprep.subr.bf16.mxu0 0
        %2789 = vmatpush1.bf16.xpose.msra.mxu0 0
        %2790 = vmatprep.subr.bf16.mxu0 0
        %2791 = vmatpush1.bf16.xpose.msra.mxu0 0
        %2792 = vmatprep.subr.bf16.mxu0 0
        %2793 = vmatpush1.bf16.xpose.msra.mxu0 0
        %2794 = vmatprep.mubr.bf16.mxu0 0
        %2795 = vmatmul.mubr.bf16.gmra.mrb[0].mxu0 %v2739
        %v2796 = vpop.f32.mrb[0].mxu0
        %v2797 = vadd.f32 0.0, %v2796
        %v2798 = vpop.f32.mrb[0].mxu0
        %v2799 = vpop.f32.mrb[0].mxu0
        %v2800 = vadd.f32 0.0, %v2799
        %v2801 = vpop.f32.mrb[0].mxu0
        %2802 = vmatprep.mubr.bf16.mxu0 0
        %2803 = vmatmul.mubr.bf16.gmra.mrb[0].mxu0 %v2742
        %v2804 = vpop.f32.mrb[0].mxu0
        %v2805 = vadd.f32 0.0, %v2804
        %v2806 = vpop.f32.mrb[0].mxu0
        %v2807 = vpop.f32.mrb[0].mxu0
        %v2808 = vadd.f32 0.0, %v2807
        %v2809 = vpop.f32.mrb[0].mxu0
        %2810 = vmatprep.mubr.bf16.mxu0 0
        %2811 = vmatmul.mubr.bf16.gmra.mrb[0].mxu0 %v2745
        %v2812 = vpop.f32.mrb[0].mxu0
        %v2813 = vadd.f32 0.0, %v2812
        %v2814 = vpop.f32.mrb[0].mxu0
        %v2815 = vpop.f32.mrb[0].mxu0
        %v2816 = vadd.f32 0.0, %v2815
        %v2817 = vpop.f32.mrb[0].mxu0
        %2818 = vmatprep.mubr.bf16.mxu0 0
        %2819 = vmatmul.mubr.bf16.gmra.mrb[0].mxu0 %v2748
        %v2820 = vpop.f32.mrb[0].mxu0
        %v2821 = vadd.f32 0.0, %v2820
        %v2822 = vpop.f32.mrb[0].mxu0
        %v2823 = vpop.f32.mrb[0].mxu0
        %v2824 = vadd.f32 0.0, %v2823
        %v2825 = vpop.f32.mrb[0].mxu0
        %2826 = vdwg.mxu0
        %v2827 = vsel %vm428, %v2482, -inf
        %2828 = vmax.xlane.f32.xlu0 %v2827
        %v2829 = vpop.xlane.xlu0 %2828
        %v2830 = vsel %vm428, %v2485, -inf
        %2831 = vmax.xlane.f32.xlu0 %v2830
        %v2832 = vpop.xlane.xlu0 %2831
        %v2833 = vsel %vm428, %v2490, -inf
        %2834 = vmax.xlane.f32.xlu0 %v2833
        %v2835 = vpop.xlane.xlu0 %2834
        %v2836 = vsel %vm428, %v2493, -inf
        %2837 = vmax.xlane.f32.xlu0 %v2836
        %v2838 = vpop.xlane.xlu0 %2837
        %v2839 = vsel %vm428, %v2498, -inf
        %2840 = vmax.xlane.f32.xlu0 %v2839
        %v2841 = vpop.xlane.xlu0 %2840
        %v2842 = vsel %vm428, %v2501, -inf
        %2843 = vmax.xlane.f32.xlu0 %v2842
        %v2844 = vpop.xlane.xlu0 %2843
        %v2845 = vsel %vm428, %v2506, -inf
        %2846 = vmax.xlane.f32.xlu0 %v2845
        %v2847 = vpop.xlane.xlu0 %2846
        %v2848 = vsel %vm428, %v2509, -inf
        %2849 = vmax.xlane.f32.xlu0 %v2848
        %v2850 = vpop.xlane.xlu0 %2849
        %v2851 = vsel %vm428, %v2587, -inf
        %2852 = vmax.xlane.f32.xlu0 %v2851
        %v2853 = vpop.xlane.xlu0 %2852
        %v2854 = vsel %vm428, %v2590, -inf
        %2855 = vmax.xlane.f32.xlu0 %v2854
        %v2856 = vpop.xlane.xlu0 %2855
        %v2857 = vsel %vm428, %v2595, -inf
        %2858 = vmax.xlane.f32.xlu0 %v2857
        %v2859 = vpop.xlane.xlu0 %2858
        %v2860 = vsel %vm428, %v2598, -inf
        %2861 = vmax.xlane.f32.xlu0 %v2860
        %v2862 = vpop.xlane.xlu0 %2861
        %v2863 = vsel %vm428, %v2603, -inf
        %2864 = vmax.xlane.f32.xlu0 %v2863
        %v2865 = vpop.xlane.xlu0 %2864
        %v2866 = vsel %vm428, %v2606, -inf
        %2867 = vmax.xlane.f32.xlu0 %v2866
        %v2868 = vpop.xlane.xlu0 %2867
        %v2869 = vsel %vm428, %v2611, -inf
        %2870 = vmax.xlane.f32.xlu0 %v2869
        %v2871 = vpop.xlane.xlu0 %2870
        %v2872 = vsel %vm428, %v2614, -inf
        %2873 = vmax.xlane.f32.xlu0 %v2872
        %v2874 = vpop.xlane.xlu0 %2873
        %v2875 = vsel %vm428, %v2692, -inf
        %2876 = vmax.xlane.f32.xlu0 %v2875
        %v2877 = vpop.xlane.xlu0 %2876
        %v2878 = vsel %vm428, %v2695, -inf
        %2879 = vmax.xlane.f32.xlu0 %v2878
        %v2880 = vpop.xlane.xlu0 %2879
        %v2881 = vsel %vm428, %v2700, -inf
        %2882 = vmax.xlane.f32.xlu0 %v2881
        %v2883 = vpop.xlane.xlu0 %2882
        %v2884 = vsel %vm428, %v2703, -inf
        %2885 = vmax.xlane.f32.xlu0 %v2884
        %v2886 = vpop.xlane.xlu0 %2885
        %v2887 = vsel %vm428, %v2708, -inf
        %2888 = vmax.xlane.f32.xlu0 %v2887
        %v2889 = vpop.xlane.xlu0 %2888
        %v2890 = vsel %vm428, %v2711, -inf
        %2891 = vmax.xlane.f32.xlu0 %v2890
        %v2892 = vpop.xlane.xlu0 %2891
        %v2893 = vsel %vm428, %v2716, -inf
        %2894 = vmax.xlane.f32.xlu0 %v2893
        %v2895 = vpop.xlane.xlu0 %2894
        %v2896 = vsel %vm428, %v2719, -inf
        %2897 = vmax.xlane.f32.xlu0 %v2896
        %v2898 = vpop.xlane.xlu0 %2897
        %v2899 = vsel %vm428, %v2797, -inf
        %2900 = vmax.xlane.f32.xlu0 %v2899
        %v2901 = vpop.xlane.xlu0 %2900
        %v2902 = vsel %vm428, %v2800, -inf
        %2903 = vmax.xlane.f32.xlu0 %v2902
        %v2904 = vpop.xlane.xlu0 %2903
        %v2905 = vsel %vm428, %v2805, -inf
        %2906 = vmax.xlane.f32.xlu0 %v2905
        %v2907 = vpop.xlane.xlu0 %2906
        %v2908 = vsel %vm428, %v2808, -inf
        %2909 = vmax.xlane.f32.xlu0 %v2908
        %v2910 = vpop.xlane.xlu0 %2909
        %v2911 = vsel %vm428, %v2813, -inf
        %2912 = vmax.xlane.f32.xlu0 %v2911
        %v2913 = vpop.xlane.xlu0 %2912
        %v2914 = vsel %vm428, %v2816, -inf
        %2915 = vmax.xlane.f32.xlu0 %v2914
        %v2916 = vpop.xlane.xlu0 %2915
        %v2917 = vsel %vm428, %v2821, -inf
        %2918 = vmax.xlane.f32.xlu0 %v2917
        %v2919 = vpop.xlane.xlu0 %2918
        %v2920 = vsel %vm428, %v2824, -inf
        %2921 = vmax.xlane.f32.xlu0 %v2920
        %v2922 = vpop.xlane.xlu0 %2921
        %v2923 = vsub.f32 %v2482, %v2829
        %v2924 = vsub.f32 %v2485, %v2832
        %v2925 = vsub.f32 %v2490, %v2835
        %v2926 = vsub.f32 %v2493, %v2838
        %v2927 = vsub.f32 %v2498, %v2841
        %v2928 = vsub.f32 %v2501, %v2844
        %v2929 = vsub.f32 %v2506, %v2847
        %v2930 = vsub.f32 %v2509, %v2850
        %v2931 = vsub.f32 %v2587, %v2853
        %v2932 = vsub.f32 %v2590, %v2856
        %v2933 = vsub.f32 %v2595, %v2859
        %v2934 = vsub.f32 %v2598, %v2862
        %v2935 = vsub.f32 %v2603, %v2865
        %v2936 = vsub.f32 %v2606, %v2868
        %v2937 = vsub.f32 %v2611, %v2871
        %v2938 = vsub.f32 %v2614, %v2874
        %v2939 = vsub.f32 %v2692, %v2877
        %v2940 = vsub.f32 %v2695, %v2880
        %v2941 = vsub.f32 %v2700, %v2883
        %v2942 = vsub.f32 %v2703, %v2886
        %v2943 = vsub.f32 %v2708, %v2889
        %v2944 = vsub.f32 %v2711, %v2892
        %v2945 = vsub.f32 %v2716, %v2895
        %v2946 = vsub.f32 %v2719, %v2898
        %v2947 = vsub.f32 %v2797, %v2901
        %v2948 = vsub.f32 %v2800, %v2904
        %v2949 = vsub.f32 %v2805, %v2907
        %v2950 = vsub.f32 %v2808, %v2910
        %v2951 = vsub.f32 %v2813, %v2913
        %v2952 = vsub.f32 %v2816, %v2916
        %v2953 = vsub.f32 %v2821, %v2919
        %v2954 = vsub.f32 %v2824, %v2922
        %v2955 = vmul.f32 %v2923, 1.442695
        %v2956 = vpow.pop %v2955
        %v2957 = vmul.f32 %v2924, 1.442695
        %v2958 = vpow.pop %v2957
        %v2959 = vmul.f32 %v2925, 1.442695
        %v2960 = vpow.pop %v2959
        %v2961 = vmul.f32 %v2926, 1.442695
        %v2962 = vpow.pop %v2961
        %v2963 = vmul.f32 %v2927, 1.442695
        %v2964 = vpow.pop %v2963
        %v2965 = vmul.f32 %v2928, 1.442695
        %v2966 = vpow.pop %v2965
        %v2967 = vmul.f32 %v2929, 1.442695
        %v2968 = vpow.pop %v2967
        %v2969 = vmul.f32 %v2930, 1.442695
        %v2970 = vpow.pop %v2969
        %v2971 = vmul.f32 %v2931, 1.442695
        %v2972 = vpow.pop %v2971
        %v2973 = vmul.f32 %v2932, 1.442695
        %v2974 = vpow.pop %v2973
        %v2975 = vmul.f32 %v2933, 1.442695
        %v2976 = vpow.pop %v2975
        %v2977 = vmul.f32 %v2934, 1.442695
        %v2978 = vpow.pop %v2977
        %v2979 = vmul.f32 %v2935, 1.442695
        %v2980 = vpow.pop %v2979
        %v2981 = vmul.f32 %v2936, 1.442695
        %v2982 = vpow.pop %v2981
        %v2983 = vmul.f32 %v2937, 1.442695
        %v2984 = vpow.pop %v2983
        %v2985 = vmul.f32 %v2938, 1.442695
        %v2986 = vpow.pop %v2985
        %v2987 = vmul.f32 %v2939, 1.442695
        %v2988 = vpow.pop %v2987
        %v2989 = vmul.f32 %v2940, 1.442695
        %v2990 = vpow.pop %v2989
        %v2991 = vmul.f32 %v2941, 1.442695
        %v2992 = vpow.pop %v2991
        %v2993 = vmul.f32 %v2942, 1.442695
        %v2994 = vpow.pop %v2993
        %v2995 = vmul.f32 %v2943, 1.442695
        %v2996 = vpow.pop %v2995
        %v2997 = vmul.f32 %v2944, 1.442695
        %v2998 = vpow.pop %v2997
        %v2999 = vmul.f32 %v2945, 1.442695
        %v3000 = vpow.pop %v2999
        %v3001 = vmul.f32 %v2946, 1.442695
        %v3002 = vpow.pop %v3001
        %v3003 = vmul.f32 %v2947, 1.442695
        %v3004 = vpow.pop %v3003
        %v3005 = vmul.f32 %v2948, 1.442695
        %v3006 = vpow.pop %v3005
        %v3007 = vmul.f32 %v2949, 1.442695
        %v3008 = vpow.pop %v3007
        %v3009 = vmul.f32 %v2950, 1.442695
        %v3010 = vpow.pop %v3009
        %v3011 = vmul.f32 %v2951, 1.442695
        %v3012 = vpow.pop %v3011
        %v3013 = vmul.f32 %v2952, 1.442695
        %v3014 = vpow.pop %v3013
        %v3015 = vmul.f32 %v2953, 1.442695
        %v3016 = vpow.pop %v3015
        %v3017 = vmul.f32 %v2954, 1.442695
        %v3018 = vpow.pop %v3017
        %v3019 = vsel %vm428, %v2956, 0.0
        %3020 = vadd.xlane.f32.xlu0 %v3019
        %v3021 = vpop.xlane.xlu0 %3020
        %v3022 = vsel %vm428, %v2958, 0.0
        %3023 = vadd.xlane.f32.xlu0 %v3022
        %v3024 = vpop.xlane.xlu0 %3023
        %v3025 = vsel %vm428, %v2960, 0.0
        %3026 = vadd.xlane.f32.xlu0 %v3025
        %v3027 = vpop.xlane.xlu0 %3026
        %v3028 = vsel %vm428, %v2962, 0.0
        %3029 = vadd.xlane.f32.xlu0 %v3028
        %v3030 = vpop.xlane.xlu0 %3029
        %v3031 = vsel %vm428, %v2964, 0.0
        %3032 = vadd.xlane.f32.xlu0 %v3031
        %v3033 = vpop.xlane.xlu0 %3032
        %v3034 = vsel %vm428, %v2966, 0.0
        %3035 = vadd.xlane.f32.xlu0 %v3034
        %v3036 = vpop.xlane.xlu0 %3035
        %v3037 = vsel %vm428, %v2968, 0.0
        %3038 = vadd.xlane.f32.xlu0 %v3037
        %v3039 = vpop.xlane.xlu0 %3038
        %v3040 = vsel %vm428, %v2970, 0.0
        %3041 = vadd.xlane.f32.xlu0 %v3040
        %v3042 = vpop.xlane.xlu0 %3041
        %v3043 = vsel %vm428, %v2972, 0.0
        %3044 = vadd.xlane.f32.xlu0 %v3043
        %v3045 = vpop.xlane.xlu0 %3044
        %v3046 = vsel %vm428, %v2974, 0.0
        %3047 = vadd.xlane.f32.xlu0 %v3046
        %v3048 = vpop.xlane.xlu0 %3047
        %v3049 = vsel %vm428, %v2976, 0.0
        %3050 = vadd.xlane.f32.xlu0 %v3049
        %v3051 = vpop.xlane.xlu0 %3050
        %v3052 = vsel %vm428, %v2978, 0.0
        %3053 = vadd.xlane.f32.xlu0 %v3052
        %v3054 = vpop.xlane.xlu0 %3053
        %v3055 = vsel %vm428, %v2980, 0.0
        %3056 = vadd.xlane.f32.xlu0 %v3055
        %v3057 = vpop.xlane.xlu0 %3056
        %v3058 = vsel %vm428, %v2982, 0.0
        %3059 = vadd.xlane.f32.xlu0 %v3058
        %v3060 = vpop.xlane.xlu0 %3059
        %v3061 = vsel %vm428, %v2984, 0.0
        %3062 = vadd.xlane.f32.xlu0 %v3061
        %v3063 = vpop.xlane.xlu0 %3062
        %v3064 = vsel %vm428, %v2986, 0.0
        %3065 = vadd.xlane.f32.xlu0 %v3064
        %v3066 = vpop.xlane.xlu0 %3065
        %v3067 = vsel %vm428, %v2988, 0.0
        %3068 = vadd.xlane.f32.xlu0 %v3067
        %v3069 = vpop.xlane.xlu0 %3068
        %v3070 = vsel %vm428, %v2990, 0.0
        %3071 = vadd.xlane.f32.xlu0 %v3070
        %v3072 = vpop.xlane.xlu0 %3071
        %v3073 = vsel %vm428, %v2992, 0.0
        %3074 = vadd.xlane.f32.xlu0 %v3073
        %v3075 = vpop.xlane.xlu0 %3074
        %v3076 = vsel %vm428, %v2994, 0.0
        %3077 = vadd.xlane.f32.xlu0 %v3076
        %v3078 = vpop.xlane.xlu0 %3077
        %v3079 = vsel %vm428, %v2996, 0.0
        %3080 = vadd.xlane.f32.xlu0 %v3079
        %v3081 = vpop.xlane.xlu0 %3080
        %v3082 = vsel %vm428, %v2998, 0.0
        %3083 = vadd.xlane.f32.xlu0 %v3082
        %v3084 = vpop.xlane.xlu0 %3083
        %v3085 = vsel %vm428, %v3000, 0.0
        %3086 = vadd.xlane.f32.xlu0 %v3085
        %v3087 = vpop.xlane.xlu0 %3086
        %v3088 = vsel %vm428, %v3002, 0.0
        %3089 = vadd.xlane.f32.xlu0 %v3088
        %v3090 = vpop.xlane.xlu0 %3089
        %v3091 = vsel %vm428, %v3004, 0.0
        %3092 = vadd.xlane.f32.xlu0 %v3091
        %v3093 = vpop.xlane.xlu0 %3092
        %v3094 = vsel %vm428, %v3006, 0.0
        %3095 = vadd.xlane.f32.xlu0 %v3094
        %v3096 = vpop.xlane.xlu0 %3095
        %v3097 = vsel %vm428, %v3008, 0.0
        %3098 = vadd.xlane.f32.xlu0 %v3097
        %v3099 = vpop.xlane.xlu0 %3098
        %v3100 = vsel %vm428, %v3010, 0.0
        %3101 = vadd.xlane.f32.xlu0 %v3100
        %v3102 = vpop.xlane.xlu0 %3101
        %v3103 = vsel %vm428, %v3012, 0.0
        %3104 = vadd.xlane.f32.xlu0 %v3103
        %v3105 = vpop.xlane.xlu0 %3104
        %v3106 = vsel %vm428, %v3014, 0.0
        %3107 = vadd.xlane.f32.xlu0 %v3106
        %v3108 = vpop.xlane.xlu0 %3107
        %v3109 = vsel %vm428, %v3016, 0.0
        %3110 = vadd.xlane.f32.xlu0 %v3109
        %v3111 = vpop.xlane.xlu0 %3110
        %v3112 = vsel %vm428, %v3018, 0.0
        %3113 = vadd.xlane.f32.xlu0 %v3112
        %v3114 = vpop.xlane.xlu0 %3113
        %v3115 = vrcp.pop %v3021
        %v3116 = vrcp.pop %v3024
        %v3117 = vrcp.pop %v3027
        %v3118 = vrcp.pop %v3030
        %v3119 = vrcp.pop %v3033
        %v3120 = vrcp.pop %v3036
        %v3121 = vrcp.pop %v3039
        %v3122 = vrcp.pop %v3042
        %v3123 = vrcp.pop %v3045
        %v3124 = vrcp.pop %v3048
        %v3125 = vrcp.pop %v3051
        %v3126 = vrcp.pop %v3054
        %v3127 = vrcp.pop %v3057
        %v3128 = vrcp.pop %v3060
        %v3129 = vrcp.pop %v3063
        %v3130 = vrcp.pop %v3066
        %v3131 = vrcp.pop %v3069
        %v3132 = vrcp.pop %v3072
        %v3133 = vrcp.pop %v3075
        %v3134 = vrcp.pop %v3078
        %v3135 = vrcp.pop %v3081
        %v3136 = vrcp.pop %v3084
        %v3137 = vrcp.pop %v3087
        %v3138 = vrcp.pop %v3090
        %v3139 = vrcp.pop %v3093
        %v3140 = vrcp.pop %v3096
        %v3141 = vrcp.pop %v3099
        %v3142 = vrcp.pop %v3102
        %v3143 = vrcp.pop %v3105
        %v3144 = vrcp.pop %v3108
        %v3145 = vrcp.pop %v3111
        %v3146 = vrcp.pop %v3114
        %v3147 = vmul.f32 %v2956, %v3115
        %v3148 = vmul.f32 %v2958, %v3116
        %v3149 = vmul.f32 %v2960, %v3117
        %v3150 = vmul.f32 %v2962, %v3118
        %v3151 = vmul.f32 %v2964, %v3119
        %v3152 = vmul.f32 %v2966, %v3120
        %v3153 = vmul.f32 %v2968, %v3121
        %v3154 = vmul.f32 %v2970, %v3122
        %v3155 = vmul.f32 %v2972, %v3123
        %v3156 = vmul.f32 %v2974, %v3124
        %v3157 = vmul.f32 %v2976, %v3125
        %v3158 = vmul.f32 %v2978, %v3126
        %v3159 = vmul.f32 %v2980, %v3127
        %v3160 = vmul.f32 %v2982, %v3128
        %v3161 = vmul.f32 %v2984, %v3129
        %v3162 = vmul.f32 %v2986, %v3130
        %v3163 = vmul.f32 %v2988, %v3131
        %v3164 = vmul.f32 %v2990, %v3132
        %v3165 = vmul.f32 %v2992, %v3133
        %v3166 = vmul.f32 %v2994, %v3134
        %v3167 = vmul.f32 %v2996, %v3135
        %v3168 = vmul.f32 %v2998, %v3136
        %v3169 = vmul.f32 %v3000, %v3137
        %v3170 = vmul.f32 %v3002, %v3138
        %v3171 = vmul.f32 %v3004, %v3139
        %v3172 = vmul.f32 %v3006, %v3140
        %v3173 = vmul.f32 %v3008, %v3141
        %v3174 = vmul.f32 %v3010, %v3142
        %v3175 = vmul.f32 %v3012, %v3143
        %v3176 = vmul.f32 %v3014, %v3144
        %v3177 = vmul.f32 %v3016, %v3145
        %v3178 = vmul.f32 %v3018, %v3146
        %v3179 = vpack.c.bf16 %v3148, %v3147
        %v3180 = vpack.c.bf16 %v3150, %v3149
        %v3181 = vpack.c.bf16 %v3152, %v3151
        %v3182 = vpack.c.bf16 %v3154, %v3153
        %v3183 = vpack.c.bf16 %v3156, %v3155
        %v3184 = vpack.c.bf16 %v3158, %v3157
        %v3185 = vpack.c.bf16 %v3160, %v3159
        %v3186 = vpack.c.bf16 %v3162, %v3161
        %v3187 = vpack.c.bf16 %v3164, %v3163
        %v3188 = vpack.c.bf16 %v3166, %v3165
        %v3189 = vpack.c.bf16 %v3168, %v3167
        %v3190 = vpack.c.bf16 %v3170, %v3169
        %v3191 = vpack.c.bf16 %v3172, %v3171
        %v3192 = vpack.c.bf16 %v3174, %v3173
        %v3193 = vpack.c.bf16 %v3176, %v3175
        %v3194 = vpack.c.bf16 %v3178, %v3177
        %3199 = vrot.lane.b32.xlu0 %v1310, 96
        %v3200 = vpop.permute.xlu0 %3199
        %3201 = vrot.lane.b32.xlu0 %v1311, 96
        %v3202 = vpop.permute.xlu0 %3201
        %3203 = vrot.lane.b32.xlu0 %v1312, 96
        %v3204 = vpop.permute.xlu0 %3203
        %3205 = vrot.lane.b32.xlu0 %v1313, 96
        %v3206 = vpop.permute.xlu0 %3205
        %v3212 = vsel %vm428, %v3179, 0
        %v3215 = vsel %vm428, %v3180, 0
        %v3218 = vsel %vm428, %v3181, 0
        %v3221 = vsel %vm428, %v3182, 0
        %3223 = vmatprep.subr.bf16.mxu0 0
        %3224 = vmatpush1.bf16.msra.mxu0 %v3200
        %3225 = vmatprep.subr.bf16.mxu0 0
        %3226 = vmatpush1.bf16.msra.mxu0 %v3202
        %3227 = vmatprep.subr.bf16.mxu0 0
        %3228 = vmatpush1.bf16.msra.mxu0 %v3204
        %3229 = vmatprep.subr.bf16.mxu0 0
        %3230 = vmatpush1.bf16.msra.mxu0 %v3206
        %3231 = vmatprep.subr.bf16.mxu0 0
        %3232 = vmatpush1.bf16.msra.mxu0 0
        %3233 = vmatprep.subr.bf16.mxu0 0
        %3234 = vmatpush1.bf16.msra.mxu0 0
        %3235 = vmatprep.subr.bf16.mxu0 0
        %3236 = vmatpush1.bf16.msra.mxu0 0
        %3237 = vmatprep.subr.bf16.mxu0 0
        %3238 = vmatpush1.bf16.msra.mxu0 0
        %3239 = vmatprep.subr.bf16.mxu0 0
        %3240 = vmatpush1.bf16.msra.mxu0 0
        %3241 = vmatprep.subr.bf16.mxu0 0
        %3242 = vmatpush1.bf16.msra.mxu0 0
        %3243 = vmatprep.subr.bf16.mxu0 0
        %3244 = vmatpush1.bf16.msra.mxu0 0
        %3245 = vmatprep.subr.bf16.mxu0 0
        %3246 = vmatpush1.bf16.msra.mxu0 0
        %3247 = vmatprep.subr.bf16.mxu0 0
        %3248 = vmatpush1.bf16.msra.mxu0 0
        %3249 = vmatprep.subr.bf16.mxu0 0
        %3250 = vmatpush1.bf16.msra.mxu0 0
        %3251 = vmatprep.subr.bf16.mxu0 0
        %3252 = vmatpush1.bf16.msra.mxu0 0
        %3253 = vmatprep.subr.bf16.mxu0 0
        %3254 = vmatpush1.bf16.msra.mxu0 0
        %3255 = vmatprep.mubr.bf16.mxu0 0
        %3256 = vmatmul.mubr.bf16.gmra.mrb[0].mxu0 %v3212
        %v3257 = vpop.f32.mrb[0].mxu0
        %v3258 = vadd.f32 0.0, %v3257
        %v3259 = vpop.f32.mrb[0].mxu0
        %v3260 = vpop.f32.mrb[0].mxu0
        %v3261 = vadd.f32 0.0, %v3260
        %v3262 = vpop.f32.mrb[0].mxu0
        %3263 = vmatprep.mubr.bf16.mxu0 0
        %3264 = vmatmul.mubr.bf16.gmra.mrb[0].mxu0 %v3215
        %v3265 = vpop.f32.mrb[0].mxu0
        %v3266 = vadd.f32 0.0, %v3265
        %v3267 = vpop.f32.mrb[0].mxu0
        %v3268 = vpop.f32.mrb[0].mxu0
        %v3269 = vadd.f32 0.0, %v3268
        %v3270 = vpop.f32.mrb[0].mxu0
        %3271 = vmatprep.mubr.bf16.mxu0 0
        %3272 = vmatmul.mubr.bf16.gmra.mrb[0].mxu0 %v3218
        %v3273 = vpop.f32.mrb[0].mxu0
        %v3274 = vadd.f32 0.0, %v3273
        %v3275 = vpop.f32.mrb[0].mxu0
        %v3276 = vpop.f32.mrb[0].mxu0
        %v3277 = vadd.f32 0.0, %v3276
        %v3278 = vpop.f32.mrb[0].mxu0
        %3279 = vmatprep.mubr.bf16.mxu0 0
        %3280 = vmatmul.mubr.bf16.gmra.mrb[0].mxu0 %v3221
        %v3281 = vpop.f32.mrb[0].mxu0
        %v3282 = vadd.f32 0.0, %v3281
        %v3283 = vpop.f32.mrb[0].mxu0
        %v3284 = vpop.f32.mrb[0].mxu0
        %v3285 = vadd.f32 0.0, %v3284
        %v3286 = vpop.f32.mrb[0].mxu0
        %3287 = vdwg.mxu0
        %3292 = vrot.lane.b32.xlu0 %v1314, 96
        %v3293 = vpop.permute.xlu0 %3292
        %3294 = vrot.lane.b32.xlu0 %v1315, 96
        %v3295 = vpop.permute.xlu0 %3294
        %3296 = vrot.lane.b32.xlu0 %v1316, 96
        %v3297 = vpop.permute.xlu0 %3296
        %3298 = vrot.lane.b32.xlu0 %v1317, 96
        %v3299 = vpop.permute.xlu0 %3298
        %v3305 = vsel %vm428, %v3183, 0
        %v3308 = vsel %vm428, %v3184, 0
        %v3311 = vsel %vm428, %v3185, 0
        %v3314 = vsel %vm428, %v3186, 0
        %3316 = vmatprep.subr.bf16.mxu0 0
        %3317 = vmatpush1.bf16.msra.mxu0 %v3293
        %3318 = vmatprep.subr.bf16.mxu0 0
        %3319 = vmatpush1.bf16.msra.mxu0 %v3295
        %3320 = vmatprep.subr.bf16.mxu0 0
        %3321 = vmatpush1.bf16.msra.mxu0 %v3297
        %3322 = vmatprep.subr.bf16.mxu0 0
        %3323 = vmatpush1.bf16.msra.mxu0 %v3299
        %3324 = vmatprep.subr.bf16.mxu0 0
        %3325 = vmatpush1.bf16.msra.mxu0 0
        %3326 = vmatprep.subr.bf16.mxu0 0
        %3327 = vmatpush1.bf16.msra.mxu0 0
        %3328 = vmatprep.subr.bf16.mxu0 0
        %3329 = vmatpush1.bf16.msra.mxu0 0
        %3330 = vmatprep.subr.bf16.mxu0 0
        %3331 = vmatpush1.bf16.msra.mxu0 0
        %3332 = vmatprep.subr.bf16.mxu0 0
        %3333 = vmatpush1.bf16.msra.mxu0 0
        %3334 = vmatprep.subr.bf16.mxu0 0
        %3335 = vmatpush1.bf16.msra.mxu0 0
        %3336 = vmatprep.subr.bf16.mxu0 0
        %3337 = vmatpush1.bf16.msra.mxu0 0
        %3338 = vmatprep.subr.bf16.mxu0 0
        %3339 = vmatpush1.bf16.msra.mxu0 0
        %3340 = vmatprep.subr.bf16.mxu0 0
        %3341 = vmatpush1.bf16.msra.mxu0 0
        %3342 = vmatprep.subr.bf16.mxu0 0
        %3343 = vmatpush1.bf16.msra.mxu0 0
        %3344 = vmatprep.subr.bf16.mxu0 0
        %3345 = vmatpush1.bf16.msra.mxu0 0
        %3346 = vmatprep.subr.bf16.mxu0 0
        %3347 = vmatpush1.bf16.msra.mxu0 0
        %3348 = vmatprep.mubr.bf16.mxu0 0
        %3349 = vmatmul.mubr.bf16.gmra.mrb[0].mxu0 %v3305
        %v3350 = vpop.f32.mrb[0].mxu0
        %v3351 = vadd.f32 0.0, %v3350
        %v3352 = vpop.f32.mrb[0].mxu0
        %v3353 = vpop.f32.mrb[0].mxu0
        %v3354 = vadd.f32 0.0, %v3353
        %v3355 = vpop.f32.mrb[0].mxu0
        %3356 = vmatprep.mubr.bf16.mxu0 0
        %3357 = vmatmul.mubr.bf16.gmra.mrb[0].mxu0 %v3308
        %v3358 = vpop.f32.mrb[0].mxu0
        %v3359 = vadd.f32 0.0, %v3358
        %v3360 = vpop.f32.mrb[0].mxu0
        %v3361 = vpop.f32.mrb[0].mxu0
        %v3362 = vadd.f32 0.0, %v3361
        %v3363 = vpop.f32.mrb[0].mxu0
        %3364 = vmatprep.mubr.bf16.mxu0 0
        %3365 = vmatmul.mubr.bf16.gmra.mrb[0].mxu0 %v3311
        %v3366 = vpop.f32.mrb[0].mxu0
        %v3367 = vadd.f32 0.0, %v3366
        %v3368 = vpop.f32.mrb[0].mxu0
        %v3369 = vpop.f32.mrb[0].mxu0
        %v3370 = vadd.f32 0.0, %v3369
        %v3371 = vpop.f32.mrb[0].mxu0
        %3372 = vmatprep.mubr.bf16.mxu0 0
        %3373 = vmatmul.mubr.bf16.gmra.mrb[0].mxu0 %v3314
        %v3374 = vpop.f32.mrb[0].mxu0
        %v3375 = vadd.f32 0.0, %v3374
        %v3376 = vpop.f32.mrb[0].mxu0
        %v3377 = vpop.f32.mrb[0].mxu0
        %v3378 = vadd.f32 0.0, %v3377
        %v3379 = vpop.f32.mrb[0].mxu0
        %3380 = vdwg.mxu0
        %3385 = vrot.lane.b32.xlu0 %v1318, 96
        %v3386 = vpop.permute.xlu0 %3385
        %3387 = vrot.lane.b32.xlu0 %v1319, 96
        %v3388 = vpop.permute.xlu0 %3387
        %3389 = vrot.lane.b32.xlu0 %v1320, 96
        %v3390 = vpop.permute.xlu0 %3389
        %3391 = vrot.lane.b32.xlu0 %v1321, 96
        %v3392 = vpop.permute.xlu0 %3391
        %v3398 = vsel %vm428, %v3187, 0
        %v3401 = vsel %vm428, %v3188, 0
        %v3404 = vsel %vm428, %v3189, 0
        %v3407 = vsel %vm428, %v3190, 0
        %3409 = vmatprep.subr.bf16.mxu0 0
        %3410 = vmatpush1.bf16.msra.mxu0 %v3386
        %3411 = vmatprep.subr.bf16.mxu0 0
        %3412 = vmatpush1.bf16.msra.mxu0 %v3388
        %3413 = vmatprep.subr.bf16.mxu0 0
        %3414 = vmatpush1.bf16.msra.mxu0 %v3390
        %3415 = vmatprep.subr.bf16.mxu0 0
        %3416 = vmatpush1.bf16.msra.mxu0 %v3392
        %3417 = vmatprep.subr.bf16.mxu0 0
        %3418 = vmatpush1.bf16.msra.mxu0 0
        %3419 = vmatprep.subr.bf16.mxu0 0
        %3420 = vmatpush1.bf16.msra.mxu0 0
        %3421 = vmatprep.subr.bf16.mxu0 0
        %3422 = vmatpush1.bf16.msra.mxu0 0
        %3423 = vmatprep.subr.bf16.mxu0 0
        %3424 = vmatpush1.bf16.msra.mxu0 0
        %3425 = vmatprep.subr.bf16.mxu0 0
        %3426 = vmatpush1.bf16.msra.mxu0 0
        %3427 = vmatprep.subr.bf16.mxu0 0
        %3428 = vmatpush1.bf16.msra.mxu0 0
        %3429 = vmatprep.subr.bf16.mxu0 0
        %3430 = vmatpush1.bf16.msra.mxu0 0
        %3431 = vmatprep.subr.bf16.mxu0 0
        %3432 = vmatpush1.bf16.msra.mxu0 0
        %3433 = vmatprep.subr.bf16.mxu0 0
        %3434 = vmatpush1.bf16.msra.mxu0 0
        %3435 = vmatprep.subr.bf16.mxu0 0
        %3436 = vmatpush1.bf16.msra.mxu0 0
        %3437 = vmatprep.subr.bf16.mxu0 0
        %3438 = vmatpush1.bf16.msra.mxu0 0
        %3439 = vmatprep.subr.bf16.mxu0 0
        %3440 = vmatpush1.bf16.msra.mxu0 0
        %3441 = vmatprep.mubr.bf16.mxu0 0
        %3442 = vmatmul.mubr.bf16.gmra.mrb[0].mxu0 %v3398
        %v3443 = vpop.f32.mrb[0].mxu0
        %v3444 = vadd.f32 0.0, %v3443
        %v3445 = vpop.f32.mrb[0].mxu0
        %v3446 = vpop.f32.mrb[0].mxu0
        %v3447 = vadd.f32 0.0, %v3446
        %v3448 = vpop.f32.mrb[0].mxu0
        %3449 = vmatprep.mubr.bf16.mxu0 0
        %3450 = vmatmul.mubr.bf16.gmra.mrb[0].mxu0 %v3401
        %v3451 = vpop.f32.mrb[0].mxu0
        %v3452 = vadd.f32 0.0, %v3451
        %v3453 = vpop.f32.mrb[0].mxu0
        %v3454 = vpop.f32.mrb[0].mxu0
        %v3455 = vadd.f32 0.0, %v3454
        %v3456 = vpop.f32.mrb[0].mxu0
        %3457 = vmatprep.mubr.bf16.mxu0 0
        %3458 = vmatmul.mubr.bf16.gmra.mrb[0].mxu0 %v3404
        %v3459 = vpop.f32.mrb[0].mxu0
        %v3460 = vadd.f32 0.0, %v3459
        %v3461 = vpop.f32.mrb[0].mxu0
        %v3462 = vpop.f32.mrb[0].mxu0
        %v3463 = vadd.f32 0.0, %v3462
        %v3464 = vpop.f32.mrb[0].mxu0
        %3465 = vmatprep.mubr.bf16.mxu0 0
        %3466 = vmatmul.mubr.bf16.gmra.mrb[0].mxu0 %v3407
        %v3467 = vpop.f32.mrb[0].mxu0
        %v3468 = vadd.f32 0.0, %v3467
        %v3469 = vpop.f32.mrb[0].mxu0
        %v3470 = vpop.f32.mrb[0].mxu0
        %v3471 = vadd.f32 0.0, %v3470
        %v3472 = vpop.f32.mrb[0].mxu0
        %3473 = vdwg.mxu0
        %3478 = vrot.lane.b32.xlu0 %v1322, 96
        %v3479 = vpop.permute.xlu0 %3478
        %3480 = vrot.lane.b32.xlu0 %v1323, 96
        %v3481 = vpop.permute.xlu0 %3480
        %3482 = vrot.lane.b32.xlu0 %v1324, 96
        %v3483 = vpop.permute.xlu0 %3482
        %3484 = vrot.lane.b32.xlu0 %v1325, 96
        %v3485 = vpop.permute.xlu0 %3484
        %v3491 = vsel %vm428, %v3191, 0
        %v3494 = vsel %vm428, %v3192, 0
        %v3497 = vsel %vm428, %v3193, 0
        %v3500 = vsel %vm428, %v3194, 0
        %3502 = vmatprep.subr.bf16.mxu0 0
        %3503 = vmatpush1.bf16.msra.mxu0 %v3479
        %3504 = vmatprep.subr.bf16.mxu0 0
        %3505 = vmatpush1.bf16.msra.mxu0 %v3481
        %3506 = vmatprep.subr.bf16.mxu0 0
        %3507 = vmatpush1.bf16.msra.mxu0 %v3483
        %3508 = vmatprep.subr.bf16.mxu0 0
        %3509 = vmatpush1.bf16.msra.mxu0 %v3485
        %3510 = vmatprep.subr.bf16.mxu0 0
        %3511 = vmatpush1.bf16.msra.mxu0 0
        %3512 = vmatprep.subr.bf16.mxu0 0
        %3513 = vmatpush1.bf16.msra.mxu0 0
        %3514 = vmatprep.subr.bf16.mxu0 0
        %3515 = vmatpush1.bf16.msra.mxu0 0
        %3516 = vmatprep.subr.bf16.mxu0 0
        %3517 = vmatpush1.bf16.msra.mxu0 0
        %3518 = vmatprep.subr.bf16.mxu0 0
        %3519 = vmatpush1.bf16.msra.mxu0 0
        %3520 = vmatprep.subr.bf16.mxu0 0
        %3521 = vmatpush1.bf16.msra.mxu0 0
        %3522 = vmatprep.subr.bf16.mxu0 0
        %3523 = vmatpush1.bf16.msra.mxu0 0
        %3524 = vmatprep.subr.bf16.mxu0 0
        %3525 = vmatpush1.bf16.msra.mxu0 0
        %3526 = vmatprep.subr.bf16.mxu0 0
        %3527 = vmatpush1.bf16.msra.mxu0 0
        %3528 = vmatprep.subr.bf16.mxu0 0
        %3529 = vmatpush1.bf16.msra.mxu0 0
        %3530 = vmatprep.subr.bf16.mxu0 0
        %3531 = vmatpush1.bf16.msra.mxu0 0
        %3532 = vmatprep.subr.bf16.mxu0 0
        %3533 = vmatpush1.bf16.msra.mxu0 0
        %3534 = vmatprep.mubr.bf16.mxu0 0
        %3535 = vmatmul.mubr.bf16.gmra.mrb[0].mxu0 %v3491
        %v3536 = vpop.f32.mrb[0].mxu0
        %v3537 = vadd.f32 0.0, %v3536
        %v3538 = vpop.f32.mrb[0].mxu0
        %v3539 = vpop.f32.mrb[0].mxu0
        %v3540 = vadd.f32 0.0, %v3539
        %v3541 = vpop.f32.mrb[0].mxu0
        %3542 = vmatprep.mubr.bf16.mxu0 0
        %3543 = vmatmul.mubr.bf16.gmra.mrb[0].mxu0 %v3494
        %v3544 = vpop.f32.mrb[0].mxu0
        %v3545 = vadd.f32 0.0, %v3544
        %v3546 = vpop.f32.mrb[0].mxu0
        %v3547 = vpop.f32.mrb[0].mxu0
        %v3548 = vadd.f32 0.0, %v3547
        %v3549 = vpop.f32.mrb[0].mxu0
        %3550 = vmatprep.mubr.bf16.mxu0 0
        %3551 = vmatmul.mubr.bf16.gmra.mrb[0].mxu0 %v3497
        %v3552 = vpop.f32.mrb[0].mxu0
        %v3553 = vadd.f32 0.0, %v3552
        %v3554 = vpop.f32.mrb[0].mxu0
        %v3555 = vpop.f32.mrb[0].mxu0
        %v3556 = vadd.f32 0.0, %v3555
        %v3557 = vpop.f32.mrb[0].mxu0
        %3558 = vmatprep.mubr.bf16.mxu0 0
        %3559 = vmatmul.mubr.bf16.gmra.mrb[0].mxu0 %v3500
        %v3560 = vpop.f32.mrb[0].mxu0
        %v3561 = vadd.f32 0.0, %v3560
        %v3562 = vpop.f32.mrb[0].mxu0
        %v3563 = vpop.f32.mrb[0].mxu0
        %v3564 = vadd.f32 0.0, %v3563
        %v3565 = vpop.f32.mrb[0].mxu0
        %3566 = vdwg.mxu0
        %3599 = vrot.lane.b32.xlu0 %v3258, 32
        %v3600 = vpop.permute.xlu0 %3599
        %3601 = vrot.lane.b32.xlu0 %v3261, 32
        %v3602 = vpop.permute.xlu0 %3601
        %3603 = vrot.lane.b32.xlu0 %v3266, 32
        %v3604 = vpop.permute.xlu0 %3603
        %3605 = vrot.lane.b32.xlu0 %v3269, 32
        %v3606 = vpop.permute.xlu0 %3605
        %3607 = vrot.lane.b32.xlu0 %v3274, 32
        %v3608 = vpop.permute.xlu0 %3607
        %3609 = vrot.lane.b32.xlu0 %v3277, 32
        %v3610 = vpop.permute.xlu0 %3609
        %3611 = vrot.lane.b32.xlu0 %v3282, 32
        %v3612 = vpop.permute.xlu0 %3611
        %3613 = vrot.lane.b32.xlu0 %v3285, 32
        %v3614 = vpop.permute.xlu0 %3613
        %3615 = vrot.lane.b32.xlu0 %v3351, 32
        %v3616 = vpop.permute.xlu0 %3615
        %3617 = vrot.lane.b32.xlu0 %v3354, 32
        %v3618 = vpop.permute.xlu0 %3617
        %3619 = vrot.lane.b32.xlu0 %v3359, 32
        %v3620 = vpop.permute.xlu0 %3619
        %3621 = vrot.lane.b32.xlu0 %v3362, 32
        %v3622 = vpop.permute.xlu0 %3621
        %3623 = vrot.lane.b32.xlu0 %v3367, 32
        %v3624 = vpop.permute.xlu0 %3623
        %3625 = vrot.lane.b32.xlu0 %v3370, 32
        %v3626 = vpop.permute.xlu0 %3625
        %3627 = vrot.lane.b32.xlu0 %v3375, 32
        %v3628 = vpop.permute.xlu0 %3627
        %3629 = vrot.lane.b32.xlu0 %v3378, 32
        %v3630 = vpop.permute.xlu0 %3629
        %3631 = vrot.lane.b32.xlu0 %v3444, 32
        %v3632 = vpop.permute.xlu0 %3631
        %3633 = vrot.lane.b32.xlu0 %v3447, 32
        %v3634 = vpop.permute.xlu0 %3633
        %3635 = vrot.lane.b32.xlu0 %v3452, 32
        %v3636 = vpop.permute.xlu0 %3635
        %3637 = vrot.lane.b32.xlu0 %v3455, 32
        %v3638 = vpop.permute.xlu0 %3637
        %3639 = vrot.lane.b32.xlu0 %v3460, 32
        %v3640 = vpop.permute.xlu0 %3639
        %3641 = vrot.lane.b32.xlu0 %v3463, 32
        %v3642 = vpop.permute.xlu0 %3641
        %3643 = vrot.lane.b32.xlu0 %v3468, 32
        %v3644 = vpop.permute.xlu0 %3643
        %3645 = vrot.lane.b32.xlu0 %v3471, 32
        %v3646 = vpop.permute.xlu0 %3645
        %3647 = vrot.lane.b32.xlu0 %v3537, 32
        %v3648 = vpop.permute.xlu0 %3647
        %3649 = vrot.lane.b32.xlu0 %v3540, 32
        %v3650 = vpop.permute.xlu0 %3649
        %3651 = vrot.lane.b32.xlu0 %v3545, 32
        %v3652 = vpop.permute.xlu0 %3651
        %3653 = vrot.lane.b32.xlu0 %v3548, 32
        %v3654 = vpop.permute.xlu0 %3653
        %3655 = vrot.lane.b32.xlu0 %v3553, 32
        %v3656 = vpop.permute.xlu0 %3655
        %3657 = vrot.lane.b32.xlu0 %v3556, 32
        %v3658 = vpop.permute.xlu0 %3657
        %3659 = vrot.lane.b32.xlu0 %v3561, 32
        %v3660 = vpop.permute.xlu0 %3659
        %3661 = vrot.lane.b32.xlu0 %v3564, 32
        %v3662 = vpop.permute.xlu0 %3661
        %v3695 = vsel %vm1338, %v2146, %v3600
        %v3696 = vsel %vm1338, %v2149, %v3602
        %v3697 = vsel %vm1338, %v2154, %v3604
        %v3698 = vsel %vm1338, %v2157, %v3606
        %v3699 = vsel %vm1338, %v2162, %v3608
        %v3700 = vsel %vm1338, %v2165, %v3610
        %v3701 = vsel %vm1338, %v2170, %v3612
        %v3702 = vsel %vm1338, %v2173, %v3614
        %v3703 = vsel %vm1338, %v2223, %v3616
        %v3704 = vsel %vm1338, %v2226, %v3618
        %v3705 = vsel %vm1338, %v2231, %v3620
        %v3706 = vsel %vm1338, %v2234, %v3622
        %v3707 = vsel %vm1338, %v2239, %v3624
        %v3708 = vsel %vm1338, %v2242, %v3626
        %v3709 = vsel %vm1338, %v2247, %v3628
        %v3710 = vsel %vm1338, %v2250, %v3630
        %v3711 = vsel %vm1338, %v2300, %v3632
        %v3712 = vsel %vm1338, %v2303, %v3634
        %v3713 = vsel %vm1338, %v2308, %v3636
        %v3714 = vsel %vm1338, %v2311, %v3638
        %v3715 = vsel %vm1338, %v2316, %v3640
        %v3716 = vsel %vm1338, %v2319, %v3642
        %v3717 = vsel %vm1338, %v2324, %v3644
        %v3718 = vsel %vm1338, %v2327, %v3646
        %v3719 = vsel %vm1338, %v2377, %v3648
        %v3720 = vsel %vm1338, %v2380, %v3650
        %v3721 = vsel %vm1338, %v2385, %v3652
        %v3722 = vsel %vm1338, %v2388, %v3654
        %v3723 = vsel %vm1338, %v2393, %v3656
        %v3724 = vsel %vm1338, %v2396, %v3658
        %v3725 = vsel %vm1338, %v2401, %v3660
        %v3726 = vsel %vm1338, %v2404, %v3662
        %v3727 = vpack.c.bf16 %v3696, %v3695
        %v3728 = vpack.c.bf16 %v3698, %v3697
        %v3729 = vpack.c.bf16 %v3700, %v3699
        %v3730 = vpack.c.bf16 %v3702, %v3701
        %v3731 = vpack.c.bf16 %v3704, %v3703
        %v3732 = vpack.c.bf16 %v3706, %v3705
        %v3733 = vpack.c.bf16 %v3708, %v3707
        %v3734 = vpack.c.bf16 %v3710, %v3709
        %v3735 = vpack.c.bf16 %v3712, %v3711
        %v3736 = vpack.c.bf16 %v3714, %v3713
        %v3737 = vpack.c.bf16 %v3716, %v3715
        %v3738 = vpack.c.bf16 %v3718, %v3717
        %v3739 = vpack.c.bf16 %v3720, %v3719
        %v3740 = vpack.c.bf16 %v3722, %v3721
        %v3741 = vpack.c.bf16 %v3724, %v3723
        %v3742 = vpack.c.bf16 %v3726, %v3725
        %v3744 = vlaneseq
        %v3745 = vshrl.u32 %v3744, 7
        %v3746 = vsub.s32 0, %v3745
        %v3747 = vrot.slane %v426, %v3746
        %v3757 = vunpack.c.l.b16 %v418
        %v3758 = vunpack.c.l.b16 %v419
        %v3759 = vunpack.c.l.b16 %v420
        %v3760 = vunpack.c.l.b16 %v421
        %v3761 = vunpack.c.l.b16 %v422
        %v3762 = vunpack.c.l.b16 %v423
        %v3763 = vunpack.c.l.b16 %v424
        %v3764 = vunpack.c.l.b16 %v425
        %v3765 = vpack.c.b16 %v3758, %v3757
        %v3766 = vpack.c.b16 %v3760, %v3759
        %v3767 = vpack.c.b16 %v3762, %v3761
        %v3768 = vpack.c.b16 %v3764, %v3763
        %v3774 = vsel %vm428, %v3727, 0
        %v3777 = vsel %vm428, %v3728, 0
        %v3780 = vsel %vm428, %v3729, 0
        %v3783 = vsel %vm428, %v3730, 0
        %v3786 = vsel %vm428, %v3731, 0
        %v3789 = vsel %vm428, %v3732, 0
        %v3792 = vsel %vm428, %v3733, 0
        %v3795 = vsel %vm428, %v3734, 0
        %v3798 = vsel %vm428, %v3735, 0
        %v3801 = vsel %vm428, %v3736, 0
        %v3804 = vsel %vm428, %v3737, 0
        %v3807 = vsel %vm428, %v3738, 0
        %v3810 = vsel %vm428, %v3739, 0
        %v3813 = vsel %vm428, %v3740, 0
        %v3816 = vsel %vm428, %v3741, 0
        %v3819 = vsel %vm428, %v3742, 0
        %3821 = vmatprep.subr.bf16.mxu0 0
        %3822 = vmatpush1.bf16.msra.mxu0 %v3765
        %3823 = vmatprep.subr.bf16.mxu0 0
        %3824 = vmatpush1.bf16.msra.mxu0 %v3766
        %3825 = vmatprep.subr.bf16.mxu0 0
        %3826 = vmatpush1.bf16.msra.mxu0 %v3767
        %3827 = vmatprep.subr.bf16.mxu0 0
        %3828 = vmatpush1.bf16.msra.mxu0 %v3768
        %3829 = vmatprep.subr.bf16.mxu0 0
        %3830 = vmatpush1.bf16.msra.mxu0 0
        %3831 = vmatprep.subr.bf16.mxu0 0
        %3832 = vmatpush1.bf16.msra.mxu0 0
        %3833 = vmatprep.subr.bf16.mxu0 0
        %3834 = vmatpush1.bf16.msra.mxu0 0
        %3835 = vmatprep.subr.bf16.mxu0 0
        %3836 = vmatpush1.bf16.msra.mxu0 0
        %3837 = vmatprep.subr.bf16.mxu0 0
        %3838 = vmatpush1.bf16.msra.mxu0 0
        %3839 = vmatprep.subr.bf16.mxu0 0
        %3840 = vmatpush1.bf16.msra.mxu0 0
        %3841 = vmatprep.subr.bf16.mxu0 0
        %3842 = vmatpush1.bf16.msra.mxu0 0
        %3843 = vmatprep.subr.bf16.mxu0 0
        %3844 = vmatpush1.bf16.msra.mxu0 0
        %3845 = vmatprep.subr.bf16.mxu0 0
        %3846 = vmatpush1.bf16.msra.mxu0 0
        %3847 = vmatprep.subr.bf16.mxu0 0
        %3848 = vmatpush1.bf16.msra.mxu0 0
        %3849 = vmatprep.subr.bf16.mxu0 0
        %3850 = vmatpush1.bf16.msra.mxu0 0
        %3851 = vmatprep.subr.bf16.mxu0 0
        %3852 = vmatpush1.bf16.msra.mxu0 0
        %3853 = vmatprep.mubr.bf16.mxu0 0
        %3854 = vmatmul.mubr.bf16.gmra.mrb[0].mxu0 %v3774
        %v3855 = vpop.f32.mrb[0].mxu0
        %v3856 = vadd.f32 %v3747, %v3855
        %v3857 = vpop.f32.mrb[0].mxu0
        %v3858 = vpop.f32.mrb[0].mxu0
        %v3859 = vadd.f32 %v3747, %v3858
        %v3860 = vpop.f32.mrb[0].mxu0
        %3861 = vmatprep.mubr.bf16.mxu0 0
        %3862 = vmatmul.mubr.bf16.gmra.mrb[0].mxu0 %v3777
        %v3863 = vpop.f32.mrb[0].mxu0
        %v3864 = vadd.f32 %v3747, %v3863
        %v3865 = vpop.f32.mrb[0].mxu0
        %v3866 = vpop.f32.mrb[0].mxu0
        %v3867 = vadd.f32 %v3747, %v3866
        %v3868 = vpop.f32.mrb[0].mxu0
        %3869 = vmatprep.mubr.bf16.mxu0 0
        %3870 = vmatmul.mubr.bf16.gmra.mrb[0].mxu0 %v3780
        %v3871 = vpop.f32.mrb[0].mxu0
        %v3872 = vadd.f32 %v3747, %v3871
        %v3873 = vpop.f32.mrb[0].mxu0
        %v3874 = vpop.f32.mrb[0].mxu0
        %v3875 = vadd.f32 %v3747, %v3874
        %v3876 = vpop.f32.mrb[0].mxu0
        %3877 = vmatprep.mubr.bf16.mxu0 0
        %3878 = vmatmul.mubr.bf16.gmra.mrb[0].mxu0 %v3783
        %v3879 = vpop.f32.mrb[0].mxu0
        %v3880 = vadd.f32 %v3747, %v3879
        %v3881 = vpop.f32.mrb[0].mxu0
        %v3882 = vpop.f32.mrb[0].mxu0
        %v3883 = vadd.f32 %v3747, %v3882
        %v3884 = vpop.f32.mrb[0].mxu0
        %3885 = vmatprep.mubr.bf16.mxu0 0
        %3886 = vmatmul.mubr.bf16.gmra.mrb[0].mxu0 %v3786
        %v3887 = vpop.f32.mrb[0].mxu0
        %v3888 = vadd.f32 %v3747, %v3887
        %v3889 = vpop.f32.mrb[0].mxu0
        %v3890 = vpop.f32.mrb[0].mxu0
        %v3891 = vadd.f32 %v3747, %v3890
        %v3892 = vpop.f32.mrb[0].mxu0
        %3893 = vmatprep.mubr.bf16.mxu0 0
        %3894 = vmatmul.mubr.bf16.gmra.mrb[0].mxu0 %v3789
        %v3895 = vpop.f32.mrb[0].mxu0
        %v3896 = vadd.f32 %v3747, %v3895
        %v3897 = vpop.f32.mrb[0].mxu0
        %v3898 = vpop.f32.mrb[0].mxu0
        %v3899 = vadd.f32 %v3747, %v3898
        %v3900 = vpop.f32.mrb[0].mxu0
        %3901 = vmatprep.mubr.bf16.mxu0 0
        %3902 = vmatmul.mubr.bf16.gmra.mrb[0].mxu0 %v3792
        %v3903 = vpop.f32.mrb[0].mxu0
        %v3904 = vadd.f32 %v3747, %v3903
        %v3905 = vpop.f32.mrb[0].mxu0
        %v3906 = vpop.f32.mrb[0].mxu0
        %v3907 = vadd.f32 %v3747, %v3906
        %v3908 = vpop.f32.mrb[0].mxu0
        %3909 = vmatprep.mubr.bf16.mxu0 0
        %3910 = vmatmul.mubr.bf16.gmra.mrb[0].mxu0 %v3795
        %v3911 = vpop.f32.mrb[0].mxu0
        %v3912 = vadd.f32 %v3747, %v3911
        %v3913 = vpop.f32.mrb[0].mxu0
        %v3914 = vpop.f32.mrb[0].mxu0
        %v3915 = vadd.f32 %v3747, %v3914
        %v3916 = vpop.f32.mrb[0].mxu0
        %3917 = vmatprep.mubr.bf16.mxu0 0
        %3918 = vmatmul.mubr.bf16.gmra.mrb[0].mxu0 %v3798
        %v3919 = vpop.f32.mrb[0].mxu0
        %v3920 = vadd.f32 %v3747, %v3919
        %v3921 = vpop.f32.mrb[0].mxu0
        %v3922 = vpop.f32.mrb[0].mxu0
        %v3923 = vadd.f32 %v3747, %v3922
        %v3924 = vpop.f32.mrb[0].mxu0
        %3925 = vmatprep.mubr.bf16.mxu0 0
        %3926 = vmatmul.mubr.bf16.gmra.mrb[0].mxu0 %v3801
        %v3927 = vpop.f32.mrb[0].mxu0
        %v3928 = vadd.f32 %v3747, %v3927
        %v3929 = vpop.f32.mrb[0].mxu0
        %v3930 = vpop.f32.mrb[0].mxu0
        %v3931 = vadd.f32 %v3747, %v3930
        %v3932 = vpop.f32.mrb[0].mxu0
        %3933 = vmatprep.mubr.bf16.mxu0 0
        %3934 = vmatmul.mubr.bf16.gmra.mrb[0].mxu0 %v3804
        %v3935 = vpop.f32.mrb[0].mxu0
        %v3936 = vadd.f32 %v3747, %v3935
        %v3937 = vpop.f32.mrb[0].mxu0
        %v3938 = vpop.f32.mrb[0].mxu0
        %v3939 = vadd.f32 %v3747, %v3938
        %v3940 = vpop.f32.mrb[0].mxu0
        %3941 = vmatprep.mubr.bf16.mxu0 0
        %3942 = vmatmul.mubr.bf16.gmra.mrb[0].mxu0 %v3807
        %v3943 = vpop.f32.mrb[0].mxu0
        %v3944 = vadd.f32 %v3747, %v3943
        %v3945 = vpop.f32.mrb[0].mxu0
        %v3946 = vpop.f32.mrb[0].mxu0
        %v3947 = vadd.f32 %v3747, %v3946
        %v3948 = vpop.f32.mrb[0].mxu0
        %3949 = vmatprep.mubr.bf16.mxu0 0
        %3950 = vmatmul.mubr.bf16.gmra.mrb[0].mxu0 %v3810
        %v3951 = vpop.f32.mrb[0].mxu0
        %v3952 = vadd.f32 %v3747, %v3951
        %v3953 = vpop.f32.mrb[0].mxu0
        %v3954 = vpop.f32.mrb[0].mxu0
        %v3955 = vadd.f32 %v3747, %v3954
        %v3956 = vpop.f32.mrb[0].mxu0
        %3957 = vmatprep.mubr.bf16.mxu0 0
        %3958 = vmatmul.mubr.bf16.gmra.mrb[0].mxu0 %v3813
        %v3959 = vpop.f32.mrb[0].mxu0
        %v3960 = vadd.f32 %v3747, %v3959
        %v3961 = vpop.f32.mrb[0].mxu0
        %v3962 = vpop.f32.mrb[0].mxu0
        %v3963 = vadd.f32 %v3747, %v3962
        %v3964 = vpop.f32.mrb[0].mxu0
        %3965 = vmatprep.mubr.bf16.mxu0 0
        %3966 = vmatmul.mubr.bf16.gmra.mrb[0].mxu0 %v3816
        %v3967 = vpop.f32.mrb[0].mxu0
        %v3968 = vadd.f32 %v3747, %v3967
        %v3969 = vpop.f32.mrb[0].mxu0
        %v3970 = vpop.f32.mrb[0].mxu0
        %v3971 = vadd.f32 %v3747, %v3970
        %v3972 = vpop.f32.mrb[0].mxu0
        %3973 = vmatprep.mubr.bf16.mxu0 0
        %3974 = vmatmul.mubr.bf16.gmra.mrb[0].mxu0 %v3819
        %v3975 = vpop.f32.mrb[0].mxu0
        %v3976 = vadd.f32 %v3747, %v3975
        %v3977 = vpop.f32.mrb[0].mxu0
        %v3978 = vpop.f32.mrb[0].mxu0
        %v3979 = vadd.f32 %v3747, %v3978
        %v3980 = vpop.f32.mrb[0].mxu0
        %3981 = vdwg.mxu0
        %v3983 = vlaneseq
        %v3984 = vshrl.u32 %v3983, 7
        %v3985 = vsub.s32 0, %v3984
        %v3986 = vrot.slane %v427, %v3985
        %v3988 = vmul.f32 %v3856, %v3986
        %v3989 = vmul.f32 %v3859, %v3986
        %v3990 = vmul.f32 %v3864, %v3986
        %v3991 = vmul.f32 %v3867, %v3986
        %v3992 = vmul.f32 %v3872, %v3986
        %v3993 = vmul.f32 %v3875, %v3986
        %v3994 = vmul.f32 %v3880, %v3986
        %v3995 = vmul.f32 %v3883, %v3986
        %v3996 = vmul.f32 %v3888, %v3986
        %v3997 = vmul.f32 %v3891, %v3986
        %v3998 = vmul.f32 %v3896, %v3986
        %v3999 = vmul.f32 %v3899, %v3986
        %v4000 = vmul.f32 %v3904, %v3986
        %v4001 = vmul.f32 %v3907, %v3986
        %v4002 = vmul.f32 %v3912, %v3986
        %v4003 = vmul.f32 %v3915, %v3986
        %v4004 = vmul.f32 %v3920, %v3986
        %v4005 = vmul.f32 %v3923, %v3986
        %v4006 = vmul.f32 %v3928, %v3986
        %v4007 = vmul.f32 %v3931, %v3986
        %v4008 = vmul.f32 %v3936, %v3986
        %v4009 = vmul.f32 %v3939, %v3986
        %v4010 = vmul.f32 %v3944, %v3986
        %v4011 = vmul.f32 %v3947, %v3986
        %v4012 = vmul.f32 %v3952, %v3986
        %v4013 = vmul.f32 %v3955, %v3986
        %v4014 = vmul.f32 %v3960, %v3986
        %v4015 = vmul.f32 %v3963, %v3986
        %v4016 = vmul.f32 %v3968, %v3986
        %v4017 = vmul.f32 %v3971, %v3986
        %v4018 = vmul.f32 %v3976, %v3986
        %v4019 = vmul.f32 %v3979, %v3986
        %v4020 = vadd.f32 %v375, %v3988
        %v4021 = vadd.f32 %v376, %v3996
        %v4022 = vadd.f32 %v377, %v3989
        %v4023 = vadd.f32 %v378, %v3997
        %v4024 = vadd.f32 %v379, %v3990
        %v4025 = vadd.f32 %v380, %v3998
        %v4026 = vadd.f32 %v381, %v3991
        %v4027 = vadd.f32 %v382, %v3999
        %v4028 = vadd.f32 %v383, %v3992
        %v4029 = vadd.f32 %v384, %v4000
        %v4030 = vadd.f32 %v385, %v3993
        %v4031 = vadd.f32 %v386, %v4001
        %v4032 = vadd.f32 %v387, %v3994
        %v4033 = vadd.f32 %v388, %v4002
        %v4034 = vadd.f32 %v389, %v3995
        %v4035 = vadd.f32 %v390, %v4003
        %v4036 = vadd.f32 %v391, %v4004
        %v4037 = vadd.f32 %v392, %v4012
        %v4038 = vadd.f32 %v393, %v4005
        %v4039 = vadd.f32 %v394, %v4013
        %v4040 = vadd.f32 %v395, %v4006
        %v4041 = vadd.f32 %v396, %v4014
        %v4042 = vadd.f32 %v397, %v4007
        %v4043 = vadd.f32 %v398, %v4015
        %v4044 = vadd.f32 %v399, %v4008
        %v4045 = vadd.f32 %v400, %v4016
        %v4046 = vadd.f32 %v401, %v4009
        %v4047 = vadd.f32 %v402, %v4017
        %v4048 = vadd.f32 %v403, %v4010
        %v4049 = vadd.f32 %v404, %v4018
        %v4050 = vadd.f32 %v405, %v4011
        %v4051 = vadd.f32 %v406, %v4019
        %4052 = vst.msk [vmem:[%s371] sm:$0xff] %vm428, %v4020
        %4053 = vst.msk [vmem:[%s371 + $0x8] sm:$0xff] %vm428, %v4021
        %4054 = vst.msk [vmem:[%s371 + $0x10] sm:$0xff] %vm428, %v4022
        %4055 = vst.msk [vmem:[%s371 + $0x18] sm:$0xff] %vm428, %v4023
        %4056 = vst.msk [vmem:[%s371 + $0x20] sm:$0xff] %vm428, %v4024
        %4057 = vst.msk [vmem:[%s371 + $0x28] sm:$0xff] %vm428, %v4025
        %4058 = vst.msk [vmem:[%s371 + $0x30] sm:$0xff] %vm428, %v4026
        %4059 = vst.msk [vmem:[%s371 + $0x38] sm:$0xff] %vm428, %v4027
        %4060 = vst.msk [vmem:[%s371 + $0x40] sm:$0xff] %vm428, %v4028
        %4061 = vst.msk [vmem:[%s371 + $0x48] sm:$0xff] %vm428, %v4029
        %4062 = vst.msk [vmem:[%s371 + $0x50] sm:$0xff] %vm428, %v4030
        %4063 = vst.msk [vmem:[%s371 + $0x58] sm:$0xff] %vm428, %v4031
        %4064 = vst.msk [vmem:[%s371 + $0x60] sm:$0xff] %vm428, %v4032
        %4065 = vst.msk [vmem:[%s371 + $0x68] sm:$0xff] %vm428, %v4033
        %4066 = vst.msk [vmem:[%s371 + $0x70] sm:$0xff] %vm428, %v4034
        %4067 = vst.msk [vmem:[%s371 + $0x78] sm:$0xff] %vm428, %v4035
        %4068 = vst.msk [vmem:[%s371 + $0x80] sm:$0xff] %vm428, %v4036
        %4069 = vst.msk [vmem:[%s371 + $0x88] sm:$0xff] %vm428, %v4037
        %4070 = vst.msk [vmem:[%s371 + $0x90] sm:$0xff] %vm428, %v4038
        %4071 = vst.msk [vmem:[%s371 + $0x98] sm:$0xff] %vm428, %v4039
        %4072 = vst.msk [vmem:[%s371 + $0xa0] sm:$0xff] %vm428, %v4040
        %4073 = vst.msk [vmem:[%s371 + $0xa8] sm:$0xff] %vm428, %v4041
        %4074 = vst.msk [vmem:[%s371 + $0xb0] sm:$0xff] %vm428, %v4042
        %4075 = vst.msk [vmem:[%s371 + $0xb8] sm:$0xff] %vm428, %v4043
        %4076 = vst.msk [vmem:[%s371 + $0xc0] sm:$0xff] %vm428, %v4044
        %4077 = vst.msk [vmem:[%s371 + $0xc8] sm:$0xff] %vm428, %v4045
        %4078 = vst.msk [vmem:[%s371 + $0xd0] sm:$0xff] %vm428, %v4046
        %4079 = vst.msk [vmem:[%s371 + $0xd8] sm:$0xff] %vm428, %v4047
        %4080 = vst.msk [vmem:[%s371 + $0xe0] sm:$0xff] %vm428, %v4048
        %4081 = vst.msk [vmem:[%s371 + $0xe8] sm:$0xff] %vm428, %v4049
        %4082 = vst.msk [vmem:[%s371 + $0xf0] sm:$0xff] %vm428, %v4050
        %4083 = vst.msk [vmem:[%s371 + $0xf8] sm:$0xff] %vm428, %v4051
        %s4084 = sand.u32 %s223, 1
        %s4085 = scalar_lea.sflag [#allocation4], %s4084
        %s4086 = sand.u32 %s223, 1
        %s4087 = smul.addr %s4086, 256
        %s4088 = scalar_lea.vmem [#allocation8], %s4087
        // Predicated region
        $region65: #{tpu_custom_call.1} parent=51 // pred_check
          %p4089 = pneg %p233
        $region66: #{tpu_custom_call.1} parent=51 // pred_check_branch
          %4091 = sbr.rel (%p4089) target = $region68
        $region67: #{tpu_custom_call.1} parent=51 // pred_region
          %s4092 = smul.u32 16, %s31
          %s4094 = ssub.s32 4096, 4096
          %4095 = vsyncadd %s4085, %s4094
          %s4096 = smul.addr %s4092, 2
          %s4097 = smul.addr %s30, 32
          %s4098 = sadd.s32 %s4096, %s4097
          %s4099 = smul.addr %s4098, 128
          %s4100 = scalar_lea.hbm %s8, %s4099
          %s4101 = sshll.u32 %s4088, 4
          %s4102 = int_to_ptr.vmem [resolvable:$true] %s4101
          %4107 = dma.vmem_to_hbm [thread:$0]  %s4102, 4096, %s4100, %s4085, 128, 128, 8
        $region68: #{tpu_custom_call.1} parent=51 // pred_fallthru
          _
      $region52: #{tpu_custom_call.1} parent=5 // pred_fallthru
        _
      %p4108 = scmp.le.s32.totalorder 2, %s21
      // Predicated region
      $region69: #{tpu_custom_call.1} parent=5 // pred_check
        %p4109 = pneg %p4108
      $region70: #{tpu_custom_call.1} parent=5 // pred_check_branch
        %4111 = sbr.rel (%p4109) target = $region72
      $region71: #{tpu_custom_call.1} parent=5 // pred_region
        %s4112 = ssub.s32 %s21, 2
        // Predicated region
        $region73: #{tpu_custom_call.1} parent=71 // pred_check
          %p4113 = pneg %p239
        $region74: #{tpu_custom_call.1} parent=71 // pred_check_branch
          %4115 = sbr.rel (%p4113) target = $region76
        $region75: #{tpu_custom_call.1} parent=71 // pred_region
          %s4116 = sand.u32 %s224, 1
          %s4117 = scalar_lea.sflag [#allocation4], %s4116
          %s4118 = sand.u32 %s224, 1
          %s4119 = smul.addr %s4118, 256
          %s4120 = scalar_lea.vmem [#allocation8], %s4119
          %4121 = dma.done %s4117, 4096
        $region76: #{tpu_custom_call.1} parent=71 // pred_fallthru
          _
      $region72: #{tpu_custom_call.1} parent=5 // pred_fallthru
        _
    $region6: #{tpu_custom_call.1} parent=1 // loop_footer
      %s25 = sadd.s32 1, %s21
    $region7: #{tpu_custom_call.1} parent=1 // loop_footer_branch
      %20 = sbr.rel target = $region3
    $region8: #{tpu_custom_call.1} parent=1 // loop_exit
      _
    %4122 = vsyncpa [#allocation3], 1
    %s4123 = scalar_lea.sflag [#allocation3], 1
    %4124 = vsyncpa %s4123, 1
    %4125 = vsyncpa [#allocation6], 1
    %4126 = vsyncpa [#allocation4], 1
    %s4127 = scalar_lea.sflag [#allocation4], 1
    %4128 = vsyncpa %s4127, 1

</llo_original>
